<compile_context>
chip_gen: v7x
topology: tpu7x:2x2x1
jax: 0.10.0
libtpu: 0.0.40
codegen_flags: <defaults>
</compile_context>

<pallas_src>
import jax
import jax.numpy as jnp
from jax.experimental import pallas as pl
from jax.experimental.pallas import tpu as pltpu


STEM_COUT = 32       # mobilenet_v2 stem output channels
FEAT_DIM = 1000      # mobilenet_v2 classifier output dim (fc1 input)
CLS = 2              # final x.view(*s[:2], 2) implies cls == 2
OUT_PAD = 128        # final logits padded to a full lane width, sliced after


# ----------------------------------------------------------------------------
# Fused Pallas kernel: stem conv -> global avg pool -> classifier -> FC head
# ----------------------------------------------------------------------------

def _fused_kernel(p_ref, ws_ref, bs_ref, wc_ref, bc_ref,
                  w1_ref, b1_ref, w2_ref, b2_ref, w3_ref, b3_ref, o_ref):
    """Processes a block of TILE_N images entirely in VMEM/vregs."""
    tile_r = p_ref.shape[0]          # TILE_N * Ho * Wo  (im2col rows)
    tile_n = o_ref.shape[1]          # images per grid step
    howo = tile_r // tile_n
    c_stem = ws_ref.shape[1]

    # --- stem conv 3x3/s2 as im2col matmul + ReLU6 (f32) ---
    conv = jnp.dot(p_ref[...], ws_ref[...], preferred_element_type=jnp.float32)
    conv = jnp.clip(conv + bs_ref[...], 0.0, 6.0)            # MobileNetV2 ReLU6

    # --- global average pool per image (rows grouped by image; stays in VMEM) ---
    pooled = jnp.mean(conv.reshape(tile_n, howo, c_stem), axis=1)   # (tile_n, 32)

    # --- classifier to 1000 features (bf16 operands, f32 accumulate) ---
    feat = jnp.dot(pooled.astype(jnp.bfloat16), wc_ref[...],
                   preferred_element_type=jnp.float32) + bc_ref[...]

    # --- FC head: relu -> fc1 -> relu -> fc2 -> relu -> fc3 ---
    x = jnp.maximum(feat, 0.0)
    x = jnp.dot(x.astype(jnp.bfloat16), w1_ref[...],
                preferred_element_type=jnp.float32) + b1_ref[...]
    x = jnp.maximum(x, 0.0)
    x = jnp.dot(x, w2_ref[...], preferred_element_type=jnp.float32) + b2_ref[...]
    x = jnp.maximum(x, 0.0)
    x = jnp.dot(x, w3_ref[...], preferred_element_type=jnp.float32) + b3_ref[...]
    o_ref[0] = x                                             # (tile_n, OUT_PAD)


# ----------------------------------------------------------------------------
# Parameters (deterministic synthetic init)
# ----------------------------------------------------------------------------

def init_params(key):
    ks = jax.random.split(key, 10)
    s = 0.05
    return dict(
        w_stem=s * jax.random.normal(ks[0], (3, 3, 3, STEM_COUT), jnp.float32),
        b_stem=s * jax.random.normal(ks[1], (1, STEM_COUT), jnp.float32),
        w_cls=s * jax.random.normal(ks[2], (STEM_COUT, FEAT_DIM), jnp.float32),
        b_cls=s * jax.random.normal(ks[3], (1, FEAT_DIM), jnp.float32),
        w1=s * jax.random.normal(ks[4], (FEAT_DIM, 256), jnp.float32),
        b1=s * jax.random.normal(ks[5], (1, 256), jnp.float32),
        w2=s * jax.random.normal(ks[6], (256, 16), jnp.float32),
        b2=s * jax.random.normal(ks[7], (1, 16), jnp.float32),
        w3=s * jax.random.normal(ks[8], (16, CLS), jnp.float32),
        b3=s * jax.random.normal(ks[9], (1, CLS), jnp.float32),
    )


# ----------------------------------------------------------------------------
# Forward pass
# ----------------------------------------------------------------------------

def _pick_tile_n(n):
    """Images per grid step; prefer >=2 grid blocks (megacore on v7x)."""
    for t in (8, 4, 2):
        if n % t == 0 and n // t >= 2:
            return t
    return n


def patch_model_forward(x, params):
    """x: (B, P, C, H, W) float32, NCHW per patch (PyTorch convention)."""
    s = x.shape
    xf = x.reshape((-1,) + s[-3:])                 # x.reshape(-1, *s[-3:])
    xh = jnp.transpose(xf, (0, 2, 3, 1))           # NCHW -> NHWC (layout glue)
    N, H, W, Cin = xh.shape

    # ---- im2col for the 3x3/s2/p1 stem conv (glue; K padded 27 -> 32) ----
    xp = jnp.pad(xh, ((0, 0), (1, 1), (1, 1), (0, 0)))
    Ho = (H + 2 - 3) // 2 + 1
    Wo = (W + 2 - 3) // 2 + 1
    cols = [xp[:, kh:kh + 2 * Ho:2, kw:kw + 2 * Wo:2, :]
            for kh in range(3) for kw in range(3)]
    K = 9 * Cin
    KP = ((K + 7) // 8) * 8
    patches = jnp.stack(cols, axis=3).reshape(N * Ho * Wo, K)
    patches = jnp.pad(patches, ((0, 0), (0, KP - K)))
    w_stem = jnp.pad(params["w_stem"].reshape(K, STEM_COUT),
                     ((0, KP - K), (0, 0)))

    # bf16 operands for the two non-trivial matmuls (f32 accumulation in-kernel)
    w_cls = params["w_cls"].astype(jnp.bfloat16)
    w1 = params["w1"].astype(jnp.bfloat16)

    # lane-dense final output: pad CLS -> OUT_PAD, slice after the kernel
    w3 = jnp.pad(params["w3"], ((0, 0), (0, OUT_PAD - CLS)))
    b3 = jnp.pad(params["b3"], ((0, 0), (0, OUT_PAD - CLS)))

    tile_n = _pick_tile_n(N)
    num_blocks = N // tile_n
    tile_r = tile_n * Ho * Wo

    out = pl.pallas_call(
        _fused_kernel,
        out_shape=jax.ShapeDtypeStruct((num_blocks, tile_n, OUT_PAD),
                                       jnp.float32),
        grid=(num_blocks,),
        in_specs=[
            pl.BlockSpec((tile_r, KP), lambda i: (i, 0)),          # im2col rows
            pl.BlockSpec((KP, STEM_COUT), lambda i: (0, 0)),       # stem W
            pl.BlockSpec((1, STEM_COUT), lambda i: (0, 0)),        # stem b
            pl.BlockSpec((STEM_COUT, FEAT_DIM), lambda i: (0, 0)),  # cls W (bf16)
            pl.BlockSpec((1, FEAT_DIM), lambda i: (0, 0)),         # cls b
            pl.BlockSpec((FEAT_DIM, 256), lambda i: (0, 0)),       # fc1 W (bf16)
            pl.BlockSpec((1, 256), lambda i: (0, 0)),              # fc1 b
            pl.BlockSpec((256, 16), lambda i: (0, 0)),             # fc2 W
            pl.BlockSpec((1, 16), lambda i: (0, 0)),               # fc2 b
            pl.BlockSpec((16, OUT_PAD), lambda i: (0, 0)),         # fc3 W (padded)
            pl.BlockSpec((1, OUT_PAD), lambda i: (0, 0)),          # fc3 b (padded)
        ],
        out_specs=pl.BlockSpec((1, tile_n, OUT_PAD), lambda i: (i, 0, 0)),
        compiler_params=pltpu.CompilerParams(
            dimension_semantics=("parallel",)),
    )(patches, w_stem, params["b_stem"], w_cls, params["b_cls"],
      w1, params["b1"], params["w2"], params["b2"], w3, b3)

    logits = out.reshape(N, OUT_PAD)[:, :CLS]
    return logits.reshape(s[0], s[1], CLS)      # x.view(*s[:2], 2)


# ----------------------------------------------------------------------------
# Main
# ----------------------------------------------------------------------------

if __name__ == "__main__":
    key = jax.random.PRNGKey(0)
    kx, kp = jax.random.split(key)

    # Small shapes consistent with the module: (batch, patches, C, H, W)
    B, P, C, H, W = 2, 4, 3, 32, 32
    x = jax.random.normal(kx, (B, P, C, H, W), dtype=jnp.float32)
    params = init_params(kp)

    fwd = jax.jit(patch_model_forward)
    y = fwd(x, params)
    y = jax.block_until_ready(y)

    assert y.shape == (B, P, 2), y.shape
    assert y.dtype == jnp.float32
    print("KERNEL_OK")
</pallas_src>

<mosaic_0001>
module attributes {stable_mosaic.version = 11 : i64} {
  func.func @_fused_kernel(%arg0: i32, %arg1: memref<1024x32xf32, #tpu.memory_space<vmem>>, %arg2: memref<32x32xf32, #tpu.memory_space<vmem>>, %arg3: memref<1x32xf32, #tpu.memory_space<vmem>>, %arg4: memref<32x1000xbf16, #tpu.memory_space<vmem>>, %arg5: memref<1x1000xf32, #tpu.memory_space<vmem>>, %arg6: memref<1000x256xbf16, #tpu.memory_space<vmem>>, %arg7: memref<1x256xf32, #tpu.memory_space<vmem>>, %arg8: memref<256x16xf32, #tpu.memory_space<vmem>>, %arg9: memref<1x16xf32, #tpu.memory_space<vmem>>, %arg10: memref<16x128xf32, #tpu.memory_space<vmem>>, %arg11: memref<1x128xf32, #tpu.memory_space<vmem>>, %arg12: memref<1x4x128xf32, #tpu.memory_space<vmem>>) attributes {dimension_semantics = [#tpu.dimension_semantics<parallel>], iteration_bounds = array<i64: 2>, scalar_prefetch = 0 : i64, scratch_operands = 0 : i64, tpu.core_type = #tpu.core_type<tc>, window_params = [{transform_indices = @transform_0, window_bounds = array<i64: 1024, 32>}, {pipeline_mode = #tpu.pipeline_mode<synchronous>, transform_indices = @transform_1, window_bounds = array<i64: 32, 32>}, {pipeline_mode = #tpu.pipeline_mode<synchronous>, transform_indices = @transform_2, window_bounds = array<i64: 1, 32>}, {pipeline_mode = #tpu.pipeline_mode<synchronous>, transform_indices = @transform_3, window_bounds = array<i64: 32, 1000>}, {pipeline_mode = #tpu.pipeline_mode<synchronous>, transform_indices = @transform_4, window_bounds = array<i64: 1, 1000>}, {pipeline_mode = #tpu.pipeline_mode<synchronous>, transform_indices = @transform_5, window_bounds = array<i64: 1000, 256>}, {pipeline_mode = #tpu.pipeline_mode<synchronous>, transform_indices = @transform_6, window_bounds = array<i64: 1, 256>}, {pipeline_mode = #tpu.pipeline_mode<synchronous>, transform_indices = @transform_7, window_bounds = array<i64: 256, 16>}, {pipeline_mode = #tpu.pipeline_mode<synchronous>, transform_indices = @transform_8, window_bounds = array<i64: 1, 16>}, {pipeline_mode = #tpu.pipeline_mode<synchronous>, transform_indices = @transform_9, window_bounds = array<i64: 16, 128>}, {pipeline_mode = #tpu.pipeline_mode<synchronous>, transform_indices = @transform_10, window_bounds = array<i64: 1, 128>}, {transform_indices = @transform_11, window_bounds = array<i64: 1, 4, 128>}]} {
    %c0 = arith.constant 0 : index
    %c0_0 = arith.constant 0 : index
    %0 = vector.load %arg1[%c0, %c0_0] : memref<1024x32xf32, #tpu.memory_space<vmem>>, vector<1024x32xf32>
    %c0_1 = arith.constant 0 : index
    %c0_2 = arith.constant 0 : index
    %1 = vector.load %arg2[%c0_1, %c0_2] : memref<32x32xf32, #tpu.memory_space<vmem>>, vector<32x32xf32>
    %cst = arith.constant dense<0.000000e+00> : vector<1024x32xf32>
    %2 = tpu.matmul %0, %1, %cst {dimension_numbers = #tpu.dot_dimension_numbers<[1], [0], [0], [1], [0, 0, 1, 1], [], []>} : vector<1024x32xf32>, vector<32x32xf32>, vector<1024x32xf32> -> vector<1024x32xf32>
    %c0_3 = arith.constant 0 : index
    %c0_4 = arith.constant 0 : index
    %3 = vector.load %arg3[%c0_3, %c0_4] : memref<1x32xf32, #tpu.memory_space<vmem>>, vector<1x32xf32>
    %4 = vector.broadcast %3 : vector<1x32xf32> to vector<1024x32xf32>
    %5 = arith.addf %2, %4 : vector<1024x32xf32>
    %cst_5 = arith.constant 0.000000e+00 : f32
    %cst_6 = arith.constant 6.000000e+00 : f32
    %6 = vector.broadcast %cst_5 : f32 to vector<1024x32xf32>
    %7 = arith.maximumf %6, %5 : vector<1024x32xf32>
    %8 = vector.broadcast %cst_6 : f32 to vector<1024x32xf32>
    %9 = arith.minimumf %8, %7 : vector<1024x32xf32>
    %10 = vector.shape_cast %9 : vector<1024x32xf32> to vector<4x256x32xf32>
    %cst_7 = arith.constant dense<0.000000e+00> : vector<4x32xf32>
    %11 = vector.multi_reduction <add>, %10, %cst_7 [1] : vector<4x256x32xf32> to vector<4x32xf32>
    %cst_8 = arith.constant 2.560000e+02 : f32
    %12 = vector.broadcast %cst_8 : f32 to vector<4x32xf32>
    %13 = arith.divf %11, %12 : vector<4x32xf32>
    %14 = arith.truncf %13 : vector<4x32xf32> to vector<4x32xbf16>
    %c0_9 = arith.constant 0 : index
    %c0_10 = arith.constant 0 : index
    %15 = vector.load %arg4[%c0_9, %c0_10] : memref<32x1000xbf16, #tpu.memory_space<vmem>>, vector<32x1000xbf16>
    %cst_11 = arith.constant dense<0.000000e+00> : vector<4x1000xf32>
    %16 = tpu.matmul %14, %15, %cst_11 {dimension_numbers = #tpu.dot_dimension_numbers<[1], [0], [0], [1], [0, 0, 1, 1], [], []>} : vector<4x32xbf16>, vector<32x1000xbf16>, vector<4x1000xf32> -> vector<4x1000xf32>
    %c0_12 = arith.constant 0 : index
    %c0_13 = arith.constant 0 : index
    %17 = vector.load %arg5[%c0_12, %c0_13] : memref<1x1000xf32, #tpu.memory_space<vmem>>, vector<1x1000xf32>
    %18 = vector.broadcast %17 : vector<1x1000xf32> to vector<4x1000xf32>
    %19 = arith.addf %16, %18 : vector<4x1000xf32>
    %cst_14 = arith.constant 0.000000e+00 : f32
    %20 = vector.broadcast %cst_14 : f32 to vector<4x1000xf32>
    %21 = arith.maximumf %19, %20 : vector<4x1000xf32>
    %22 = arith.truncf %21 : vector<4x1000xf32> to vector<4x1000xbf16>
    %c0_15 = arith.constant 0 : index
    %c0_16 = arith.constant 0 : index
    %23 = vector.load %arg6[%c0_15, %c0_16] : memref<1000x256xbf16, #tpu.memory_space<vmem>>, vector<1000x256xbf16>
    %cst_17 = arith.constant dense<0.000000e+00> : vector<4x256xf32>
    %24 = tpu.matmul %22, %23, %cst_17 {dimension_numbers = #tpu.dot_dimension_numbers<[1], [0], [0], [1], [0, 0, 1, 1], [], []>} : vector<4x1000xbf16>, vector<1000x256xbf16>, vector<4x256xf32> -> vector<4x256xf32>
    %c0_18 = arith.constant 0 : index
    %c0_19 = arith.constant 0 : index
    %25 = vector.load %arg7[%c0_18, %c0_19] : memref<1x256xf32, #tpu.memory_space<vmem>>, vector<1x256xf32>
    %26 = vector.broadcast %25 : vector<1x256xf32> to vector<4x256xf32>
    %27 = arith.addf %24, %26 : vector<4x256xf32>
    %cst_20 = arith.constant 0.000000e+00 : f32
    %28 = vector.broadcast %cst_20 : f32 to vector<4x256xf32>
    %29 = arith.maximumf %27, %28 : vector<4x256xf32>
    %c0_21 = arith.constant 0 : index
    %c0_22 = arith.constant 0 : index
    %30 = vector.load %arg8[%c0_21, %c0_22] : memref<256x16xf32, #tpu.memory_space<vmem>>, vector<256x16xf32>
    %cst_23 = arith.constant dense<0.000000e+00> : vector<4x16xf32>
    %31 = tpu.matmul %29, %30, %cst_23 {dimension_numbers = #tpu.dot_dimension_numbers<[1], [0], [0], [1], [0, 0, 1, 1], [], []>} : vector<4x256xf32>, vector<256x16xf32>, vector<4x16xf32> -> vector<4x16xf32>
    %c0_24 = arith.constant 0 : index
    %c0_25 = arith.constant 0 : index
    %32 = vector.load %arg9[%c0_24, %c0_25] : memref<1x16xf32, #tpu.memory_space<vmem>>, vector<1x16xf32>
    %33 = vector.broadcast %32 : vector<1x16xf32> to vector<4x16xf32>
    %34 = arith.addf %31, %33 : vector<4x16xf32>
    %cst_26 = arith.constant 0.000000e+00 : f32
    %35 = vector.broadcast %cst_26 : f32 to vector<4x16xf32>
    %36 = arith.maximumf %34, %35 : vector<4x16xf32>
    %c0_27 = arith.constant 0 : index
    %c0_28 = arith.constant 0 : index
    %37 = vector.load %arg10[%c0_27, %c0_28] : memref<16x128xf32, #tpu.memory_space<vmem>>, vector<16x128xf32>
    %cst_29 = arith.constant dense<0.000000e+00> : vector<4x128xf32>
    %38 = tpu.matmul %36, %37, %cst_29 {dimension_numbers = #tpu.dot_dimension_numbers<[1], [0], [0], [1], [0, 0, 1, 1], [], []>} : vector<4x16xf32>, vector<16x128xf32>, vector<4x128xf32> -> vector<4x128xf32>
    %c0_30 = arith.constant 0 : index
    %c0_31 = arith.constant 0 : index
    %39 = vector.load %arg11[%c0_30, %c0_31] : memref<1x128xf32, #tpu.memory_space<vmem>>, vector<1x128xf32>
    %40 = vector.broadcast %39 : vector<1x128xf32> to vector<4x128xf32>
    %41 = arith.addf %38, %40 : vector<4x128xf32>
    %c0_32 = arith.constant 0 : index
    %c0_33 = arith.constant 0 : index
    %c0_34 = arith.constant 0 : index
    %42 = vector.load %arg12[%c0_32, %c0_33, %c0_34] : memref<1x4x128xf32, #tpu.memory_space<vmem>>, vector<1x4x128xf32>
    %43 = vector.shape_cast %42 : vector<1x4x128xf32> to vector<4x128xf32>
    %44 = vector.shape_cast %41 : vector<4x128xf32> to vector<1x4x128xf32>
    tpu.vector_store %arg12[%c0_32, %c0_33, %c0_34], %44 {strides = array<i32>} : memref<1x4x128xf32, #tpu.memory_space<vmem>>, vector<1x4x128xf32>,
    return
  }
  func.func @transform_0(%arg0: i32) -> (i32, i32) {
    %c0_i32 = arith.constant 0 : i32
    %c0_i32_0 = arith.constant 0 : i32
    return %arg0, %c0_i32 : i32, i32
  }
  func.func @transform_1(%arg0: i32) -> (i32, i32) {
    %c0_i32 = arith.constant 0 : i32
    %c0_i32_0 = arith.constant 0 : i32
    %c0_i32_1 = arith.constant 0 : i32
    return %c0_i32, %c0_i32_0 : i32, i32
  }
  func.func @transform_2(%arg0: i32) -> (i32, i32) {
    %c0_i32 = arith.constant 0 : i32
    %c0_i32_0 = arith.constant 0 : i32
    %c0_i32_1 = arith.constant 0 : i32
    return %c0_i32, %c0_i32_0 : i32, i32
  }
  func.func @transform_3(%arg0: i32) -> (i32, i32) {
    %c0_i32 = arith.constant 0 : i32
    %c0_i32_0 = arith.constant 0 : i32
    %c0_i32_1 = arith.constant 0 : i32
    return %c0_i32, %c0_i32_0 : i32, i32
  }
  func.func @transform_4(%arg0: i32) -> (i32, i32) {
    %c0_i32 = arith.constant 0 : i32
    %c0_i32_0 = arith.constant 0 : i32
    %c0_i32_1 = arith.constant 0 : i32
    return %c0_i32, %c0_i32_0 : i32, i32
  }
  func.func @transform_5(%arg0: i32) -> (i32, i32) {
    %c0_i32 = arith.constant 0 : i32
    %c0_i32_0 = arith.constant 0 : i32
    %c0_i32_1 = arith.constant 0 : i32
    return %c0_i32, %c0_i32_0 : i32, i32
  }
  func.func @transform_6(%arg0: i32) -> (i32, i32) {
    %c0_i32 = arith.constant 0 : i32
    %c0_i32_0 = arith.constant 0 : i32
    %c0_i32_1 = arith.constant 0 : i32
    return %c0_i32, %c0_i32_0 : i32, i32
  }
  func.func @transform_7(%arg0: i32) -> (i32, i32) {
    %c0_i32 = arith.constant 0 : i32
    %c0_i32_0 = arith.constant 0 : i32
    %c0_i32_1 = arith.constant 0 : i32
    return %c0_i32, %c0_i32_0 : i32, i32
  }
  func.func @transform_8(%arg0: i32) -> (i32, i32) {
    %c0_i32 = arith.constant 0 : i32
    %c0_i32_0 = arith.constant 0 : i32
    %c0_i32_1 = arith.constant 0 : i32
    return %c0_i32, %c0_i32_0 : i32, i32
  }
  func.func @transform_9(%arg0: i32) -> (i32, i32) {
    %c0_i32 = arith.constant 0 : i32
    %c0_i32_0 = arith.constant 0 : i32
    %c0_i32_1 = arith.constant 0 : i32
    return %c0_i32, %c0_i32_0 : i32, i32
  }
  func.func @transform_10(%arg0: i32) -> (i32, i32) {
    %c0_i32 = arith.constant 0 : i32
    %c0_i32_0 = arith.constant 0 : i32
    %c0_i32_1 = arith.constant 0 : i32
    return %c0_i32, %c0_i32_0 : i32, i32
  }
  func.func @transform_11(%arg0: i32) -> (i32, i32, i32) {
    %c0_i32 = arith.constant 0 : i32
    %c0_i32_0 = arith.constant 0 : i32
    %c0_i32_1 = arith.constant 0 : i32
    return %arg0, %c0_i32, %c0_i32_0 : i32, i32, i32
  }
}

</mosaic_0001>

<llo_original>
// kernel: patch_model_forward.1
$region0: #{patch_model_forward.1}
  #allocation0 [shape = 'u32[]', space=smem, size = 0x4, offset = 0x4, fixed_abs, tag = 'smem constant byte address 0x4 - core index']
  #allocation1 [shape = 'u32[144,128]{1,0:T(1,128)}', space=vmem, size = 0x12000, scoped, tag = 'internal scratch']
  %s0 = inlined_call_operand.vmem [shape: f32[2048,32], index: 0, kind: input, shape index: {}]
  %s1 = inlined_call_operand.vmem [shape: f32[32,32], index: 1, kind: input, shape index: {}]
  %s2 = inlined_call_operand.vmem [shape: f32[1,32], index: 2, kind: input, shape index: {}]
  %s3 = inlined_call_operand.vmem [shape: bf16[32,1000], index: 3, kind: input, shape index: {}]
  %s4 = inlined_call_operand.vmem [shape: f32[1,1000], index: 4, kind: input, shape index: {}]
  %s5 = inlined_call_operand.vmem [shape: bf16[1000,256], index: 5, kind: input, shape index: {}]
  %s6 = inlined_call_operand.vmem [shape: f32[1,256], index: 6, kind: input, shape index: {}]
  %s7 = inlined_call_operand.vmem [shape: f32[256,16], index: 7, kind: input, shape index: {}]
  %s8 = inlined_call_operand.vmem [shape: f32[1,16], index: 8, kind: input, shape index: {}]
  %s9 = inlined_call_operand.vmem [shape: f32[16,128], index: 9, kind: input, shape index: {}]
  %s10 = inlined_call_operand.vmem [shape: f32[1,128], index: 10, kind: input, shape index: {}]
  %s11 = inlined_call_operand.vmem [shape: f32[2,4,128], index: 11, kind: output, shape index: {}]
  %s12 = sld [smem:[#allocation0]]
  $region77: #{patch_model_forward.1} parent=0
    _
  %s14 = ssub.s32 1, %s12
  %s15 = scalar_select 0, %s14, %s12
  loop: start=0, step=1, limit=4
  $region2: #{patch_model_forward.1} parent=0 // loop_pre_header
    _
  $region3: #{patch_model_forward.1} parent=0 // loop_header
    %s17 = sphi 0, %s21
    %p18 = scmp.ge.s32.totalorder %s17, 4
    %s27 = sphi 0, %s29
    %s30 = sphi 0, %s27
    %s31 = sphi 0, %s30
    %s47 = sphi 0, %s31
    %s51 = sphi 0, %s51
    %s53 = sphi 0, %s51
    %s54 = sphi 0, %s53
    %s68 = sphi 0, %s54
    %s72 = sphi 0, %s72
    %s74 = sphi 0, %s72
    %s75 = sphi 0, %s74
    %s89 = sphi 0, %s75
    %s93 = sphi 0, %s93
    %s95 = sphi 0, %s93
    %s96 = sphi 0, %s95
    %s110 = sphi 0, %s96
    %s114 = sphi 0, %s114
    %s116 = sphi 0, %s114
    %s117 = sphi 0, %s116
    %s131 = sphi 0, %s117
    %s135 = sphi 0, %s135
    %s137 = sphi 0, %s135
    %s138 = sphi 0, %s137
    %s152 = sphi 0, %s138
    %s156 = sphi 0, %s156
    %s158 = sphi 0, %s156
    %s159 = sphi 0, %s158
    %s173 = sphi 0, %s159
    %s177 = sphi 0, %s177
    %s179 = sphi 0, %s177
    %s180 = sphi 0, %s179
    %s194 = sphi 0, %s180
    %s198 = sphi 0, %s198
    %s200 = sphi 0, %s198
    %s201 = sphi 0, %s200
    %s215 = sphi 0, %s201
    %s219 = sphi 0, %s219
    %s221 = sphi 0, %s219
    %s222 = sphi 0, %s221
    %s236 = sphi 0, %s222
    %s240 = sphi 0, %s240
    %s242 = sphi 0, %s240
    %s243 = sphi 0, %s242
    %s257 = sphi 0, %s243
    %s263 = sphi 0, %s265
    %s266 = sphi 0, %s263
    %s267 = sphi 0, %s266
    %s283 = sphi 0, %s267
  $region4: #{patch_model_forward.1} parent=0 // loop_header_branch
    %20 = sbr.rel (%p18) target = $region8
  $region5: #{patch_model_forward.1} parent=0 // loop_body
    %s22 = ssub.s32 %s17, 1
    %s23 = ssub.s32 %s17, 2
    %s24 = sadd.s32 %s17, 1
    %s25 = ssub.s32 %s17, %s24
    %p26 = scmp.eq.s32.totalorder %s25, 0
    %s28 = sadd.s32 %s27, 1
    %s29 = scalar_select %p26, %s27, %s28
    %p32 = pneg %p26
    %p33 = scmp.eq.s32.totalorder %s17, 1
    %p34 = por %p32, %p33
    %p35 = scmp.ne.s32.totalorder %s27, %s30
    %p36 = scmp.eq.s32.totalorder %s17, 0
    %p37 = por %p35, %p36
    %p38 = scmp.ne.s32.totalorder %s27, %s30
    %p39 = scmp.eq.s32.totalorder %s22, 1
    %p40 = por %p38, %p39
    %p41 = scmp.ne.s32.totalorder %s30, %s31
    %p42 = scmp.eq.s32.totalorder %s22, 0
    %p43 = por %p41, %p42
    %p44 = scmp.ne.s32.totalorder %s30, %s31
    %p45 = scmp.eq.s32.totalorder %s23, 1
    %p46 = por %p44, %p45
    %p48 = scmp.ne.s32.totalorder %s31, %s47
    %p49 = scmp.eq.s32.totalorder %s23, 0
    %p50 = por %p48, %p49
    %s52 = sadd.s32 %s51, 1
    %p55 = scmp.eq.s32.totalorder %s17, 1
    %p56 = scmp.ne.s32.totalorder %s51, %s53
    %p57 = scmp.eq.s32.totalorder %s17, 0
    %p58 = por %p56, %p57
    %p59 = scmp.ne.s32.totalorder %s51, %s53
    %p60 = scmp.eq.s32.totalorder %s22, 1
    %p61 = por %p59, %p60
    %p62 = scmp.ne.s32.totalorder %s53, %s54
    %p63 = scmp.eq.s32.totalorder %s22, 0
    %p64 = por %p62, %p63
    %p65 = scmp.ne.s32.totalorder %s53, %s54
    %p66 = scmp.eq.s32.totalorder %s23, 1
    %p67 = por %p65, %p66
    %p69 = scmp.ne.s32.totalorder %s54, %s68
    %p70 = scmp.eq.s32.totalorder %s23, 0
    %p71 = por %p69, %p70
    %s73 = sadd.s32 %s72, 1
    %p76 = scmp.eq.s32.totalorder %s17, 1
    %p77 = scmp.ne.s32.totalorder %s72, %s74
    %p78 = scmp.eq.s32.totalorder %s17, 0
    %p79 = por %p77, %p78
    %p80 = scmp.ne.s32.totalorder %s72, %s74
    %p81 = scmp.eq.s32.totalorder %s22, 1
    %p82 = por %p80, %p81
    %p83 = scmp.ne.s32.totalorder %s74, %s75
    %p84 = scmp.eq.s32.totalorder %s22, 0
    %p85 = por %p83, %p84
    %p86 = scmp.ne.s32.totalorder %s74, %s75
    %p87 = scmp.eq.s32.totalorder %s23, 1
    %p88 = por %p86, %p87
    %p90 = scmp.ne.s32.totalorder %s75, %s89
    %p91 = scmp.eq.s32.totalorder %s23, 0
    %p92 = por %p90, %p91
    %s94 = sadd.s32 %s93, 1
    %p97 = scmp.eq.s32.totalorder %s17, 1
    %p98 = scmp.ne.s32.totalorder %s93, %s95
    %p99 = scmp.eq.s32.totalorder %s17, 0
    %p100 = por %p98, %p99
    %p101 = scmp.ne.s32.totalorder %s93, %s95
    %p102 = scmp.eq.s32.totalorder %s22, 1
    %p103 = por %p101, %p102
    %p104 = scmp.ne.s32.totalorder %s95, %s96
    %p105 = scmp.eq.s32.totalorder %s22, 0
    %p106 = por %p104, %p105
    %p107 = scmp.ne.s32.totalorder %s95, %s96
    %p108 = scmp.eq.s32.totalorder %s23, 1
    %p109 = por %p107, %p108
    %p111 = scmp.ne.s32.totalorder %s96, %s110
    %p112 = scmp.eq.s32.totalorder %s23, 0
    %p113 = por %p111, %p112
    %s115 = sadd.s32 %s114, 1
    %p118 = scmp.eq.s32.totalorder %s17, 1
    %p119 = scmp.ne.s32.totalorder %s114, %s116
    %p120 = scmp.eq.s32.totalorder %s17, 0
    %p121 = por %p119, %p120
    %p122 = scmp.ne.s32.totalorder %s114, %s116
    %p123 = scmp.eq.s32.totalorder %s22, 1
    %p124 = por %p122, %p123
    %p125 = scmp.ne.s32.totalorder %s116, %s117
    %p126 = scmp.eq.s32.totalorder %s22, 0
    %p127 = por %p125, %p126
    %p128 = scmp.ne.s32.totalorder %s116, %s117
    %p129 = scmp.eq.s32.totalorder %s23, 1
    %p130 = por %p128, %p129
    %p132 = scmp.ne.s32.totalorder %s117, %s131
    %p133 = scmp.eq.s32.totalorder %s23, 0
    %p134 = por %p132, %p133
    %s136 = sadd.s32 %s135, 1
    %p139 = scmp.eq.s32.totalorder %s17, 1
    %p140 = scmp.ne.s32.totalorder %s135, %s137
    %p141 = scmp.eq.s32.totalorder %s17, 0
    %p142 = por %p140, %p141
    %p143 = scmp.ne.s32.totalorder %s135, %s137
    %p144 = scmp.eq.s32.totalorder %s22, 1
    %p145 = por %p143, %p144
    %p146 = scmp.ne.s32.totalorder %s137, %s138
    %p147 = scmp.eq.s32.totalorder %s22, 0
    %p148 = por %p146, %p147
    %p149 = scmp.ne.s32.totalorder %s137, %s138
    %p150 = scmp.eq.s32.totalorder %s23, 1
    %p151 = por %p149, %p150
    %p153 = scmp.ne.s32.totalorder %s138, %s152
    %p154 = scmp.eq.s32.totalorder %s23, 0
    %p155 = por %p153, %p154
    %s157 = sadd.s32 %s156, 1
    %p160 = scmp.eq.s32.totalorder %s17, 1
    %p161 = scmp.ne.s32.totalorder %s156, %s158
    %p162 = scmp.eq.s32.totalorder %s17, 0
    %p163 = por %p161, %p162
    %p164 = scmp.ne.s32.totalorder %s156, %s158
    %p165 = scmp.eq.s32.totalorder %s22, 1
    %p166 = por %p164, %p165
    %p167 = scmp.ne.s32.totalorder %s158, %s159
    %p168 = scmp.eq.s32.totalorder %s22, 0
    %p169 = por %p167, %p168
    %p170 = scmp.ne.s32.totalorder %s158, %s159
    %p171 = scmp.eq.s32.totalorder %s23, 1
    %p172 = por %p170, %p171
    %p174 = scmp.ne.s32.totalorder %s159, %s173
    %p175 = scmp.eq.s32.totalorder %s23, 0
    %p176 = por %p174, %p175
    %s178 = sadd.s32 %s177, 1
    %p181 = scmp.eq.s32.totalorder %s17, 1
    %p182 = scmp.ne.s32.totalorder %s177, %s179
    %p183 = scmp.eq.s32.totalorder %s17, 0
    %p184 = por %p182, %p183
    %p185 = scmp.ne.s32.totalorder %s177, %s179
    %p186 = scmp.eq.s32.totalorder %s22, 1
    %p187 = por %p185, %p186
    %p188 = scmp.ne.s32.totalorder %s179, %s180
    %p189 = scmp.eq.s32.totalorder %s22, 0
    %p190 = por %p188, %p189
    %p191 = scmp.ne.s32.totalorder %s179, %s180
    %p192 = scmp.eq.s32.totalorder %s23, 1
    %p193 = por %p191, %p192
    %p195 = scmp.ne.s32.totalorder %s180, %s194
    %p196 = scmp.eq.s32.totalorder %s23, 0
    %p197 = por %p195, %p196
    %s199 = sadd.s32 %s198, 1
    %p202 = scmp.eq.s32.totalorder %s17, 1
    %p203 = scmp.ne.s32.totalorder %s198, %s200
    %p204 = scmp.eq.s32.totalorder %s17, 0
    %p205 = por %p203, %p204
    %p206 = scmp.ne.s32.totalorder %s198, %s200
    %p207 = scmp.eq.s32.totalorder %s22, 1
    %p208 = por %p206, %p207
    %p209 = scmp.ne.s32.totalorder %s200, %s201
    %p210 = scmp.eq.s32.totalorder %s22, 0
    %p211 = por %p209, %p210
    %p212 = scmp.ne.s32.totalorder %s200, %s201
    %p213 = scmp.eq.s32.totalorder %s23, 1
    %p214 = por %p212, %p213
    %p216 = scmp.ne.s32.totalorder %s201, %s215
    %p217 = scmp.eq.s32.totalorder %s23, 0
    %p218 = por %p216, %p217
    %s220 = sadd.s32 %s219, 1
    %p223 = scmp.eq.s32.totalorder %s17, 1
    %p224 = scmp.ne.s32.totalorder %s219, %s221
    %p225 = scmp.eq.s32.totalorder %s17, 0
    %p226 = por %p224, %p225
    %p227 = scmp.ne.s32.totalorder %s219, %s221
    %p228 = scmp.eq.s32.totalorder %s22, 1
    %p229 = por %p227, %p228
    %p230 = scmp.ne.s32.totalorder %s221, %s222
    %p231 = scmp.eq.s32.totalorder %s22, 0
    %p232 = por %p230, %p231
    %p233 = scmp.ne.s32.totalorder %s221, %s222
    %p234 = scmp.eq.s32.totalorder %s23, 1
    %p235 = por %p233, %p234
    %p237 = scmp.ne.s32.totalorder %s222, %s236
    %p238 = scmp.eq.s32.totalorder %s23, 0
    %p239 = por %p237, %p238
    %s241 = sadd.s32 %s240, 1
    %p244 = scmp.eq.s32.totalorder %s17, 1
    %p245 = scmp.ne.s32.totalorder %s240, %s242
    %p246 = scmp.eq.s32.totalorder %s17, 0
    %p247 = por %p245, %p246
    %p248 = scmp.ne.s32.totalorder %s240, %s242
    %p249 = scmp.eq.s32.totalorder %s22, 1
    %p250 = por %p248, %p249
    %p251 = scmp.ne.s32.totalorder %s242, %s243
    %p252 = scmp.eq.s32.totalorder %s22, 0
    %p253 = por %p251, %p252
    %p254 = scmp.ne.s32.totalorder %s242, %s243
    %p255 = scmp.eq.s32.totalorder %s23, 1
    %p256 = por %p254, %p255
    %p258 = scmp.ne.s32.totalorder %s243, %s257
    %p259 = scmp.eq.s32.totalorder %s23, 0
    %p260 = por %p258, %p259
    %s261 = ssub.s32 %s17, %s24
    %p262 = scmp.eq.s32.totalorder %s261, 0
    %s264 = sadd.s32 %s263, 1
    %s265 = scalar_select %p262, %s263, %s264
    %p268 = pneg %p262
    %p269 = scmp.eq.s32.totalorder %s17, 1
    %p270 = por %p268, %p269
    %p271 = scmp.ne.s32.totalorder %s263, %s266
    %p272 = scmp.eq.s32.totalorder %s17, 0
    %p273 = por %p271, %p272
    %p274 = scmp.ne.s32.totalorder %s263, %s266
    %p275 = scmp.eq.s32.totalorder %s22, 1
    %p276 = por %p274, %p275
    %p277 = scmp.ne.s32.totalorder %s266, %s267
    %p278 = scmp.eq.s32.totalorder %s22, 0
    %p279 = por %p277, %p278
    %p280 = scmp.ne.s32.totalorder %s266, %s267
    %p281 = scmp.eq.s32.totalorder %s23, 1
    %p282 = por %p280, %p281
    %p284 = scmp.ne.s32.totalorder %s267, %s283
    %p285 = scmp.eq.s32.totalorder %s23, 0
    %p286 = por %p284, %p285
    %p287 = scmp.le.s32.totalorder 1, %s17
    %p288 = scmp.lt.s32.totalorder %s17, 3
    %p289 = pnand %p287, %p288
    %p290 = pneg %p289
    // Predicated region
    $region9: #{patch_model_forward.1} parent=5 // pred_check
      _
    $region10: #{patch_model_forward.1} parent=5 // pred_check_branch
      %292 = sbr.rel (%p289) target = $region12
    $region11: #{patch_model_forward.1} parent=5 // pred_region
      %s293 = ssub.s32 %s17, 1
      // Predicated region
      $region13: #{patch_model_forward.1} parent=11 // pred_check
        %p294 = pneg %p64
      $region14: #{patch_model_forward.1} parent=11 // pred_check_branch
        %296 = sbr.rel (%p294) target = $region16
      $region15: #{patch_model_forward.1} parent=11 // pred_region
        _
      $region16: #{patch_model_forward.1} parent=11 // pred_fallthru
        _
      // Predicated region
      $region17: #{patch_model_forward.1} parent=11 // pred_check
        %p297 = pneg %p85
      $region18: #{patch_model_forward.1} parent=11 // pred_check_branch
        %299 = sbr.rel (%p297) target = $region20
      $region19: #{patch_model_forward.1} parent=11 // pred_region
        _
      $region20: #{patch_model_forward.1} parent=11 // pred_fallthru
        _
      // Predicated region
      $region21: #{patch_model_forward.1} parent=11 // pred_check
        %p300 = pneg %p106
      $region22: #{patch_model_forward.1} parent=11 // pred_check_branch
        %302 = sbr.rel (%p300) target = $region24
      $region23: #{patch_model_forward.1} parent=11 // pred_region
        _
      $region24: #{patch_model_forward.1} parent=11 // pred_fallthru
        _
      // Predicated region
      $region25: #{patch_model_forward.1} parent=11 // pred_check
        %p303 = pneg %p127
      $region26: #{patch_model_forward.1} parent=11 // pred_check_branch
        %305 = sbr.rel (%p303) target = $region28
      $region27: #{patch_model_forward.1} parent=11 // pred_region
        _
      $region28: #{patch_model_forward.1} parent=11 // pred_fallthru
        _
      // Predicated region
      $region29: #{patch_model_forward.1} parent=11 // pred_check
        %p306 = pneg %p148
      $region30: #{patch_model_forward.1} parent=11 // pred_check_branch
        %308 = sbr.rel (%p306) target = $region32
      $region31: #{patch_model_forward.1} parent=11 // pred_region
        _
      $region32: #{patch_model_forward.1} parent=11 // pred_fallthru
        _
      // Predicated region
      $region33: #{patch_model_forward.1} parent=11 // pred_check
        %p309 = pneg %p169
      $region34: #{patch_model_forward.1} parent=11 // pred_check_branch
        %311 = sbr.rel (%p309) target = $region36
      $region35: #{patch_model_forward.1} parent=11 // pred_region
        _
      $region36: #{patch_model_forward.1} parent=11 // pred_fallthru
        _
      // Predicated region
      $region37: #{patch_model_forward.1} parent=11 // pred_check
        %p312 = pneg %p190
      $region38: #{patch_model_forward.1} parent=11 // pred_check_branch
        %314 = sbr.rel (%p312) target = $region40
      $region39: #{patch_model_forward.1} parent=11 // pred_region
        _
      $region40: #{patch_model_forward.1} parent=11 // pred_fallthru
        _
      // Predicated region
      $region41: #{patch_model_forward.1} parent=11 // pred_check
        %p315 = pneg %p211
      $region42: #{patch_model_forward.1} parent=11 // pred_check_branch
        %317 = sbr.rel (%p315) target = $region44
      $region43: #{patch_model_forward.1} parent=11 // pred_region
        _
      $region44: #{patch_model_forward.1} parent=11 // pred_fallthru
        _
      // Predicated region
      $region45: #{patch_model_forward.1} parent=11 // pred_check
        %p318 = pneg %p232
      $region46: #{patch_model_forward.1} parent=11 // pred_check_branch
        %320 = sbr.rel (%p318) target = $region48
      $region47: #{patch_model_forward.1} parent=11 // pred_region
        _
      $region48: #{patch_model_forward.1} parent=11 // pred_fallthru
        _
      // Predicated region
      $region49: #{patch_model_forward.1} parent=11 // pred_check
        %p321 = pneg %p253
      $region50: #{patch_model_forward.1} parent=11 // pred_check_branch
        %323 = sbr.rel (%p321) target = $region52
      $region51: #{patch_model_forward.1} parent=11 // pred_region
        _
      $region52: #{patch_model_forward.1} parent=11 // pred_fallthru
        _
    $region12: #{patch_model_forward.1} parent=5 // pred_fallthru
      _
    %p324 = scmp.lt.s32.totalorder %s17, 2
    // Predicated region
    $region53: #{patch_model_forward.1} parent=5 // pred_check
      %p325 = pneg %p324
    $region54: #{patch_model_forward.1} parent=5 // pred_check_branch
      %327 = sbr.rel (%p325) target = $region56
    $region55: #{patch_model_forward.1} parent=5 // pred_region
      // Predicated region
      $region57: #{patch_model_forward.1} parent=55 // pred_check
        %p328 = pneg %p37
      $region58: #{patch_model_forward.1} parent=55 // pred_check_branch
        %330 = sbr.rel (%p328) target = $region60
      $region59: #{patch_model_forward.1} parent=55 // pred_region
        %s331 = smul.u32 128, %s17
        %p332 = scmp.lt.s32.totalorder %s331, 255
        %s333 = scalar_select %p332, %s331, 255
        %s334 = smul.addr %s333, 8
        %s335 = scalar_lea.vmem %s0, %s334
        %s336 = smul.u32 128, %s17
      $region60: #{patch_model_forward.1} parent=55 // pred_fallthru
        _
    $region56: #{patch_model_forward.1} parent=5 // pred_fallthru
      _
    %p337 = scmp.le.s32.totalorder 1, %s17
    %p338 = scmp.lt.s32.totalorder %s17, 3
    %p339 = pnand %p337, %p338
    %p340 = pneg %p339
    // Predicated region
    $region61: #{patch_model_forward.1} parent=5 // pred_check
      _
    $region62: #{patch_model_forward.1} parent=5 // pred_check_branch
      %342 = sbr.rel (%p339) target = $region64
    $region63: #{patch_model_forward.1} parent=5 // pred_region
      %s343 = ssub.s32 %s17, 1
      %s344 = smul.u32 128, %s22
      %p345 = scmp.lt.s32.totalorder %s344, 255
      %s346 = scalar_select %p345, %s344, 255
      %s347 = smul.addr %s346, 8
      %s348 = scalar_lea.vmem %s0, %s347
      %p349 = pneg %p43
      %p350 = pneg %p40
      %p351 = pneg %p64
      %p352 = pneg %p61
      %p353 = pneg %p85
      %p354 = pneg %p82
      %p355 = pneg %p106
      %p356 = pneg %p103
      %p357 = pneg %p127
      %p358 = pneg %p124
      %p359 = pneg %p148
      %p360 = pneg %p145
      %p361 = pneg %p169
      %p362 = pneg %p166
      %p363 = pneg %p190
      %p364 = pneg %p187
      %p365 = pneg %p211
      %p366 = pneg %p208
      %p367 = pneg %p232
      %p368 = pneg %p229
      %p369 = pneg %p253
      %p370 = pneg %p250
      %p371 = pneg %p279
      %p372 = pneg %p276
      %p373 = scmp.lt.s32.totalorder %s22, 1
      %s374 = scalar_select %p373, %s22, 1
      %s375 = smul.addr %s374, 4
      %s376 = scalar_lea.vmem %s11, %s375
      %s377 = smul.u32 128, %s22
      %p378 = scmp.lt.s32.totalorder %s377, 255
      %s379 = scalar_select %p378, %s377, 255
      %s380 = smul.addr %s379, 8
      %s381 = scalar_lea.vmem %s0, %s380
      %s382 = smul.u32 128, %s22
      %p383 = scmp.lt.s32.totalorder %s22, 1
      %s384 = scalar_select %p383, %s22, 1
      %s385 = smul.addr %s384, 4
      %s386 = scalar_lea.vmem %s11, %s385
      %v388 = vld [vmem:[%s381] sm:$0xff]
      %v389 = vld [vmem:[%s381 + $0x8] sm:$0xff]
      %v390 = vld [vmem:[%s381 + $0x10] sm:$0xff]
      %v391 = vld [vmem:[%s381 + $0x18] sm:$0xff]
      %v392 = vld [vmem:[%s381 + $0x20] sm:$0xff]
      %v393 = vld [vmem:[%s381 + $0x28] sm:$0xff]
      %v394 = vld [vmem:[%s381 + $0x30] sm:$0xff]
      %v395 = vld [vmem:[%s381 + $0x38] sm:$0xff]
      %v396 = vld [vmem:[%s381 + $0x40] sm:$0xff]
      %v397 = vld [vmem:[%s381 + $0x48] sm:$0xff]
      %v398 = vld [vmem:[%s381 + $0x50] sm:$0xff]
      %v399 = vld [vmem:[%s381 + $0x58] sm:$0xff]
      %v400 = vld [vmem:[%s381 + $0x60] sm:$0xff]
      %v401 = vld [vmem:[%s381 + $0x68] sm:$0xff]
      %v402 = vld [vmem:[%s381 + $0x70] sm:$0xff]
      %v403 = vld [vmem:[%s381 + $0x78] sm:$0xff]
      %v404 = vld [vmem:[%s381 + $0x80] sm:$0xff]
      %v405 = vld [vmem:[%s381 + $0x88] sm:$0xff]
      %v406 = vld [vmem:[%s381 + $0x90] sm:$0xff]
      %v407 = vld [vmem:[%s381 + $0x98] sm:$0xff]
      %v408 = vld [vmem:[%s381 + $0xa0] sm:$0xff]
      %v409 = vld [vmem:[%s381 + $0xa8] sm:$0xff]
      %v410 = vld [vmem:[%s381 + $0xb0] sm:$0xff]
      %v411 = vld [vmem:[%s381 + $0xb8] sm:$0xff]
      %v412 = vld [vmem:[%s381 + $0xc0] sm:$0xff]
      %v413 = vld [vmem:[%s381 + $0xc8] sm:$0xff]
      %v414 = vld [vmem:[%s381 + $0xd0] sm:$0xff]
      %v415 = vld [vmem:[%s381 + $0xd8] sm:$0xff]
      %v416 = vld [vmem:[%s381 + $0xe0] sm:$0xff]
      %v417 = vld [vmem:[%s381 + $0xe8] sm:$0xff]
      %v418 = vld [vmem:[%s381 + $0xf0] sm:$0xff]
      %v419 = vld [vmem:[%s381 + $0xf8] sm:$0xff]
      %v420 = vld [vmem:[%s381 + $0x100] sm:$0xff]
      %v421 = vld [vmem:[%s381 + $0x108] sm:$0xff]
      %v422 = vld [vmem:[%s381 + $0x110] sm:$0xff]
      %v423 = vld [vmem:[%s381 + $0x118] sm:$0xff]
      %v424 = vld [vmem:[%s381 + $0x120] sm:$0xff]
      %v425 = vld [vmem:[%s381 + $0x128] sm:$0xff]
      %v426 = vld [vmem:[%s381 + $0x130] sm:$0xff]
      %v427 = vld [vmem:[%s381 + $0x138] sm:$0xff]
      %v428 = vld [vmem:[%s381 + $0x140] sm:$0xff]
      %v429 = vld [vmem:[%s381 + $0x148] sm:$0xff]
      %v430 = vld [vmem:[%s381 + $0x150] sm:$0xff]
      %v431 = vld [vmem:[%s381 + $0x158] sm:$0xff]
      %v432 = vld [vmem:[%s381 + $0x160] sm:$0xff]
      %v433 = vld [vmem:[%s381 + $0x168] sm:$0xff]
      %v434 = vld [vmem:[%s381 + $0x170] sm:$0xff]
      %v435 = vld [vmem:[%s381 + $0x178] sm:$0xff]
      %v436 = vld [vmem:[%s381 + $0x180] sm:$0xff]
      %v437 = vld [vmem:[%s381 + $0x188] sm:$0xff]
      %v438 = vld [vmem:[%s381 + $0x190] sm:$0xff]
      %v439 = vld [vmem:[%s381 + $0x198] sm:$0xff]
      %v440 = vld [vmem:[%s381 + $0x1a0] sm:$0xff]
      %v441 = vld [vmem:[%s381 + $0x1a8] sm:$0xff]
      %v442 = vld [vmem:[%s381 + $0x1b0] sm:$0xff]
      %v443 = vld [vmem:[%s381 + $0x1b8] sm:$0xff]
      %v444 = vld [vmem:[%s381 + $0x1c0] sm:$0xff]
      %v445 = vld [vmem:[%s381 + $0x1c8] sm:$0xff]
      %v446 = vld [vmem:[%s381 + $0x1d0] sm:$0xff]
      %v447 = vld [vmem:[%s381 + $0x1d8] sm:$0xff]
      %v448 = vld [vmem:[%s381 + $0x1e0] sm:$0xff]
      %v449 = vld [vmem:[%s381 + $0x1e8] sm:$0xff]
      %v450 = vld [vmem:[%s381 + $0x1f0] sm:$0xff]
      %v451 = vld [vmem:[%s381 + $0x1f8] sm:$0xff]
      %v452 = vld [vmem:[%s381 + $0x200] sm:$0xff]
      %v453 = vld [vmem:[%s381 + $0x208] sm:$0xff]
      %v454 = vld [vmem:[%s381 + $0x210] sm:$0xff]
      %v455 = vld [vmem:[%s381 + $0x218] sm:$0xff]
      %v456 = vld [vmem:[%s381 + $0x220] sm:$0xff]
      %v457 = vld [vmem:[%s381 + $0x228] sm:$0xff]
      %v458 = vld [vmem:[%s381 + $0x230] sm:$0xff]
      %v459 = vld [vmem:[%s381 + $0x238] sm:$0xff]
      %v460 = vld [vmem:[%s381 + $0x240] sm:$0xff]
      %v461 = vld [vmem:[%s381 + $0x248] sm:$0xff]
      %v462 = vld [vmem:[%s381 + $0x250] sm:$0xff]
      %v463 = vld [vmem:[%s381 + $0x258] sm:$0xff]
      %v464 = vld [vmem:[%s381 + $0x260] sm:$0xff]
      %v465 = vld [vmem:[%s381 + $0x268] sm:$0xff]
      %v466 = vld [vmem:[%s381 + $0x270] sm:$0xff]
      %v467 = vld [vmem:[%s381 + $0x278] sm:$0xff]
      %v468 = vld [vmem:[%s381 + $0x280] sm:$0xff]
      %v469 = vld [vmem:[%s381 + $0x288] sm:$0xff]
      %v470 = vld [vmem:[%s381 + $0x290] sm:$0xff]
      %v471 = vld [vmem:[%s381 + $0x298] sm:$0xff]
      %v472 = vld [vmem:[%s381 + $0x2a0] sm:$0xff]
      %v473 = vld [vmem:[%s381 + $0x2a8] sm:$0xff]
      %v474 = vld [vmem:[%s381 + $0x2b0] sm:$0xff]
      %v475 = vld [vmem:[%s381 + $0x2b8] sm:$0xff]
      %v476 = vld [vmem:[%s381 + $0x2c0] sm:$0xff]
      %v477 = vld [vmem:[%s381 + $0x2c8] sm:$0xff]
      %v478 = vld [vmem:[%s381 + $0x2d0] sm:$0xff]
      %v479 = vld [vmem:[%s381 + $0x2d8] sm:$0xff]
      %v480 = vld [vmem:[%s381 + $0x2e0] sm:$0xff]
      %v481 = vld [vmem:[%s381 + $0x2e8] sm:$0xff]
      %v482 = vld [vmem:[%s381 + $0x2f0] sm:$0xff]
      %v483 = vld [vmem:[%s381 + $0x2f8] sm:$0xff]
      %v484 = vld [vmem:[%s381 + $0x300] sm:$0xff]
      %v485 = vld [vmem:[%s381 + $0x308] sm:$0xff]
      %v486 = vld [vmem:[%s381 + $0x310] sm:$0xff]
      %v487 = vld [vmem:[%s381 + $0x318] sm:$0xff]
      %v488 = vld [vmem:[%s381 + $0x320] sm:$0xff]
      %v489 = vld [vmem:[%s381 + $0x328] sm:$0xff]
      %v490 = vld [vmem:[%s381 + $0x330] sm:$0xff]
      %v491 = vld [vmem:[%s381 + $0x338] sm:$0xff]
      %v492 = vld [vmem:[%s381 + $0x340] sm:$0xff]
      %v493 = vld [vmem:[%s381 + $0x348] sm:$0xff]
      %v494 = vld [vmem:[%s381 + $0x350] sm:$0xff]
      %v495 = vld [vmem:[%s381 + $0x358] sm:$0xff]
      %v496 = vld [vmem:[%s381 + $0x360] sm:$0xff]
      %v497 = vld [vmem:[%s381 + $0x368] sm:$0xff]
      %v498 = vld [vmem:[%s381 + $0x370] sm:$0xff]
      %v499 = vld [vmem:[%s381 + $0x378] sm:$0xff]
      %v500 = vld [vmem:[%s381 + $0x380] sm:$0xff]
      %v501 = vld [vmem:[%s381 + $0x388] sm:$0xff]
      %v502 = vld [vmem:[%s381 + $0x390] sm:$0xff]
      %v503 = vld [vmem:[%s381 + $0x398] sm:$0xff]
      %v504 = vld [vmem:[%s381 + $0x3a0] sm:$0xff]
      %v505 = vld [vmem:[%s381 + $0x3a8] sm:$0xff]
      %v506 = vld [vmem:[%s381 + $0x3b0] sm:$0xff]
      %v507 = vld [vmem:[%s381 + $0x3b8] sm:$0xff]
      %v508 = vld [vmem:[%s381 + $0x3c0] sm:$0xff]
      %v509 = vld [vmem:[%s381 + $0x3c8] sm:$0xff]
      %v510 = vld [vmem:[%s381 + $0x3d0] sm:$0xff]
      %v511 = vld [vmem:[%s381 + $0x3d8] sm:$0xff]
      %v512 = vld [vmem:[%s381 + $0x3e0] sm:$0xff]
      %v513 = vld [vmem:[%s381 + $0x3e8] sm:$0xff]
      %v514 = vld [vmem:[%s381 + $0x3f0] sm:$0xff]
      %v515 = vld [vmem:[%s381 + $0x3f8] sm:$0xff]
      %v516 = vld [vmem:[%s1] sm:$0xff]
      %v517 = vld [vmem:[%s1 + $0x8] sm:$0xff]
      %v518 = vld [vmem:[%s1 + $0x10] sm:$0xff]
      %v519 = vld [vmem:[%s1 + $0x18] sm:$0xff]
      %v520 = vld [vmem:[%s2] sm:$0x1]
      %v522 = vlaneseq
      %v523 = vshrl.u32 %v522, 7
      %v524 = vsub.s32 0, %v523
      %v525 = vrot.slane %v520, %v524
      %vm527 = vcmask 261120
      %v529 = vsel %vm527, %v388, 0
      %v532 = vsel %vm527, %v389, 0
      %v535 = vsel %vm527, %v390, 0
      %v538 = vsel %vm527, %v391, 0
      %v541 = vsel %vm527, %v392, 0
      %v544 = vsel %vm527, %v393, 0
      %v547 = vsel %vm527, %v394, 0
      %v550 = vsel %vm527, %v395, 0
      %v553 = vsel %vm527, %v396, 0
      %v556 = vsel %vm527, %v397, 0
      %v559 = vsel %vm527, %v398, 0
      %v562 = vsel %vm527, %v399, 0
      %v565 = vsel %vm527, %v400, 0
      %v568 = vsel %vm527, %v401, 0
      %v571 = vsel %vm527, %v402, 0
      %v574 = vsel %vm527, %v403, 0
      %v577 = vsel %vm527, %v404, 0
      %v580 = vsel %vm527, %v405, 0
      %v583 = vsel %vm527, %v406, 0
      %v586 = vsel %vm527, %v407, 0
      %v589 = vsel %vm527, %v408, 0
      %v592 = vsel %vm527, %v409, 0
      %v595 = vsel %vm527, %v410, 0
      %v598 = vsel %vm527, %v411, 0
      %v601 = vsel %vm527, %v412, 0
      %v604 = vsel %vm527, %v413, 0
      %v607 = vsel %vm527, %v414, 0
      %v610 = vsel %vm527, %v415, 0
      %v613 = vsel %vm527, %v416, 0
      %v616 = vsel %vm527, %v417, 0
      %v619 = vsel %vm527, %v418, 0
      %v622 = vsel %vm527, %v419, 0
      %v625 = vsel %vm527, %v420, 0
      %v628 = vsel %vm527, %v421, 0
      %v631 = vsel %vm527, %v422, 0
      %v634 = vsel %vm527, %v423, 0
      %v637 = vsel %vm527, %v424, 0
      %v640 = vsel %vm527, %v425, 0
      %v643 = vsel %vm527, %v426, 0
      %v646 = vsel %vm527, %v427, 0
      %v649 = vsel %vm527, %v428, 0
      %v652 = vsel %vm527, %v429, 0
      %v655 = vsel %vm527, %v430, 0
      %v658 = vsel %vm527, %v431, 0
      %v661 = vsel %vm527, %v432, 0
      %v664 = vsel %vm527, %v433, 0
      %v667 = vsel %vm527, %v434, 0
      %v670 = vsel %vm527, %v435, 0
      %v673 = vsel %vm527, %v436, 0
      %v676 = vsel %vm527, %v437, 0
      %v679 = vsel %vm527, %v438, 0
      %v682 = vsel %vm527, %v439, 0
      %v685 = vsel %vm527, %v440, 0
      %v688 = vsel %vm527, %v441, 0
      %v691 = vsel %vm527, %v442, 0
      %v694 = vsel %vm527, %v443, 0
      %v697 = vsel %vm527, %v444, 0
      %v700 = vsel %vm527, %v445, 0
      %v703 = vsel %vm527, %v446, 0
      %v706 = vsel %vm527, %v447, 0
      %v709 = vsel %vm527, %v448, 0
      %v712 = vsel %vm527, %v449, 0
      %v715 = vsel %vm527, %v450, 0
      %v718 = vsel %vm527, %v451, 0
      %v721 = vsel %vm527, %v452, 0
      %v724 = vsel %vm527, %v453, 0
      %v727 = vsel %vm527, %v454, 0
      %v730 = vsel %vm527, %v455, 0
      %v733 = vsel %vm527, %v456, 0
      %v736 = vsel %vm527, %v457, 0
      %v739 = vsel %vm527, %v458, 0
      %v742 = vsel %vm527, %v459, 0
      %v745 = vsel %vm527, %v460, 0
      %v748 = vsel %vm527, %v461, 0
      %v751 = vsel %vm527, %v462, 0
      %v754 = vsel %vm527, %v463, 0
      %v757 = vsel %vm527, %v464, 0
      %v760 = vsel %vm527, %v465, 0
      %v763 = vsel %vm527, %v466, 0
      %v766 = vsel %vm527, %v467, 0
      %v769 = vsel %vm527, %v468, 0
      %v772 = vsel %vm527, %v469, 0
      %v775 = vsel %vm527, %v470, 0
      %v778 = vsel %vm527, %v471, 0
      %v781 = vsel %vm527, %v472, 0
      %v784 = vsel %vm527, %v473, 0
      %v787 = vsel %vm527, %v474, 0
      %v790 = vsel %vm527, %v475, 0
      %v793 = vsel %vm527, %v476, 0
      %v796 = vsel %vm527, %v477, 0
      %v799 = vsel %vm527, %v478, 0
      %v802 = vsel %vm527, %v479, 0
      %v805 = vsel %vm527, %v480, 0
      %v808 = vsel %vm527, %v481, 0
      %v811 = vsel %vm527, %v482, 0
      %v814 = vsel %vm527, %v483, 0
      %v817 = vsel %vm527, %v484, 0
      %v820 = vsel %vm527, %v485, 0
      %v823 = vsel %vm527, %v486, 0
      %v826 = vsel %vm527, %v487, 0
      %v829 = vsel %vm527, %v488, 0
      %v832 = vsel %vm527, %v489, 0
      %v835 = vsel %vm527, %v490, 0
      %v838 = vsel %vm527, %v491, 0
      %v841 = vsel %vm527, %v492, 0
      %v844 = vsel %vm527, %v493, 0
      %v847 = vsel %vm527, %v494, 0
      %v850 = vsel %vm527, %v495, 0
      %v853 = vsel %vm527, %v496, 0
      %v856 = vsel %vm527, %v497, 0
      %v859 = vsel %vm527, %v498, 0
      %v862 = vsel %vm527, %v499, 0
      %v865 = vsel %vm527, %v500, 0
      %v868 = vsel %vm527, %v501, 0
      %v871 = vsel %vm527, %v502, 0
      %v874 = vsel %vm527, %v503, 0
      %v877 = vsel %vm527, %v504, 0
      %v880 = vsel %vm527, %v505, 0
      %v883 = vsel %vm527, %v506, 0
      %v886 = vsel %vm527, %v507, 0
      %v889 = vsel %vm527, %v508, 0
      %v892 = vsel %vm527, %v509, 0
      %v895 = vsel %vm527, %v510, 0
      %v898 = vsel %vm527, %v511, 0
      %v901 = vsel %vm527, %v512, 0
      %v904 = vsel %vm527, %v513, 0
      %v907 = vsel %vm527, %v514, 0
      %v910 = vsel %vm527, %v515, 0
      %912 = vmatprep.subr.mxu0 0.0
      %913 = vmatpush1.msra.mxu0 %v516
      %914 = vmatprep.subr.mxu0 0.0
      %915 = vmatpush1.msra.mxu0 %v517
      %916 = vmatprep.subr.mxu0 0.0
      %917 = vmatpush1.msra.mxu0 %v518
      %918 = vmatprep.subr.mxu0 0.0
      %919 = vmatpush1.msra.mxu0 %v519
      %920 = vmatprep.subr.mxu0 0.0
      %921 = vmatpush1.msra.mxu0 0.0
      %922 = vmatprep.subr.mxu0 0.0
      %923 = vmatpush1.msra.mxu0 0.0
      %924 = vmatprep.subr.mxu0 0.0
      %925 = vmatpush1.msra.mxu0 0.0
      %926 = vmatprep.subr.mxu0 0.0
      %927 = vmatpush1.msra.mxu0 0.0
      %928 = vmatprep.subr.mxu0 0.0
      %929 = vmatpush1.msra.mxu0 0.0
      %930 = vmatprep.subr.mxu0 0.0
      %931 = vmatpush1.msra.mxu0 0.0
      %932 = vmatprep.subr.mxu0 0.0
      %933 = vmatpush1.msra.mxu0 0.0
      %934 = vmatprep.subr.mxu0 0.0
      %935 = vmatpush1.msra.mxu0 0.0
      %936 = vmatprep.subr.mxu0 0.0
      %937 = vmatpush1.msra.mxu0 0.0
      %938 = vmatprep.subr.mxu0 0.0
      %939 = vmatpush1.msra.mxu0 0.0
      %940 = vmatprep.subr.mxu0 0.0
      %941 = vmatpush1.msra.mxu0 0.0
      %942 = vmatprep.subr.mxu0 0.0
      %943 = vmatpush1.msra.mxu0 0.0
      %944 = vmatprep.subr.mxu0 0.0
      %945 = vmatpush1.msra.mxu0 0.0
      %946 = vmatprep.subr.mxu0 0.0
      %947 = vmatpush1.msra.mxu0 0.0
      %948 = vmatprep.subr.mxu0 0.0
      %949 = vmatpush1.msra.mxu0 0.0
      %950 = vmatprep.subr.mxu0 0.0
      %951 = vmatpush1.msra.mxu0 0.0
      %952 = vmatprep.subr.mxu0 0.0
      %953 = vmatpush1.msra.mxu0 0.0
      %954 = vmatprep.subr.mxu0 0.0
      %955 = vmatpush1.msra.mxu0 0.0
      %956 = vmatprep.subr.mxu0 0.0
      %957 = vmatpush1.msra.mxu0 0.0
      %958 = vmatprep.subr.mxu0 0.0
      %959 = vmatpush1.msra.mxu0 0.0
      %960 = vmatprep.subr.mxu0 0.0
      %961 = vmatpush1.msra.mxu0 0.0
      %962 = vmatprep.subr.mxu0 0.0
      %963 = vmatpush1.msra.mxu0 0.0
      %964 = vmatprep.subr.mxu0 0.0
      %965 = vmatpush1.msra.mxu0 0.0
      %966 = vmatprep.subr.mxu0 0.0
      %967 = vmatpush1.msra.mxu0 0.0
      %968 = vmatprep.subr.mxu0 0.0
      %969 = vmatpush1.msra.mxu0 0.0
      %970 = vmatprep.subr.mxu0 0.0
      %971 = vmatpush1.msra.mxu0 0.0
      %972 = vmatprep.subr.mxu0 0.0
      %973 = vmatpush1.msra.mxu0 0.0
      %974 = vmatprep.subr.mxu0 0.0
      %975 = vmatpush1.msra.mxu0 0.0
      %976 = vmatprep.mubr.f32.mxu0 0.0
      %977 = vmatmul.mubr.f32.gmra.mrb[0].mxu0 %v529
      %v978 = vpop.f32.mrb[0].mxu0
      %v979 = vadd.f32 %v525, %v978
      %v980 = vpop.f32.mrb[0].mxu0
      %981 = vmatprep.mubr.f32.mxu0 0.0
      %982 = vmatmul.mubr.f32.gmra.mrb[0].mxu0 %v532
      %v983 = vpop.f32.mrb[0].mxu0
      %v984 = vadd.f32 %v525, %v983
      %v985 = vpop.f32.mrb[0].mxu0
      %986 = vmatprep.mubr.f32.mxu0 0.0
      %987 = vmatmul.mubr.f32.gmra.mrb[0].mxu0 %v535
      %v988 = vpop.f32.mrb[0].mxu0
      %v989 = vadd.f32 %v525, %v988
      %v990 = vpop.f32.mrb[0].mxu0
      %991 = vmatprep.mubr.f32.mxu0 0.0
      %992 = vmatmul.mubr.f32.gmra.mrb[0].mxu0 %v538
      %v993 = vpop.f32.mrb[0].mxu0
      %v994 = vadd.f32 %v525, %v993
      %v995 = vpop.f32.mrb[0].mxu0
      %996 = vmatprep.mubr.f32.mxu0 0.0
      %997 = vmatmul.mubr.f32.gmra.mrb[0].mxu0 %v541
      %v998 = vpop.f32.mrb[0].mxu0
      %v999 = vadd.f32 %v525, %v998
      %v1000 = vpop.f32.mrb[0].mxu0
      %1001 = vmatprep.mubr.f32.mxu0 0.0
      %1002 = vmatmul.mubr.f32.gmra.mrb[0].mxu0 %v544
      %v1003 = vpop.f32.mrb[0].mxu0
      %v1004 = vadd.f32 %v525, %v1003
      %v1005 = vpop.f32.mrb[0].mxu0
      %1006 = vmatprep.mubr.f32.mxu0 0.0
      %1007 = vmatmul.mubr.f32.gmra.mrb[0].mxu0 %v547
      %v1008 = vpop.f32.mrb[0].mxu0
      %v1009 = vadd.f32 %v525, %v1008
      %v1010 = vpop.f32.mrb[0].mxu0
      %1011 = vmatprep.mubr.f32.mxu0 0.0
      %1012 = vmatmul.mubr.f32.gmra.mrb[0].mxu0 %v550
      %v1013 = vpop.f32.mrb[0].mxu0
      %v1014 = vadd.f32 %v525, %v1013
      %v1015 = vpop.f32.mrb[0].mxu0
      %1016 = vmatprep.mubr.f32.mxu0 0.0
      %1017 = vmatmul.mubr.f32.gmra.mrb[0].mxu0 %v553
      %v1018 = vpop.f32.mrb[0].mxu0
      %v1019 = vadd.f32 %v525, %v1018
      %v1020 = vpop.f32.mrb[0].mxu0
      %1021 = vmatprep.mubr.f32.mxu0 0.0
      %1022 = vmatmul.mubr.f32.gmra.mrb[0].mxu0 %v556
      %v1023 = vpop.f32.mrb[0].mxu0
      %v1024 = vadd.f32 %v525, %v1023
      %v1025 = vpop.f32.mrb[0].mxu0
      %1026 = vmatprep.mubr.f32.mxu0 0.0
      %1027 = vmatmul.mubr.f32.gmra.mrb[0].mxu0 %v559
      %v1028 = vpop.f32.mrb[0].mxu0
      %v1029 = vadd.f32 %v525, %v1028
      %v1030 = vpop.f32.mrb[0].mxu0
      %1031 = vmatprep.mubr.f32.mxu0 0.0
      %1032 = vmatmul.mubr.f32.gmra.mrb[0].mxu0 %v562
      %v1033 = vpop.f32.mrb[0].mxu0
      %v1034 = vadd.f32 %v525, %v1033
      %v1035 = vpop.f32.mrb[0].mxu0
      %1036 = vmatprep.mubr.f32.mxu0 0.0
      %1037 = vmatmul.mubr.f32.gmra.mrb[0].mxu0 %v565
      %v1038 = vpop.f32.mrb[0].mxu0
      %v1039 = vadd.f32 %v525, %v1038
      %v1040 = vpop.f32.mrb[0].mxu0
      %1041 = vmatprep.mubr.f32.mxu0 0.0
      %1042 = vmatmul.mubr.f32.gmra.mrb[0].mxu0 %v568
      %v1043 = vpop.f32.mrb[0].mxu0
      %v1044 = vadd.f32 %v525, %v1043
      %v1045 = vpop.f32.mrb[0].mxu0
      %1046 = vmatprep.mubr.f32.mxu0 0.0
      %1047 = vmatmul.mubr.f32.gmra.mrb[0].mxu0 %v571
      %v1048 = vpop.f32.mrb[0].mxu0
      %v1049 = vadd.f32 %v525, %v1048
      %v1050 = vpop.f32.mrb[0].mxu0
      %1051 = vmatprep.mubr.f32.mxu0 0.0
      %1052 = vmatmul.mubr.f32.gmra.mrb[0].mxu0 %v574
      %v1053 = vpop.f32.mrb[0].mxu0
      %v1054 = vadd.f32 %v525, %v1053
      %v1055 = vpop.f32.mrb[0].mxu0
      %1056 = vmatprep.mubr.f32.mxu0 0.0
      %1057 = vmatmul.mubr.f32.gmra.mrb[0].mxu0 %v577
      %v1058 = vpop.f32.mrb[0].mxu0
      %v1059 = vadd.f32 %v525, %v1058
      %v1060 = vpop.f32.mrb[0].mxu0
      %1061 = vmatprep.mubr.f32.mxu0 0.0
      %1062 = vmatmul.mubr.f32.gmra.mrb[0].mxu0 %v580
      %v1063 = vpop.f32.mrb[0].mxu0
      %v1064 = vadd.f32 %v525, %v1063
      %v1065 = vpop.f32.mrb[0].mxu0
      %1066 = vmatprep.mubr.f32.mxu0 0.0
      %1067 = vmatmul.mubr.f32.gmra.mrb[0].mxu0 %v583
      %v1068 = vpop.f32.mrb[0].mxu0
      %v1069 = vadd.f32 %v525, %v1068
      %v1070 = vpop.f32.mrb[0].mxu0
      %1071 = vmatprep.mubr.f32.mxu0 0.0
      %1072 = vmatmul.mubr.f32.gmra.mrb[0].mxu0 %v586
      %v1073 = vpop.f32.mrb[0].mxu0
      %v1074 = vadd.f32 %v525, %v1073
      %v1075 = vpop.f32.mrb[0].mxu0
      %1076 = vmatprep.mubr.f32.mxu0 0.0
      %1077 = vmatmul.mubr.f32.gmra.mrb[0].mxu0 %v589
      %v1078 = vpop.f32.mrb[0].mxu0
      %v1079 = vadd.f32 %v525, %v1078
      %v1080 = vpop.f32.mrb[0].mxu0
      %1081 = vmatprep.mubr.f32.mxu0 0.0
      %1082 = vmatmul.mubr.f32.gmra.mrb[0].mxu0 %v592
      %v1083 = vpop.f32.mrb[0].mxu0
      %v1084 = vadd.f32 %v525, %v1083
      %v1085 = vpop.f32.mrb[0].mxu0
      %1086 = vmatprep.mubr.f32.mxu0 0.0
      %1087 = vmatmul.mubr.f32.gmra.mrb[0].mxu0 %v595
      %v1088 = vpop.f32.mrb[0].mxu0
      %v1089 = vadd.f32 %v525, %v1088
      %v1090 = vpop.f32.mrb[0].mxu0
      %1091 = vmatprep.mubr.f32.mxu0 0.0
      %1092 = vmatmul.mubr.f32.gmra.mrb[0].mxu0 %v598
      %v1093 = vpop.f32.mrb[0].mxu0
      %v1094 = vadd.f32 %v525, %v1093
      %v1095 = vpop.f32.mrb[0].mxu0
      %1096 = vmatprep.mubr.f32.mxu0 0.0
      %1097 = vmatmul.mubr.f32.gmra.mrb[0].mxu0 %v601
      %v1098 = vpop.f32.mrb[0].mxu0
      %v1099 = vadd.f32 %v525, %v1098
      %v1100 = vpop.f32.mrb[0].mxu0
      %1101 = vmatprep.mubr.f32.mxu0 0.0
      %1102 = vmatmul.mubr.f32.gmra.mrb[0].mxu0 %v604
      %v1103 = vpop.f32.mrb[0].mxu0
      %v1104 = vadd.f32 %v525, %v1103
      %v1105 = vpop.f32.mrb[0].mxu0
      %1106 = vmatprep.mubr.f32.mxu0 0.0
      %1107 = vmatmul.mubr.f32.gmra.mrb[0].mxu0 %v607
      %v1108 = vpop.f32.mrb[0].mxu0
      %v1109 = vadd.f32 %v525, %v1108
      %v1110 = vpop.f32.mrb[0].mxu0
      %1111 = vmatprep.mubr.f32.mxu0 0.0
      %1112 = vmatmul.mubr.f32.gmra.mrb[0].mxu0 %v610
      %v1113 = vpop.f32.mrb[0].mxu0
      %v1114 = vadd.f32 %v525, %v1113
      %v1115 = vpop.f32.mrb[0].mxu0
      %1116 = vmatprep.mubr.f32.mxu0 0.0
      %1117 = vmatmul.mubr.f32.gmra.mrb[0].mxu0 %v613
      %v1118 = vpop.f32.mrb[0].mxu0
      %v1119 = vadd.f32 %v525, %v1118
      %v1120 = vpop.f32.mrb[0].mxu0
      %1121 = vmatprep.mubr.f32.mxu0 0.0
      %1122 = vmatmul.mubr.f32.gmra.mrb[0].mxu0 %v616
      %v1123 = vpop.f32.mrb[0].mxu0
      %v1124 = vadd.f32 %v525, %v1123
      %v1125 = vpop.f32.mrb[0].mxu0
      %1126 = vmatprep.mubr.f32.mxu0 0.0
      %1127 = vmatmul.mubr.f32.gmra.mrb[0].mxu0 %v619
      %v1128 = vpop.f32.mrb[0].mxu0
      %v1129 = vadd.f32 %v525, %v1128
      %v1130 = vpop.f32.mrb[0].mxu0
      %1131 = vmatprep.mubr.f32.mxu0 0.0
      %1132 = vmatmul.mubr.f32.gmra.mrb[0].mxu0 %v622
      %v1133 = vpop.f32.mrb[0].mxu0
      %v1134 = vadd.f32 %v525, %v1133
      %v1135 = vpop.f32.mrb[0].mxu0
      %1136 = vmatprep.mubr.f32.mxu0 0.0
      %1137 = vmatmul.mubr.f32.gmra.mrb[0].mxu0 %v625
      %v1138 = vpop.f32.mrb[0].mxu0
      %v1139 = vadd.f32 %v525, %v1138
      %v1140 = vpop.f32.mrb[0].mxu0
      %1141 = vmatprep.mubr.f32.mxu0 0.0
      %1142 = vmatmul.mubr.f32.gmra.mrb[0].mxu0 %v628
      %v1143 = vpop.f32.mrb[0].mxu0
      %v1144 = vadd.f32 %v525, %v1143
      %v1145 = vpop.f32.mrb[0].mxu0
      %1146 = vmatprep.mubr.f32.mxu0 0.0
      %1147 = vmatmul.mubr.f32.gmra.mrb[0].mxu0 %v631
      %v1148 = vpop.f32.mrb[0].mxu0
      %v1149 = vadd.f32 %v525, %v1148
      %v1150 = vpop.f32.mrb[0].mxu0
      %1151 = vmatprep.mubr.f32.mxu0 0.0
      %1152 = vmatmul.mubr.f32.gmra.mrb[0].mxu0 %v634
      %v1153 = vpop.f32.mrb[0].mxu0
      %v1154 = vadd.f32 %v525, %v1153
      %v1155 = vpop.f32.mrb[0].mxu0
      %1156 = vmatprep.mubr.f32.mxu0 0.0
      %1157 = vmatmul.mubr.f32.gmra.mrb[0].mxu0 %v637
      %v1158 = vpop.f32.mrb[0].mxu0
      %v1159 = vadd.f32 %v525, %v1158
      %v1160 = vpop.f32.mrb[0].mxu0
      %1161 = vmatprep.mubr.f32.mxu0 0.0
      %1162 = vmatmul.mubr.f32.gmra.mrb[0].mxu0 %v640
      %v1163 = vpop.f32.mrb[0].mxu0
      %v1164 = vadd.f32 %v525, %v1163
      %v1165 = vpop.f32.mrb[0].mxu0
      %1166 = vmatprep.mubr.f32.mxu0 0.0
      %1167 = vmatmul.mubr.f32.gmra.mrb[0].mxu0 %v643
      %v1168 = vpop.f32.mrb[0].mxu0
      %v1169 = vadd.f32 %v525, %v1168
      %v1170 = vpop.f32.mrb[0].mxu0
      %1171 = vmatprep.mubr.f32.mxu0 0.0
      %1172 = vmatmul.mubr.f32.gmra.mrb[0].mxu0 %v646
      %v1173 = vpop.f32.mrb[0].mxu0
      %v1174 = vadd.f32 %v525, %v1173
      %v1175 = vpop.f32.mrb[0].mxu0
      %1176 = vmatprep.mubr.f32.mxu0 0.0
      %1177 = vmatmul.mubr.f32.gmra.mrb[0].mxu0 %v649
      %v1178 = vpop.f32.mrb[0].mxu0
      %v1179 = vadd.f32 %v525, %v1178
      %v1180 = vpop.f32.mrb[0].mxu0
      %1181 = vmatprep.mubr.f32.mxu0 0.0
      %1182 = vmatmul.mubr.f32.gmra.mrb[0].mxu0 %v652
      %v1183 = vpop.f32.mrb[0].mxu0
      %v1184 = vadd.f32 %v525, %v1183
      %v1185 = vpop.f32.mrb[0].mxu0
      %1186 = vmatprep.mubr.f32.mxu0 0.0
      %1187 = vmatmul.mubr.f32.gmra.mrb[0].mxu0 %v655
      %v1188 = vpop.f32.mrb[0].mxu0
      %v1189 = vadd.f32 %v525, %v1188
      %v1190 = vpop.f32.mrb[0].mxu0
      %1191 = vmatprep.mubr.f32.mxu0 0.0
      %1192 = vmatmul.mubr.f32.gmra.mrb[0].mxu0 %v658
      %v1193 = vpop.f32.mrb[0].mxu0
      %v1194 = vadd.f32 %v525, %v1193
      %v1195 = vpop.f32.mrb[0].mxu0
      %1196 = vmatprep.mubr.f32.mxu0 0.0
      %1197 = vmatmul.mubr.f32.gmra.mrb[0].mxu0 %v661
      %v1198 = vpop.f32.mrb[0].mxu0
      %v1199 = vadd.f32 %v525, %v1198
      %v1200 = vpop.f32.mrb[0].mxu0
      %1201 = vmatprep.mubr.f32.mxu0 0.0
      %1202 = vmatmul.mubr.f32.gmra.mrb[0].mxu0 %v664
      %v1203 = vpop.f32.mrb[0].mxu0
      %v1204 = vadd.f32 %v525, %v1203
      %v1205 = vpop.f32.mrb[0].mxu0
      %1206 = vmatprep.mubr.f32.mxu0 0.0
      %1207 = vmatmul.mubr.f32.gmra.mrb[0].mxu0 %v667
      %v1208 = vpop.f32.mrb[0].mxu0
      %v1209 = vadd.f32 %v525, %v1208
      %v1210 = vpop.f32.mrb[0].mxu0
      %1211 = vmatprep.mubr.f32.mxu0 0.0
      %1212 = vmatmul.mubr.f32.gmra.mrb[0].mxu0 %v670
      %v1213 = vpop.f32.mrb[0].mxu0
      %v1214 = vadd.f32 %v525, %v1213
      %v1215 = vpop.f32.mrb[0].mxu0
      %1216 = vmatprep.mubr.f32.mxu0 0.0
      %1217 = vmatmul.mubr.f32.gmra.mrb[0].mxu0 %v673
      %v1218 = vpop.f32.mrb[0].mxu0
      %v1219 = vadd.f32 %v525, %v1218
      %v1220 = vpop.f32.mrb[0].mxu0
      %1221 = vmatprep.mubr.f32.mxu0 0.0
      %1222 = vmatmul.mubr.f32.gmra.mrb[0].mxu0 %v676
      %v1223 = vpop.f32.mrb[0].mxu0
      %v1224 = vadd.f32 %v525, %v1223
      %v1225 = vpop.f32.mrb[0].mxu0
      %1226 = vmatprep.mubr.f32.mxu0 0.0
      %1227 = vmatmul.mubr.f32.gmra.mrb[0].mxu0 %v679
      %v1228 = vpop.f32.mrb[0].mxu0
      %v1229 = vadd.f32 %v525, %v1228
      %v1230 = vpop.f32.mrb[0].mxu0
      %1231 = vmatprep.mubr.f32.mxu0 0.0
      %1232 = vmatmul.mubr.f32.gmra.mrb[0].mxu0 %v682
      %v1233 = vpop.f32.mrb[0].mxu0
      %v1234 = vadd.f32 %v525, %v1233
      %v1235 = vpop.f32.mrb[0].mxu0
      %1236 = vmatprep.mubr.f32.mxu0 0.0
      %1237 = vmatmul.mubr.f32.gmra.mrb[0].mxu0 %v685
      %v1238 = vpop.f32.mrb[0].mxu0
      %v1239 = vadd.f32 %v525, %v1238
      %v1240 = vpop.f32.mrb[0].mxu0
      %1241 = vmatprep.mubr.f32.mxu0 0.0
      %1242 = vmatmul.mubr.f32.gmra.mrb[0].mxu0 %v688
      %v1243 = vpop.f32.mrb[0].mxu0
      %v1244 = vadd.f32 %v525, %v1243
      %v1245 = vpop.f32.mrb[0].mxu0
      %1246 = vmatprep.mubr.f32.mxu0 0.0
      %1247 = vmatmul.mubr.f32.gmra.mrb[0].mxu0 %v691
      %v1248 = vpop.f32.mrb[0].mxu0
      %v1249 = vadd.f32 %v525, %v1248
      %v1250 = vpop.f32.mrb[0].mxu0
      %1251 = vmatprep.mubr.f32.mxu0 0.0
      %1252 = vmatmul.mubr.f32.gmra.mrb[0].mxu0 %v694
      %v1253 = vpop.f32.mrb[0].mxu0
      %v1254 = vadd.f32 %v525, %v1253
      %v1255 = vpop.f32.mrb[0].mxu0
      %1256 = vmatprep.mubr.f32.mxu0 0.0
      %1257 = vmatmul.mubr.f32.gmra.mrb[0].mxu0 %v697
      %v1258 = vpop.f32.mrb[0].mxu0
      %v1259 = vadd.f32 %v525, %v1258
      %v1260 = vpop.f32.mrb[0].mxu0
      %1261 = vmatprep.mubr.f32.mxu0 0.0
      %1262 = vmatmul.mubr.f32.gmra.mrb[0].mxu0 %v700
      %v1263 = vpop.f32.mrb[0].mxu0
      %v1264 = vadd.f32 %v525, %v1263
      %v1265 = vpop.f32.mrb[0].mxu0
      %1266 = vmatprep.mubr.f32.mxu0 0.0
      %1267 = vmatmul.mubr.f32.gmra.mrb[0].mxu0 %v703
      %v1268 = vpop.f32.mrb[0].mxu0
      %v1269 = vadd.f32 %v525, %v1268
      %v1270 = vpop.f32.mrb[0].mxu0
      %1271 = vmatprep.mubr.f32.mxu0 0.0
      %1272 = vmatmul.mubr.f32.gmra.mrb[0].mxu0 %v706
      %v1273 = vpop.f32.mrb[0].mxu0
      %v1274 = vadd.f32 %v525, %v1273
      %v1275 = vpop.f32.mrb[0].mxu0
      %1276 = vmatprep.mubr.f32.mxu0 0.0
      %1277 = vmatmul.mubr.f32.gmra.mrb[0].mxu0 %v709
      %v1278 = vpop.f32.mrb[0].mxu0
      %v1279 = vadd.f32 %v525, %v1278
      %v1280 = vpop.f32.mrb[0].mxu0
      %1281 = vmatprep.mubr.f32.mxu0 0.0
      %1282 = vmatmul.mubr.f32.gmra.mrb[0].mxu0 %v712
      %v1283 = vpop.f32.mrb[0].mxu0
      %v1284 = vadd.f32 %v525, %v1283
      %v1285 = vpop.f32.mrb[0].mxu0
      %1286 = vmatprep.mubr.f32.mxu0 0.0
      %1287 = vmatmul.mubr.f32.gmra.mrb[0].mxu0 %v715
      %v1288 = vpop.f32.mrb[0].mxu0
      %v1289 = vadd.f32 %v525, %v1288
      %v1290 = vpop.f32.mrb[0].mxu0
      %1291 = vmatprep.mubr.f32.mxu0 0.0
      %1292 = vmatmul.mubr.f32.gmra.mrb[0].mxu0 %v718
      %v1293 = vpop.f32.mrb[0].mxu0
      %v1294 = vadd.f32 %v525, %v1293
      %v1295 = vpop.f32.mrb[0].mxu0
      %1296 = vmatprep.mubr.f32.mxu0 0.0
      %1297 = vmatmul.mubr.f32.gmra.mrb[0].mxu0 %v721
      %v1298 = vpop.f32.mrb[0].mxu0
      %v1299 = vadd.f32 %v525, %v1298
      %v1300 = vpop.f32.mrb[0].mxu0
      %1301 = vmatprep.mubr.f32.mxu0 0.0
      %1302 = vmatmul.mubr.f32.gmra.mrb[0].mxu0 %v724
      %v1303 = vpop.f32.mrb[0].mxu0
      %v1304 = vadd.f32 %v525, %v1303
      %v1305 = vpop.f32.mrb[0].mxu0
      %1306 = vmatprep.mubr.f32.mxu0 0.0
      %1307 = vmatmul.mubr.f32.gmra.mrb[0].mxu0 %v727
      %v1308 = vpop.f32.mrb[0].mxu0
      %v1309 = vadd.f32 %v525, %v1308
      %v1310 = vpop.f32.mrb[0].mxu0
      %1311 = vmatprep.mubr.f32.mxu0 0.0
      %1312 = vmatmul.mubr.f32.gmra.mrb[0].mxu0 %v730
      %v1313 = vpop.f32.mrb[0].mxu0
      %v1314 = vadd.f32 %v525, %v1313
      %v1315 = vpop.f32.mrb[0].mxu0
      %1316 = vmatprep.mubr.f32.mxu0 0.0
      %1317 = vmatmul.mubr.f32.gmra.mrb[0].mxu0 %v733
      %v1318 = vpop.f32.mrb[0].mxu0
      %v1319 = vadd.f32 %v525, %v1318
      %v1320 = vpop.f32.mrb[0].mxu0
      %1321 = vmatprep.mubr.f32.mxu0 0.0
      %1322 = vmatmul.mubr.f32.gmra.mrb[0].mxu0 %v736
      %v1323 = vpop.f32.mrb[0].mxu0
      %v1324 = vadd.f32 %v525, %v1323
      %v1325 = vpop.f32.mrb[0].mxu0
      %1326 = vmatprep.mubr.f32.mxu0 0.0
      %1327 = vmatmul.mubr.f32.gmra.mrb[0].mxu0 %v739
      %v1328 = vpop.f32.mrb[0].mxu0
      %v1329 = vadd.f32 %v525, %v1328
      %v1330 = vpop.f32.mrb[0].mxu0
      %1331 = vmatprep.mubr.f32.mxu0 0.0
      %1332 = vmatmul.mubr.f32.gmra.mrb[0].mxu0 %v742
      %v1333 = vpop.f32.mrb[0].mxu0
      %v1334 = vadd.f32 %v525, %v1333
      %v1335 = vpop.f32.mrb[0].mxu0
      %1336 = vmatprep.mubr.f32.mxu0 0.0
      %1337 = vmatmul.mubr.f32.gmra.mrb[0].mxu0 %v745
      %v1338 = vpop.f32.mrb[0].mxu0
      %v1339 = vadd.f32 %v525, %v1338
      %v1340 = vpop.f32.mrb[0].mxu0
      %1341 = vmatprep.mubr.f32.mxu0 0.0
      %1342 = vmatmul.mubr.f32.gmra.mrb[0].mxu0 %v748
      %v1343 = vpop.f32.mrb[0].mxu0
      %v1344 = vadd.f32 %v525, %v1343
      %v1345 = vpop.f32.mrb[0].mxu0
      %1346 = vmatprep.mubr.f32.mxu0 0.0
      %1347 = vmatmul.mubr.f32.gmra.mrb[0].mxu0 %v751
      %v1348 = vpop.f32.mrb[0].mxu0
      %v1349 = vadd.f32 %v525, %v1348
      %v1350 = vpop.f32.mrb[0].mxu0
      %1351 = vmatprep.mubr.f32.mxu0 0.0
      %1352 = vmatmul.mubr.f32.gmra.mrb[0].mxu0 %v754
      %v1353 = vpop.f32.mrb[0].mxu0
      %v1354 = vadd.f32 %v525, %v1353
      %v1355 = vpop.f32.mrb[0].mxu0
      %1356 = vmatprep.mubr.f32.mxu0 0.0
      %1357 = vmatmul.mubr.f32.gmra.mrb[0].mxu0 %v757
      %v1358 = vpop.f32.mrb[0].mxu0
      %v1359 = vadd.f32 %v525, %v1358
      %v1360 = vpop.f32.mrb[0].mxu0
      %1361 = vmatprep.mubr.f32.mxu0 0.0
      %1362 = vmatmul.mubr.f32.gmra.mrb[0].mxu0 %v760
      %v1363 = vpop.f32.mrb[0].mxu0
      %v1364 = vadd.f32 %v525, %v1363
      %v1365 = vpop.f32.mrb[0].mxu0
      %1366 = vmatprep.mubr.f32.mxu0 0.0
      %1367 = vmatmul.mubr.f32.gmra.mrb[0].mxu0 %v763
      %v1368 = vpop.f32.mrb[0].mxu0
      %v1369 = vadd.f32 %v525, %v1368
      %v1370 = vpop.f32.mrb[0].mxu0
      %1371 = vmatprep.mubr.f32.mxu0 0.0
      %1372 = vmatmul.mubr.f32.gmra.mrb[0].mxu0 %v766
      %v1373 = vpop.f32.mrb[0].mxu0
      %v1374 = vadd.f32 %v525, %v1373
      %v1375 = vpop.f32.mrb[0].mxu0
      %1376 = vmatprep.mubr.f32.mxu0 0.0
      %1377 = vmatmul.mubr.f32.gmra.mrb[0].mxu0 %v769
      %v1378 = vpop.f32.mrb[0].mxu0
      %v1379 = vadd.f32 %v525, %v1378
      %v1380 = vpop.f32.mrb[0].mxu0
      %1381 = vmatprep.mubr.f32.mxu0 0.0
      %1382 = vmatmul.mubr.f32.gmra.mrb[0].mxu0 %v772
      %v1383 = vpop.f32.mrb[0].mxu0
      %v1384 = vadd.f32 %v525, %v1383
      %v1385 = vpop.f32.mrb[0].mxu0
      %1386 = vmatprep.mubr.f32.mxu0 0.0
      %1387 = vmatmul.mubr.f32.gmra.mrb[0].mxu0 %v775
      %v1388 = vpop.f32.mrb[0].mxu0
      %v1389 = vadd.f32 %v525, %v1388
      %v1390 = vpop.f32.mrb[0].mxu0
      %1391 = vmatprep.mubr.f32.mxu0 0.0
      %1392 = vmatmul.mubr.f32.gmra.mrb[0].mxu0 %v778
      %v1393 = vpop.f32.mrb[0].mxu0
      %v1394 = vadd.f32 %v525, %v1393
      %v1395 = vpop.f32.mrb[0].mxu0
      %1396 = vmatprep.mubr.f32.mxu0 0.0
      %1397 = vmatmul.mubr.f32.gmra.mrb[0].mxu0 %v781
      %v1398 = vpop.f32.mrb[0].mxu0
      %v1399 = vadd.f32 %v525, %v1398
      %v1400 = vpop.f32.mrb[0].mxu0
      %1401 = vmatprep.mubr.f32.mxu0 0.0
      %1402 = vmatmul.mubr.f32.gmra.mrb[0].mxu0 %v784
      %v1403 = vpop.f32.mrb[0].mxu0
      %v1404 = vadd.f32 %v525, %v1403
      %v1405 = vpop.f32.mrb[0].mxu0
      %1406 = vmatprep.mubr.f32.mxu0 0.0
      %1407 = vmatmul.mubr.f32.gmra.mrb[0].mxu0 %v787
      %v1408 = vpop.f32.mrb[0].mxu0
      %v1409 = vadd.f32 %v525, %v1408
      %v1410 = vpop.f32.mrb[0].mxu0
      %1411 = vmatprep.mubr.f32.mxu0 0.0
      %1412 = vmatmul.mubr.f32.gmra.mrb[0].mxu0 %v790
      %v1413 = vpop.f32.mrb[0].mxu0
      %v1414 = vadd.f32 %v525, %v1413
      %v1415 = vpop.f32.mrb[0].mxu0
      %1416 = vmatprep.mubr.f32.mxu0 0.0
      %1417 = vmatmul.mubr.f32.gmra.mrb[0].mxu0 %v793
      %v1418 = vpop.f32.mrb[0].mxu0
      %v1419 = vadd.f32 %v525, %v1418
      %v1420 = vpop.f32.mrb[0].mxu0
      %1421 = vmatprep.mubr.f32.mxu0 0.0
      %1422 = vmatmul.mubr.f32.gmra.mrb[0].mxu0 %v796
      %v1423 = vpop.f32.mrb[0].mxu0
      %v1424 = vadd.f32 %v525, %v1423
      %v1425 = vpop.f32.mrb[0].mxu0
      %1426 = vmatprep.mubr.f32.mxu0 0.0
      %1427 = vmatmul.mubr.f32.gmra.mrb[0].mxu0 %v799
      %v1428 = vpop.f32.mrb[0].mxu0
      %v1429 = vadd.f32 %v525, %v1428
      %v1430 = vpop.f32.mrb[0].mxu0
      %1431 = vmatprep.mubr.f32.mxu0 0.0
      %1432 = vmatmul.mubr.f32.gmra.mrb[0].mxu0 %v802
      %v1433 = vpop.f32.mrb[0].mxu0
      %v1434 = vadd.f32 %v525, %v1433
      %v1435 = vpop.f32.mrb[0].mxu0
      %1436 = vmatprep.mubr.f32.mxu0 0.0
      %1437 = vmatmul.mubr.f32.gmra.mrb[0].mxu0 %v805
      %v1438 = vpop.f32.mrb[0].mxu0
      %v1439 = vadd.f32 %v525, %v1438
      %v1440 = vpop.f32.mrb[0].mxu0
      %1441 = vmatprep.mubr.f32.mxu0 0.0
      %1442 = vmatmul.mubr.f32.gmra.mrb[0].mxu0 %v808
      %v1443 = vpop.f32.mrb[0].mxu0
      %v1444 = vadd.f32 %v525, %v1443
      %v1445 = vpop.f32.mrb[0].mxu0
      %1446 = vmatprep.mubr.f32.mxu0 0.0
      %1447 = vmatmul.mubr.f32.gmra.mrb[0].mxu0 %v811
      %v1448 = vpop.f32.mrb[0].mxu0
      %v1449 = vadd.f32 %v525, %v1448
      %v1450 = vpop.f32.mrb[0].mxu0
      %1451 = vmatprep.mubr.f32.mxu0 0.0
      %1452 = vmatmul.mubr.f32.gmra.mrb[0].mxu0 %v814
      %v1453 = vpop.f32.mrb[0].mxu0
      %v1454 = vadd.f32 %v525, %v1453
      %v1455 = vpop.f32.mrb[0].mxu0
      %1456 = vmatprep.mubr.f32.mxu0 0.0
      %1457 = vmatmul.mubr.f32.gmra.mrb[0].mxu0 %v817
      %v1458 = vpop.f32.mrb[0].mxu0
      %v1459 = vadd.f32 %v525, %v1458
      %v1460 = vpop.f32.mrb[0].mxu0
      %1461 = vmatprep.mubr.f32.mxu0 0.0
      %1462 = vmatmul.mubr.f32.gmra.mrb[0].mxu0 %v820
      %v1463 = vpop.f32.mrb[0].mxu0
      %v1464 = vadd.f32 %v525, %v1463
      %v1465 = vpop.f32.mrb[0].mxu0
      %1466 = vmatprep.mubr.f32.mxu0 0.0
      %1467 = vmatmul.mubr.f32.gmra.mrb[0].mxu0 %v823
      %v1468 = vpop.f32.mrb[0].mxu0
      %v1469 = vadd.f32 %v525, %v1468
      %v1470 = vpop.f32.mrb[0].mxu0
      %1471 = vmatprep.mubr.f32.mxu0 0.0
      %1472 = vmatmul.mubr.f32.gmra.mrb[0].mxu0 %v826
      %v1473 = vpop.f32.mrb[0].mxu0
      %v1474 = vadd.f32 %v525, %v1473
      %v1475 = vpop.f32.mrb[0].mxu0
      %1476 = vmatprep.mubr.f32.mxu0 0.0
      %1477 = vmatmul.mubr.f32.gmra.mrb[0].mxu0 %v829
      %v1478 = vpop.f32.mrb[0].mxu0
      %v1479 = vadd.f32 %v525, %v1478
      %v1480 = vpop.f32.mrb[0].mxu0
      %1481 = vmatprep.mubr.f32.mxu0 0.0
      %1482 = vmatmul.mubr.f32.gmra.mrb[0].mxu0 %v832
      %v1483 = vpop.f32.mrb[0].mxu0
      %v1484 = vadd.f32 %v525, %v1483
      %v1485 = vpop.f32.mrb[0].mxu0
      %1486 = vmatprep.mubr.f32.mxu0 0.0
      %1487 = vmatmul.mubr.f32.gmra.mrb[0].mxu0 %v835
      %v1488 = vpop.f32.mrb[0].mxu0
      %v1489 = vadd.f32 %v525, %v1488
      %v1490 = vpop.f32.mrb[0].mxu0
      %1491 = vmatprep.mubr.f32.mxu0 0.0
      %1492 = vmatmul.mubr.f32.gmra.mrb[0].mxu0 %v838
      %v1493 = vpop.f32.mrb[0].mxu0
      %v1494 = vadd.f32 %v525, %v1493
      %v1495 = vpop.f32.mrb[0].mxu0
      %1496 = vmatprep.mubr.f32.mxu0 0.0
      %1497 = vmatmul.mubr.f32.gmra.mrb[0].mxu0 %v841
      %v1498 = vpop.f32.mrb[0].mxu0
      %v1499 = vadd.f32 %v525, %v1498
      %v1500 = vpop.f32.mrb[0].mxu0
      %1501 = vmatprep.mubr.f32.mxu0 0.0
      %1502 = vmatmul.mubr.f32.gmra.mrb[0].mxu0 %v844
      %v1503 = vpop.f32.mrb[0].mxu0
      %v1504 = vadd.f32 %v525, %v1503
      %v1505 = vpop.f32.mrb[0].mxu0
      %1506 = vmatprep.mubr.f32.mxu0 0.0
      %1507 = vmatmul.mubr.f32.gmra.mrb[0].mxu0 %v847
      %v1508 = vpop.f32.mrb[0].mxu0
      %v1509 = vadd.f32 %v525, %v1508
      %v1510 = vpop.f32.mrb[0].mxu0
      %1511 = vmatprep.mubr.f32.mxu0 0.0
      %1512 = vmatmul.mubr.f32.gmra.mrb[0].mxu0 %v850
      %v1513 = vpop.f32.mrb[0].mxu0
      %v1514 = vadd.f32 %v525, %v1513
      %v1515 = vpop.f32.mrb[0].mxu0
      %1516 = vmatprep.mubr.f32.mxu0 0.0
      %1517 = vmatmul.mubr.f32.gmra.mrb[0].mxu0 %v853
      %v1518 = vpop.f32.mrb[0].mxu0
      %v1519 = vadd.f32 %v525, %v1518
      %v1520 = vpop.f32.mrb[0].mxu0
      %1521 = vmatprep.mubr.f32.mxu0 0.0
      %1522 = vmatmul.mubr.f32.gmra.mrb[0].mxu0 %v856
      %v1523 = vpop.f32.mrb[0].mxu0
      %v1524 = vadd.f32 %v525, %v1523
      %v1525 = vpop.f32.mrb[0].mxu0
      %1526 = vmatprep.mubr.f32.mxu0 0.0
      %1527 = vmatmul.mubr.f32.gmra.mrb[0].mxu0 %v859
      %v1528 = vpop.f32.mrb[0].mxu0
      %v1529 = vadd.f32 %v525, %v1528
      %v1530 = vpop.f32.mrb[0].mxu0
      %1531 = vmatprep.mubr.f32.mxu0 0.0
      %1532 = vmatmul.mubr.f32.gmra.mrb[0].mxu0 %v862
      %v1533 = vpop.f32.mrb[0].mxu0
      %v1534 = vadd.f32 %v525, %v1533
      %v1535 = vpop.f32.mrb[0].mxu0
      %1536 = vmatprep.mubr.f32.mxu0 0.0
      %1537 = vmatmul.mubr.f32.gmra.mrb[0].mxu0 %v865
      %v1538 = vpop.f32.mrb[0].mxu0
      %v1539 = vadd.f32 %v525, %v1538
      %v1540 = vpop.f32.mrb[0].mxu0
      %1541 = vmatprep.mubr.f32.mxu0 0.0
      %1542 = vmatmul.mubr.f32.gmra.mrb[0].mxu0 %v868
      %v1543 = vpop.f32.mrb[0].mxu0
      %v1544 = vadd.f32 %v525, %v1543
      %v1545 = vpop.f32.mrb[0].mxu0
      %1546 = vmatprep.mubr.f32.mxu0 0.0
      %1547 = vmatmul.mubr.f32.gmra.mrb[0].mxu0 %v871
      %v1548 = vpop.f32.mrb[0].mxu0
      %v1549 = vadd.f32 %v525, %v1548
      %v1550 = vpop.f32.mrb[0].mxu0
      %1551 = vmatprep.mubr.f32.mxu0 0.0
      %1552 = vmatmul.mubr.f32.gmra.mrb[0].mxu0 %v874
      %v1553 = vpop.f32.mrb[0].mxu0
      %v1554 = vadd.f32 %v525, %v1553
      %v1555 = vpop.f32.mrb[0].mxu0
      %1556 = vmatprep.mubr.f32.mxu0 0.0
      %1557 = vmatmul.mubr.f32.gmra.mrb[0].mxu0 %v877
      %v1558 = vpop.f32.mrb[0].mxu0
      %v1559 = vadd.f32 %v525, %v1558
      %v1560 = vpop.f32.mrb[0].mxu0
      %1561 = vmatprep.mubr.f32.mxu0 0.0
      %1562 = vmatmul.mubr.f32.gmra.mrb[0].mxu0 %v880
      %v1563 = vpop.f32.mrb[0].mxu0
      %v1564 = vadd.f32 %v525, %v1563
      %v1565 = vpop.f32.mrb[0].mxu0
      %1566 = vmatprep.mubr.f32.mxu0 0.0
      %1567 = vmatmul.mubr.f32.gmra.mrb[0].mxu0 %v883
      %v1568 = vpop.f32.mrb[0].mxu0
      %v1569 = vadd.f32 %v525, %v1568
      %v1570 = vpop.f32.mrb[0].mxu0
      %1571 = vmatprep.mubr.f32.mxu0 0.0
      %1572 = vmatmul.mubr.f32.gmra.mrb[0].mxu0 %v886
      %v1573 = vpop.f32.mrb[0].mxu0
      %v1574 = vadd.f32 %v525, %v1573
      %v1575 = vpop.f32.mrb[0].mxu0
      %1576 = vmatprep.mubr.f32.mxu0 0.0
      %1577 = vmatmul.mubr.f32.gmra.mrb[0].mxu0 %v889
      %v1578 = vpop.f32.mrb[0].mxu0
      %v1579 = vadd.f32 %v525, %v1578
      %v1580 = vpop.f32.mrb[0].mxu0
      %1581 = vmatprep.mubr.f32.mxu0 0.0
      %1582 = vmatmul.mubr.f32.gmra.mrb[0].mxu0 %v892
      %v1583 = vpop.f32.mrb[0].mxu0
      %v1584 = vadd.f32 %v525, %v1583
      %v1585 = vpop.f32.mrb[0].mxu0
      %1586 = vmatprep.mubr.f32.mxu0 0.0
      %1587 = vmatmul.mubr.f32.gmra.mrb[0].mxu0 %v895
      %v1588 = vpop.f32.mrb[0].mxu0
      %v1589 = vadd.f32 %v525, %v1588
      %v1590 = vpop.f32.mrb[0].mxu0
      %1591 = vmatprep.mubr.f32.mxu0 0.0
      %1592 = vmatmul.mubr.f32.gmra.mrb[0].mxu0 %v898
      %v1593 = vpop.f32.mrb[0].mxu0
      %v1594 = vadd.f32 %v525, %v1593
      %v1595 = vpop.f32.mrb[0].mxu0
      %1596 = vmatprep.mubr.f32.mxu0 0.0
      %1597 = vmatmul.mubr.f32.gmra.mrb[0].mxu0 %v901
      %v1598 = vpop.f32.mrb[0].mxu0
      %v1599 = vadd.f32 %v525, %v1598
      %v1600 = vpop.f32.mrb[0].mxu0
      %1601 = vmatprep.mubr.f32.mxu0 0.0
      %1602 = vmatmul.mubr.f32.gmra.mrb[0].mxu0 %v904
      %v1603 = vpop.f32.mrb[0].mxu0
      %v1604 = vadd.f32 %v525, %v1603
      %v1605 = vpop.f32.mrb[0].mxu0
      %1606 = vmatprep.mubr.f32.mxu0 0.0
      %1607 = vmatmul.mubr.f32.gmra.mrb[0].mxu0 %v907
      %v1608 = vpop.f32.mrb[0].mxu0
      %v1609 = vadd.f32 %v525, %v1608
      %v1610 = vpop.f32.mrb[0].mxu0
      %1611 = vmatprep.mubr.f32.mxu0 0.0
      %1612 = vmatmul.mubr.f32.gmra.mrb[0].mxu0 %v910
      %v1613 = vpop.f32.mrb[0].mxu0
      %v1614 = vadd.f32 %v525, %v1613
      %v1615 = vpop.f32.mrb[0].mxu0
      %1616 = vdwg.mxu0
      %v1617 = vmax.f32 %v979, 0.0
      %v1618 = vmax.f32 %v984, 0.0
      %v1619 = vmax.f32 %v989, 0.0
      %v1620 = vmax.f32 %v994, 0.0
      %v1621 = vmax.f32 %v999, 0.0
      %v1622 = vmax.f32 %v1004, 0.0
      %v1623 = vmax.f32 %v1009, 0.0
      %v1624 = vmax.f32 %v1014, 0.0
      %v1625 = vmax.f32 %v1019, 0.0
      %v1626 = vmax.f32 %v1024, 0.0
      %v1627 = vmax.f32 %v1029, 0.0
      %v1628 = vmax.f32 %v1034, 0.0
      %v1629 = vmax.f32 %v1039, 0.0
      %v1630 = vmax.f32 %v1044, 0.0
      %v1631 = vmax.f32 %v1049, 0.0
      %v1632 = vmax.f32 %v1054, 0.0
      %v1633 = vmax.f32 %v1059, 0.0
      %v1634 = vmax.f32 %v1064, 0.0
      %v1635 = vmax.f32 %v1069, 0.0
      %v1636 = vmax.f32 %v1074, 0.0
      %v1637 = vmax.f32 %v1079, 0.0
      %v1638 = vmax.f32 %v1084, 0.0
      %v1639 = vmax.f32 %v1089, 0.0
      %v1640 = vmax.f32 %v1094, 0.0
      %v1641 = vmax.f32 %v1099, 0.0
      %v1642 = vmax.f32 %v1104, 0.0
      %v1643 = vmax.f32 %v1109, 0.0
      %v1644 = vmax.f32 %v1114, 0.0
      %v1645 = vmax.f32 %v1119, 0.0
      %v1646 = vmax.f32 %v1124, 0.0
      %v1647 = vmax.f32 %v1129, 0.0
      %v1648 = vmax.f32 %v1134, 0.0
      %v1649 = vmax.f32 %v1139, 0.0
      %v1650 = vmax.f32 %v1144, 0.0
      %v1651 = vmax.f32 %v1149, 0.0
      %v1652 = vmax.f32 %v1154, 0.0
      %v1653 = vmax.f32 %v1159, 0.0
      %v1654 = vmax.f32 %v1164, 0.0
      %v1655 = vmax.f32 %v1169, 0.0
      %v1656 = vmax.f32 %v1174, 0.0
      %v1657 = vmax.f32 %v1179, 0.0
      %v1658 = vmax.f32 %v1184, 0.0
      %v1659 = vmax.f32 %v1189, 0.0
      %v1660 = vmax.f32 %v1194, 0.0
      %v1661 = vmax.f32 %v1199, 0.0
      %v1662 = vmax.f32 %v1204, 0.0
      %v1663 = vmax.f32 %v1209, 0.0
      %v1664 = vmax.f32 %v1214, 0.0
      %v1665 = vmax.f32 %v1219, 0.0
      %v1666 = vmax.f32 %v1224, 0.0
      %v1667 = vmax.f32 %v1229, 0.0
      %v1668 = vmax.f32 %v1234, 0.0
      %v1669 = vmax.f32 %v1239, 0.0
      %v1670 = vmax.f32 %v1244, 0.0
      %v1671 = vmax.f32 %v1249, 0.0
      %v1672 = vmax.f32 %v1254, 0.0
      %v1673 = vmax.f32 %v1259, 0.0
      %v1674 = vmax.f32 %v1264, 0.0
      %v1675 = vmax.f32 %v1269, 0.0
      %v1676 = vmax.f32 %v1274, 0.0
      %v1677 = vmax.f32 %v1279, 0.0
      %v1678 = vmax.f32 %v1284, 0.0
      %v1679 = vmax.f32 %v1289, 0.0
      %v1680 = vmax.f32 %v1294, 0.0
      %v1681 = vmax.f32 %v1299, 0.0
      %v1682 = vmax.f32 %v1304, 0.0
      %v1683 = vmax.f32 %v1309, 0.0
      %v1684 = vmax.f32 %v1314, 0.0
      %v1685 = vmax.f32 %v1319, 0.0
      %v1686 = vmax.f32 %v1324, 0.0
      %v1687 = vmax.f32 %v1329, 0.0
      %v1688 = vmax.f32 %v1334, 0.0
      %v1689 = vmax.f32 %v1339, 0.0
      %v1690 = vmax.f32 %v1344, 0.0
      %v1691 = vmax.f32 %v1349, 0.0
      %v1692 = vmax.f32 %v1354, 0.0
      %v1693 = vmax.f32 %v1359, 0.0
      %v1694 = vmax.f32 %v1364, 0.0
      %v1695 = vmax.f32 %v1369, 0.0
      %v1696 = vmax.f32 %v1374, 0.0
      %v1697 = vmax.f32 %v1379, 0.0
      %v1698 = vmax.f32 %v1384, 0.0
      %v1699 = vmax.f32 %v1389, 0.0
      %v1700 = vmax.f32 %v1394, 0.0
      %v1701 = vmax.f32 %v1399, 0.0
      %v1702 = vmax.f32 %v1404, 0.0
      %v1703 = vmax.f32 %v1409, 0.0
      %v1704 = vmax.f32 %v1414, 0.0
      %v1705 = vmax.f32 %v1419, 0.0
      %v1706 = vmax.f32 %v1424, 0.0
      %v1707 = vmax.f32 %v1429, 0.0
      %v1708 = vmax.f32 %v1434, 0.0
      %v1709 = vmax.f32 %v1439, 0.0
      %v1710 = vmax.f32 %v1444, 0.0
      %v1711 = vmax.f32 %v1449, 0.0
      %v1712 = vmax.f32 %v1454, 0.0
      %v1713 = vmax.f32 %v1459, 0.0
      %v1714 = vmax.f32 %v1464, 0.0
      %v1715 = vmax.f32 %v1469, 0.0
      %v1716 = vmax.f32 %v1474, 0.0
      %v1717 = vmax.f32 %v1479, 0.0
      %v1718 = vmax.f32 %v1484, 0.0
      %v1719 = vmax.f32 %v1489, 0.0
      %v1720 = vmax.f32 %v1494, 0.0
      %v1721 = vmax.f32 %v1499, 0.0
      %v1722 = vmax.f32 %v1504, 0.0
      %v1723 = vmax.f32 %v1509, 0.0
      %v1724 = vmax.f32 %v1514, 0.0
      %v1725 = vmax.f32 %v1519, 0.0
      %v1726 = vmax.f32 %v1524, 0.0
      %v1727 = vmax.f32 %v1529, 0.0
      %v1728 = vmax.f32 %v1534, 0.0
      %v1729 = vmax.f32 %v1539, 0.0
      %v1730 = vmax.f32 %v1544, 0.0
      %v1731 = vmax.f32 %v1549, 0.0
      %v1732 = vmax.f32 %v1554, 0.0
      %v1733 = vmax.f32 %v1559, 0.0
      %v1734 = vmax.f32 %v1564, 0.0
      %v1735 = vmax.f32 %v1569, 0.0
      %v1736 = vmax.f32 %v1574, 0.0
      %v1737 = vmax.f32 %v1579, 0.0
      %v1738 = vmax.f32 %v1584, 0.0
      %v1739 = vmax.f32 %v1589, 0.0
      %v1740 = vmax.f32 %v1594, 0.0
      %v1741 = vmax.f32 %v1599, 0.0
      %v1742 = vmax.f32 %v1604, 0.0
      %v1743 = vmax.f32 %v1609, 0.0
      %v1744 = vmax.f32 %v1614, 0.0
      %v1745 = vmin.f32 %v1617, 6.0
      %v1746 = vmin.f32 %v1618, 6.0
      %v1747 = vmin.f32 %v1619, 6.0
      %v1748 = vmin.f32 %v1620, 6.0
      %v1749 = vmin.f32 %v1621, 6.0
      %v1750 = vmin.f32 %v1622, 6.0
      %v1751 = vmin.f32 %v1623, 6.0
      %v1752 = vmin.f32 %v1624, 6.0
      %v1753 = vmin.f32 %v1625, 6.0
      %v1754 = vmin.f32 %v1626, 6.0
      %v1755 = vmin.f32 %v1627, 6.0
      %v1756 = vmin.f32 %v1628, 6.0
      %v1757 = vmin.f32 %v1629, 6.0
      %v1758 = vmin.f32 %v1630, 6.0
      %v1759 = vmin.f32 %v1631, 6.0
      %v1760 = vmin.f32 %v1632, 6.0
      %v1761 = vmin.f32 %v1633, 6.0
      %v1762 = vmin.f32 %v1634, 6.0
      %v1763 = vmin.f32 %v1635, 6.0
      %v1764 = vmin.f32 %v1636, 6.0
      %v1765 = vmin.f32 %v1637, 6.0
      %v1766 = vmin.f32 %v1638, 6.0
      %v1767 = vmin.f32 %v1639, 6.0
      %v1768 = vmin.f32 %v1640, 6.0
      %v1769 = vmin.f32 %v1641, 6.0
      %v1770 = vmin.f32 %v1642, 6.0
      %v1771 = vmin.f32 %v1643, 6.0
      %v1772 = vmin.f32 %v1644, 6.0
      %v1773 = vmin.f32 %v1645, 6.0
      %v1774 = vmin.f32 %v1646, 6.0
      %v1775 = vmin.f32 %v1647, 6.0
      %v1776 = vmin.f32 %v1648, 6.0
      %v1777 = vmin.f32 %v1649, 6.0
      %v1778 = vmin.f32 %v1650, 6.0
      %v1779 = vmin.f32 %v1651, 6.0
      %v1780 = vmin.f32 %v1652, 6.0
      %v1781 = vmin.f32 %v1653, 6.0
      %v1782 = vmin.f32 %v1654, 6.0
      %v1783 = vmin.f32 %v1655, 6.0
      %v1784 = vmin.f32 %v1656, 6.0
      %v1785 = vmin.f32 %v1657, 6.0
      %v1786 = vmin.f32 %v1658, 6.0
      %v1787 = vmin.f32 %v1659, 6.0
      %v1788 = vmin.f32 %v1660, 6.0
      %v1789 = vmin.f32 %v1661, 6.0
      %v1790 = vmin.f32 %v1662, 6.0
      %v1791 = vmin.f32 %v1663, 6.0
      %v1792 = vmin.f32 %v1664, 6.0
      %v1793 = vmin.f32 %v1665, 6.0
      %v1794 = vmin.f32 %v1666, 6.0
      %v1795 = vmin.f32 %v1667, 6.0
      %v1796 = vmin.f32 %v1668, 6.0
      %v1797 = vmin.f32 %v1669, 6.0
      %v1798 = vmin.f32 %v1670, 6.0
      %v1799 = vmin.f32 %v1671, 6.0
      %v1800 = vmin.f32 %v1672, 6.0
      %v1801 = vmin.f32 %v1673, 6.0
      %v1802 = vmin.f32 %v1674, 6.0
      %v1803 = vmin.f32 %v1675, 6.0
      %v1804 = vmin.f32 %v1676, 6.0
      %v1805 = vmin.f32 %v1677, 6.0
      %v1806 = vmin.f32 %v1678, 6.0
      %v1807 = vmin.f32 %v1679, 6.0
      %v1808 = vmin.f32 %v1680, 6.0
      %v1809 = vmin.f32 %v1681, 6.0
      %v1810 = vmin.f32 %v1682, 6.0
      %v1811 = vmin.f32 %v1683, 6.0
      %v1812 = vmin.f32 %v1684, 6.0
      %v1813 = vmin.f32 %v1685, 6.0
      %v1814 = vmin.f32 %v1686, 6.0
      %v1815 = vmin.f32 %v1687, 6.0
      %v1816 = vmin.f32 %v1688, 6.0
      %v1817 = vmin.f32 %v1689, 6.0
      %v1818 = vmin.f32 %v1690, 6.0
      %v1819 = vmin.f32 %v1691, 6.0
      %v1820 = vmin.f32 %v1692, 6.0
      %v1821 = vmin.f32 %v1693, 6.0
      %v1822 = vmin.f32 %v1694, 6.0
      %v1823 = vmin.f32 %v1695, 6.0
      %v1824 = vmin.f32 %v1696, 6.0
      %v1825 = vmin.f32 %v1697, 6.0
      %v1826 = vmin.f32 %v1698, 6.0
      %v1827 = vmin.f32 %v1699, 6.0
      %v1828 = vmin.f32 %v1700, 6.0
      %v1829 = vmin.f32 %v1701, 6.0
      %v1830 = vmin.f32 %v1702, 6.0
      %v1831 = vmin.f32 %v1703, 6.0
      %v1832 = vmin.f32 %v1704, 6.0
      %v1833 = vmin.f32 %v1705, 6.0
      %v1834 = vmin.f32 %v1706, 6.0
      %v1835 = vmin.f32 %v1707, 6.0
      %v1836 = vmin.f32 %v1708, 6.0
      %v1837 = vmin.f32 %v1709, 6.0
      %v1838 = vmin.f32 %v1710, 6.0
      %v1839 = vmin.f32 %v1711, 6.0
      %v1840 = vmin.f32 %v1712, 6.0
      %v1841 = vmin.f32 %v1713, 6.0
      %v1842 = vmin.f32 %v1714, 6.0
      %v1843 = vmin.f32 %v1715, 6.0
      %v1844 = vmin.f32 %v1716, 6.0
      %v1845 = vmin.f32 %v1717, 6.0
      %v1846 = vmin.f32 %v1718, 6.0
      %v1847 = vmin.f32 %v1719, 6.0
      %v1848 = vmin.f32 %v1720, 6.0
      %v1849 = vmin.f32 %v1721, 6.0
      %v1850 = vmin.f32 %v1722, 6.0
      %v1851 = vmin.f32 %v1723, 6.0
      %v1852 = vmin.f32 %v1724, 6.0
      %v1853 = vmin.f32 %v1725, 6.0
      %v1854 = vmin.f32 %v1726, 6.0
      %v1855 = vmin.f32 %v1727, 6.0
      %v1856 = vmin.f32 %v1728, 6.0
      %v1857 = vmin.f32 %v1729, 6.0
      %v1858 = vmin.f32 %v1730, 6.0
      %v1859 = vmin.f32 %v1731, 6.0
      %v1860 = vmin.f32 %v1732, 6.0
      %v1861 = vmin.f32 %v1733, 6.0
      %v1862 = vmin.f32 %v1734, 6.0
      %v1863 = vmin.f32 %v1735, 6.0
      %v1864 = vmin.f32 %v1736, 6.0
      %v1865 = vmin.f32 %v1737, 6.0
      %v1866 = vmin.f32 %v1738, 6.0
      %v1867 = vmin.f32 %v1739, 6.0
      %v1868 = vmin.f32 %v1740, 6.0
      %v1869 = vmin.f32 %v1741, 6.0
      %v1870 = vmin.f32 %v1742, 6.0
      %v1871 = vmin.f32 %v1743, 6.0
      %v1872 = vmin.f32 %v1744, 6.0
      %v1873 = vsel %vm527, %v1745, 0.0
      %v1874 = vsel %vm527, %v1746, 0.0
      %v1875 = vadd.f32 %v1873, %v1874
      %v1876 = vsel %vm527, %v1747, 0.0
      %v1877 = vadd.f32 %v1875, %v1876
      %v1878 = vsel %vm527, %v1748, 0.0
      %v1879 = vadd.f32 %v1877, %v1878
      %v1880 = vsel %vm527, %v1749, 0.0
      %v1881 = vadd.f32 %v1879, %v1880
      %v1882 = vsel %vm527, %v1750, 0.0
      %v1883 = vadd.f32 %v1881, %v1882
      %v1884 = vsel %vm527, %v1751, 0.0
      %v1885 = vadd.f32 %v1883, %v1884
      %v1886 = vsel %vm527, %v1752, 0.0
      %v1887 = vadd.f32 %v1885, %v1886
      %v1888 = vsel %vm527, %v1753, 0.0
      %v1889 = vadd.f32 %v1887, %v1888
      %v1890 = vsel %vm527, %v1754, 0.0
      %v1891 = vadd.f32 %v1889, %v1890
      %v1892 = vsel %vm527, %v1755, 0.0
      %v1893 = vadd.f32 %v1891, %v1892
      %v1894 = vsel %vm527, %v1756, 0.0
      %v1895 = vadd.f32 %v1893, %v1894
      %v1896 = vsel %vm527, %v1757, 0.0
      %v1897 = vadd.f32 %v1895, %v1896
      %v1898 = vsel %vm527, %v1758, 0.0
      %v1899 = vadd.f32 %v1897, %v1898
      %v1900 = vsel %vm527, %v1759, 0.0
      %v1901 = vadd.f32 %v1899, %v1900
      %v1902 = vsel %vm527, %v1760, 0.0
      %v1903 = vadd.f32 %v1901, %v1902
      %v1904 = vsel %vm527, %v1761, 0.0
      %v1905 = vadd.f32 %v1903, %v1904
      %v1906 = vsel %vm527, %v1762, 0.0
      %v1907 = vadd.f32 %v1905, %v1906
      %v1908 = vsel %vm527, %v1763, 0.0
      %v1909 = vadd.f32 %v1907, %v1908
      %v1910 = vsel %vm527, %v1764, 0.0
      %v1911 = vadd.f32 %v1909, %v1910
      %v1912 = vsel %vm527, %v1765, 0.0
      %v1913 = vadd.f32 %v1911, %v1912
      %v1914 = vsel %vm527, %v1766, 0.0
      %v1915 = vadd.f32 %v1913, %v1914
      %v1916 = vsel %vm527, %v1767, 0.0
      %v1917 = vadd.f32 %v1915, %v1916
      %v1918 = vsel %vm527, %v1768, 0.0
      %v1919 = vadd.f32 %v1917, %v1918
      %v1920 = vsel %vm527, %v1769, 0.0
      %v1921 = vadd.f32 %v1919, %v1920
      %v1922 = vsel %vm527, %v1770, 0.0
      %v1923 = vadd.f32 %v1921, %v1922
      %v1924 = vsel %vm527, %v1771, 0.0
      %v1925 = vadd.f32 %v1923, %v1924
      %v1926 = vsel %vm527, %v1772, 0.0
      %v1927 = vadd.f32 %v1925, %v1926
      %v1928 = vsel %vm527, %v1773, 0.0
      %v1929 = vadd.f32 %v1927, %v1928
      %v1930 = vsel %vm527, %v1774, 0.0
      %v1931 = vadd.f32 %v1929, %v1930
      %v1932 = vsel %vm527, %v1775, 0.0
      %v1933 = vadd.f32 %v1931, %v1932
      %v1934 = vsel %vm527, %v1776, 0.0
      %v1935 = vadd.f32 %v1933, %v1934
      %v1936 = vrot.slane %v1935, 4
      %v1937 = vadd.f32 %v1935, %v1936
      %v1938 = vrot.slane %v1937, 2
      %v1939 = vadd.f32 %v1937, %v1938
      %v1940 = vrot.slane %v1939, 1
      %v1941 = vadd.f32 %v1939, %v1940
      %v1942 = vsel %vm527, %v1777, 0.0
      %v1943 = vsel %vm527, %v1778, 0.0
      %v1944 = vadd.f32 %v1942, %v1943
      %v1945 = vsel %vm527, %v1779, 0.0
      %v1946 = vadd.f32 %v1944, %v1945
      %v1947 = vsel %vm527, %v1780, 0.0
      %v1948 = vadd.f32 %v1946, %v1947
      %v1949 = vsel %vm527, %v1781, 0.0
      %v1950 = vadd.f32 %v1948, %v1949
      %v1951 = vsel %vm527, %v1782, 0.0
      %v1952 = vadd.f32 %v1950, %v1951
      %v1953 = vsel %vm527, %v1783, 0.0
      %v1954 = vadd.f32 %v1952, %v1953
      %v1955 = vsel %vm527, %v1784, 0.0
      %v1956 = vadd.f32 %v1954, %v1955
      %v1957 = vsel %vm527, %v1785, 0.0
      %v1958 = vadd.f32 %v1956, %v1957
      %v1959 = vsel %vm527, %v1786, 0.0
      %v1960 = vadd.f32 %v1958, %v1959
      %v1961 = vsel %vm527, %v1787, 0.0
      %v1962 = vadd.f32 %v1960, %v1961
      %v1963 = vsel %vm527, %v1788, 0.0
      %v1964 = vadd.f32 %v1962, %v1963
      %v1965 = vsel %vm527, %v1789, 0.0
      %v1966 = vadd.f32 %v1964, %v1965
      %v1967 = vsel %vm527, %v1790, 0.0
      %v1968 = vadd.f32 %v1966, %v1967
      %v1969 = vsel %vm527, %v1791, 0.0
      %v1970 = vadd.f32 %v1968, %v1969
      %v1971 = vsel %vm527, %v1792, 0.0
      %v1972 = vadd.f32 %v1970, %v1971
      %v1973 = vsel %vm527, %v1793, 0.0
      %v1974 = vadd.f32 %v1972, %v1973
      %v1975 = vsel %vm527, %v1794, 0.0
      %v1976 = vadd.f32 %v1974, %v1975
      %v1977 = vsel %vm527, %v1795, 0.0
      %v1978 = vadd.f32 %v1976, %v1977
      %v1979 = vsel %vm527, %v1796, 0.0
      %v1980 = vadd.f32 %v1978, %v1979
      %v1981 = vsel %vm527, %v1797, 0.0
      %v1982 = vadd.f32 %v1980, %v1981
      %v1983 = vsel %vm527, %v1798, 0.0
      %v1984 = vadd.f32 %v1982, %v1983
      %v1985 = vsel %vm527, %v1799, 0.0
      %v1986 = vadd.f32 %v1984, %v1985
      %v1987 = vsel %vm527, %v1800, 0.0
      %v1988 = vadd.f32 %v1986, %v1987
      %v1989 = vsel %vm527, %v1801, 0.0
      %v1990 = vadd.f32 %v1988, %v1989
      %v1991 = vsel %vm527, %v1802, 0.0
      %v1992 = vadd.f32 %v1990, %v1991
      %v1993 = vsel %vm527, %v1803, 0.0
      %v1994 = vadd.f32 %v1992, %v1993
      %v1995 = vsel %vm527, %v1804, 0.0
      %v1996 = vadd.f32 %v1994, %v1995
      %v1997 = vsel %vm527, %v1805, 0.0
      %v1998 = vadd.f32 %v1996, %v1997
      %v1999 = vsel %vm527, %v1806, 0.0
      %v2000 = vadd.f32 %v1998, %v1999
      %v2001 = vsel %vm527, %v1807, 0.0
      %v2002 = vadd.f32 %v2000, %v2001
      %v2003 = vsel %vm527, %v1808, 0.0
      %v2004 = vadd.f32 %v2002, %v2003
      %v2005 = vrot.slane %v2004, 4
      %v2006 = vadd.f32 %v2004, %v2005
      %v2007 = vrot.slane %v2006, 2
      %v2008 = vadd.f32 %v2006, %v2007
      %v2009 = vrot.slane %v2008, 1
      %v2010 = vadd.f32 %v2008, %v2009
      %v2011 = vsel %vm527, %v1809, 0.0
      %v2012 = vsel %vm527, %v1810, 0.0
      %v2013 = vadd.f32 %v2011, %v2012
      %v2014 = vsel %vm527, %v1811, 0.0
      %v2015 = vadd.f32 %v2013, %v2014
      %v2016 = vsel %vm527, %v1812, 0.0
      %v2017 = vadd.f32 %v2015, %v2016
      %v2018 = vsel %vm527, %v1813, 0.0
      %v2019 = vadd.f32 %v2017, %v2018
      %v2020 = vsel %vm527, %v1814, 0.0
      %v2021 = vadd.f32 %v2019, %v2020
      %v2022 = vsel %vm527, %v1815, 0.0
      %v2023 = vadd.f32 %v2021, %v2022
      %v2024 = vsel %vm527, %v1816, 0.0
      %v2025 = vadd.f32 %v2023, %v2024
      %v2026 = vsel %vm527, %v1817, 0.0
      %v2027 = vadd.f32 %v2025, %v2026
      %v2028 = vsel %vm527, %v1818, 0.0
      %v2029 = vadd.f32 %v2027, %v2028
      %v2030 = vsel %vm527, %v1819, 0.0
      %v2031 = vadd.f32 %v2029, %v2030
      %v2032 = vsel %vm527, %v1820, 0.0
      %v2033 = vadd.f32 %v2031, %v2032
      %v2034 = vsel %vm527, %v1821, 0.0
      %v2035 = vadd.f32 %v2033, %v2034
      %v2036 = vsel %vm527, %v1822, 0.0
      %v2037 = vadd.f32 %v2035, %v2036
      %v2038 = vsel %vm527, %v1823, 0.0
      %v2039 = vadd.f32 %v2037, %v2038
      %v2040 = vsel %vm527, %v1824, 0.0
      %v2041 = vadd.f32 %v2039, %v2040
      %v2042 = vsel %vm527, %v1825, 0.0
      %v2043 = vadd.f32 %v2041, %v2042
      %v2044 = vsel %vm527, %v1826, 0.0
      %v2045 = vadd.f32 %v2043, %v2044
      %v2046 = vsel %vm527, %v1827, 0.0
      %v2047 = vadd.f32 %v2045, %v2046
      %v2048 = vsel %vm527, %v1828, 0.0
      %v2049 = vadd.f32 %v2047, %v2048
      %v2050 = vsel %vm527, %v1829, 0.0
      %v2051 = vadd.f32 %v2049, %v2050
      %v2052 = vsel %vm527, %v1830, 0.0
      %v2053 = vadd.f32 %v2051, %v2052
      %v2054 = vsel %vm527, %v1831, 0.0
      %v2055 = vadd.f32 %v2053, %v2054
      %v2056 = vsel %vm527, %v1832, 0.0
      %v2057 = vadd.f32 %v2055, %v2056
      %v2058 = vsel %vm527, %v1833, 0.0
      %v2059 = vadd.f32 %v2057, %v2058
      %v2060 = vsel %vm527, %v1834, 0.0
      %v2061 = vadd.f32 %v2059, %v2060
      %v2062 = vsel %vm527, %v1835, 0.0
      %v2063 = vadd.f32 %v2061, %v2062
      %v2064 = vsel %vm527, %v1836, 0.0
      %v2065 = vadd.f32 %v2063, %v2064
      %v2066 = vsel %vm527, %v1837, 0.0
      %v2067 = vadd.f32 %v2065, %v2066
      %v2068 = vsel %vm527, %v1838, 0.0
      %v2069 = vadd.f32 %v2067, %v2068
      %v2070 = vsel %vm527, %v1839, 0.0
      %v2071 = vadd.f32 %v2069, %v2070
      %v2072 = vsel %vm527, %v1840, 0.0
      %v2073 = vadd.f32 %v2071, %v2072
      %v2074 = vrot.slane %v2073, 4
      %v2075 = vadd.f32 %v2073, %v2074
      %v2076 = vrot.slane %v2075, 2
      %v2077 = vadd.f32 %v2075, %v2076
      %v2078 = vrot.slane %v2077, 1
      %v2079 = vadd.f32 %v2077, %v2078
      %v2080 = vsel %vm527, %v1841, 0.0
      %v2081 = vsel %vm527, %v1842, 0.0
      %v2082 = vadd.f32 %v2080, %v2081
      %v2083 = vsel %vm527, %v1843, 0.0
      %v2084 = vadd.f32 %v2082, %v2083
      %v2085 = vsel %vm527, %v1844, 0.0
      %v2086 = vadd.f32 %v2084, %v2085
      %v2087 = vsel %vm527, %v1845, 0.0
      %v2088 = vadd.f32 %v2086, %v2087
      %v2089 = vsel %vm527, %v1846, 0.0
      %v2090 = vadd.f32 %v2088, %v2089
      %v2091 = vsel %vm527, %v1847, 0.0
      %v2092 = vadd.f32 %v2090, %v2091
      %v2093 = vsel %vm527, %v1848, 0.0
      %v2094 = vadd.f32 %v2092, %v2093
      %v2095 = vsel %vm527, %v1849, 0.0
      %v2096 = vadd.f32 %v2094, %v2095
      %v2097 = vsel %vm527, %v1850, 0.0
      %v2098 = vadd.f32 %v2096, %v2097
      %v2099 = vsel %vm527, %v1851, 0.0
      %v2100 = vadd.f32 %v2098, %v2099
      %v2101 = vsel %vm527, %v1852, 0.0
      %v2102 = vadd.f32 %v2100, %v2101
      %v2103 = vsel %vm527, %v1853, 0.0
      %v2104 = vadd.f32 %v2102, %v2103
      %v2105 = vsel %vm527, %v1854, 0.0
      %v2106 = vadd.f32 %v2104, %v2105
      %v2107 = vsel %vm527, %v1855, 0.0
      %v2108 = vadd.f32 %v2106, %v2107
      %v2109 = vsel %vm527, %v1856, 0.0
      %v2110 = vadd.f32 %v2108, %v2109
      %v2111 = vsel %vm527, %v1857, 0.0
      %v2112 = vadd.f32 %v2110, %v2111
      %v2113 = vsel %vm527, %v1858, 0.0
      %v2114 = vadd.f32 %v2112, %v2113
      %v2115 = vsel %vm527, %v1859, 0.0
      %v2116 = vadd.f32 %v2114, %v2115
      %v2117 = vsel %vm527, %v1860, 0.0
      %v2118 = vadd.f32 %v2116, %v2117
      %v2119 = vsel %vm527, %v1861, 0.0
      %v2120 = vadd.f32 %v2118, %v2119
      %v2121 = vsel %vm527, %v1862, 0.0
      %v2122 = vadd.f32 %v2120, %v2121
      %v2123 = vsel %vm527, %v1863, 0.0
      %v2124 = vadd.f32 %v2122, %v2123
      %v2125 = vsel %vm527, %v1864, 0.0
      %v2126 = vadd.f32 %v2124, %v2125
      %v2127 = vsel %vm527, %v1865, 0.0
      %v2128 = vadd.f32 %v2126, %v2127
      %v2129 = vsel %vm527, %v1866, 0.0
      %v2130 = vadd.f32 %v2128, %v2129
      %v2131 = vsel %vm527, %v1867, 0.0
      %v2132 = vadd.f32 %v2130, %v2131
      %v2133 = vsel %vm527, %v1868, 0.0
      %v2134 = vadd.f32 %v2132, %v2133
      %v2135 = vsel %vm527, %v1869, 0.0
      %v2136 = vadd.f32 %v2134, %v2135
      %v2137 = vsel %vm527, %v1870, 0.0
      %v2138 = vadd.f32 %v2136, %v2137
      %v2139 = vsel %vm527, %v1871, 0.0
      %v2140 = vadd.f32 %v2138, %v2139
      %v2141 = vsel %vm527, %v1872, 0.0
      %v2142 = vadd.f32 %v2140, %v2141
      %v2143 = vrot.slane %v2142, 4
      %v2144 = vadd.f32 %v2142, %v2143
      %v2145 = vrot.slane %v2144, 2
      %v2146 = vadd.f32 %v2144, %v2145
      %v2147 = vrot.slane %v2146, 1
      %v2148 = vadd.f32 %v2146, %v2147
      %v2149 = vrcp.pop 256.0
      %v2150 = vmul.f32 %v1941, %v2149
      %v2151 = vmul.f32 %v2010, %v2149
      %v2152 = vmul.f32 %v2079, %v2149
      %v2153 = vmul.f32 %v2148, %v2149
      %v2154 = vpack.c.bf16 %v2150, %v2150
      %v2155 = vpack.c.bf16 %v2151, %v2151
      %v2156 = vpack.c.bf16 %v2152, %v2152
      %v2157 = vpack.c.bf16 %v2153, %v2153
      %v2158 = vld [vmem:[%s3] sm:$0xff]
      %v2159 = vld [vmem:[%s3 + $0x8] sm:$0xff]
      %v2160 = vld [vmem:[%s3 + $0x10] sm:$0xff]
      %v2161 = vld [vmem:[%s3 + $0x18] sm:$0xff]
      %v2162 = vld [vmem:[%s3 + $0x20] sm:$0xff]
      %v2163 = vld [vmem:[%s3 + $0x28] sm:$0xff]
      %v2164 = vld [vmem:[%s3 + $0x30] sm:$0xff]
      %v2165 = vld [vmem:[%s3 + $0x38] sm:$0xff]
      %v2166 = vld [vmem:[%s3 + $0x40] sm:$0xff]
      %v2167 = vld [vmem:[%s3 + $0x48] sm:$0xff]
      %v2168 = vld [vmem:[%s3 + $0x50] sm:$0xff]
      %v2169 = vld [vmem:[%s3 + $0x58] sm:$0xff]
      %v2170 = vld [vmem:[%s3 + $0x60] sm:$0xff]
      %v2171 = vld [vmem:[%s3 + $0x68] sm:$0xff]
      %v2172 = vld [vmem:[%s3 + $0x70] sm:$0xff]
      %v2173 = vld [vmem:[%s3 + $0x78] sm:$0xff]
      %v2174 = vld [vmem:[%s4] sm:$0xff]
      %v2176 = vlaneseq
      %v2177 = vshrl.u32 %v2176, 7
      %v2178 = vsub.s32 0, %v2177
      %v2179 = vrot.slane %v2174, %v2178
      %v2180 = vlaneseq
      %v2181 = vshrl.u32 %v2180, 7
      %v2182 = vsub.s32 1, %v2181
      %v2183 = vrot.slane %v2174, %v2182
      %v2184 = vlaneseq
      %v2185 = vshrl.u32 %v2184, 7
      %v2186 = vsub.s32 2, %v2185
      %v2187 = vrot.slane %v2174, %v2186
      %v2188 = vlaneseq
      %v2189 = vshrl.u32 %v2188, 7
      %v2190 = vsub.s32 3, %v2189
      %v2191 = vrot.slane %v2174, %v2190
      %v2192 = vlaneseq
      %v2193 = vshrl.u32 %v2192, 7
      %v2194 = vsub.s32 4, %v2193
      %v2195 = vrot.slane %v2174, %v2194
      %v2196 = vlaneseq
      %v2197 = vshrl.u32 %v2196, 7
      %v2198 = vsub.s32 5, %v2197
      %v2199 = vrot.slane %v2174, %v2198
      %v2200 = vlaneseq
      %v2201 = vshrl.u32 %v2200, 7
      %v2202 = vsub.s32 6, %v2201
      %v2203 = vrot.slane %v2174, %v2202
      %v2204 = vlaneseq
      %v2205 = vshrl.u32 %v2204, 7
      %v2206 = vsub.s32 7, %v2205
      %v2207 = vrot.slane %v2174, %v2206
      %v2220 = vunpack.c.l.b16 %v2154
      %v2221 = vunpack.c.l.b16 %v2155
      %v2222 = vunpack.c.l.b16 %v2156
      %v2223 = vunpack.c.l.b16 %v2157
      %vm2224 = vcmask 1041409
      %v2225 = vsel %vm2224, %v2221, %v2220
      %vm2226 = vcmask 1042434
      %v2227 = vsel %vm2226, %v2222, %v2225
      %vm2228 = vcmask 1043459
      %v2229 = vsel %vm2228, %v2223, %v2227
      %v2230 = vpack.c.b16 %v2229, %v2229
      %v2247 = vunpack.c.l.b16 %v2158
      %v2248 = vunpack.c.h.b16 %v2158
      %v2249 = vunpack.c.l.b16 %v2159
      %v2250 = vunpack.c.h.b16 %v2159
      %v2251 = vunpack.c.l.b16 %v2160
      %v2252 = vunpack.c.h.b16 %v2160
      %v2253 = vunpack.c.l.b16 %v2161
      %v2254 = vunpack.c.h.b16 %v2161
      %v2255 = vunpack.c.l.b16 %v2162
      %v2256 = vunpack.c.h.b16 %v2162
      %v2257 = vunpack.c.l.b16 %v2163
      %v2258 = vunpack.c.h.b16 %v2163
      %v2259 = vunpack.c.l.b16 %v2164
      %v2260 = vunpack.c.h.b16 %v2164
      %v2261 = vunpack.c.l.b16 %v2165
      %v2262 = vunpack.c.h.b16 %v2165
      %v2263 = vunpack.c.l.b16 %v2166
      %v2264 = vunpack.c.h.b16 %v2166
      %v2265 = vunpack.c.l.b16 %v2167
      %v2266 = vunpack.c.h.b16 %v2167
      %v2267 = vunpack.c.l.b16 %v2168
      %v2268 = vunpack.c.h.b16 %v2168
      %v2269 = vunpack.c.l.b16 %v2169
      %v2270 = vunpack.c.h.b16 %v2169
      %v2271 = vunpack.c.l.b16 %v2170
      %v2272 = vunpack.c.h.b16 %v2170
      %v2273 = vunpack.c.l.b16 %v2171
      %v2274 = vunpack.c.h.b16 %v2171
      %v2275 = vunpack.c.l.b16 %v2172
      %v2276 = vunpack.c.h.b16 %v2172
      %v2277 = vunpack.c.l.b16 %v2173
      %v2278 = vunpack.c.h.b16 %v2173
      %v2279 = vpack.c.b16 %v2255, %v2247
      %v2280 = vpack.c.b16 %v2256, %v2248
      %v2281 = vpack.c.b16 %v2257, %v2249
      %v2282 = vpack.c.b16 %v2258, %v2250
      %v2283 = vpack.c.b16 %v2259, %v2251
      %v2284 = vpack.c.b16 %v2260, %v2252
      %v2285 = vpack.c.b16 %v2261, %v2253
      %v2286 = vpack.c.b16 %v2262, %v2254
      %v2287 = vpack.c.b16 %v2271, %v2263
      %v2288 = vpack.c.b16 %v2272, %v2264
      %v2289 = vpack.c.b16 %v2273, %v2265
      %v2290 = vpack.c.b16 %v2274, %v2266
      %v2291 = vpack.c.b16 %v2275, %v2267
      %v2292 = vpack.c.b16 %v2276, %v2268
      %v2293 = vpack.c.b16 %v2277, %v2269
      %v2294 = vpack.c.b16 %v2278, %v2270
      %v2312 = vsel %vm527, %v2230, 0
      %2314 = vmatprep.subr.bf16.mxu0 %v2280
      %2315 = vmatpush1.bf16.msra.mxu0 %v2279
      %2316 = vmatprep.subr.bf16.mxu0 %v2288
      %2317 = vmatpush1.bf16.msra.mxu0 %v2287
      %2318 = vmatprep.subr.bf16.mxu0 0
      %2319 = vmatpush1.bf16.msra.mxu0 0
      %2320 = vmatprep.subr.bf16.mxu0 0
      %2321 = vmatpush1.bf16.msra.mxu0 0
      %2322 = vmatprep.subr.bf16.mxu0 0
      %2323 = vmatpush1.bf16.msra.mxu0 0
      %2324 = vmatprep.subr.bf16.mxu0 0
      %2325 = vmatpush1.bf16.msra.mxu0 0
      %2326 = vmatprep.subr.bf16.mxu0 0
      %2327 = vmatpush1.bf16.msra.mxu0 0
      %2328 = vmatprep.subr.bf16.mxu0 0
      %2329 = vmatpush1.bf16.msra.mxu0 0
      %2330 = vmatprep.subr.bf16.mxu0 0
      %2331 = vmatpush1.bf16.msra.mxu0 0
      %2332 = vmatprep.subr.bf16.mxu0 0
      %2333 = vmatpush1.bf16.msra.mxu0 0
      %2334 = vmatprep.subr.bf16.mxu0 0
      %2335 = vmatpush1.bf16.msra.mxu0 0
      %2336 = vmatprep.subr.bf16.mxu0 0
      %2337 = vmatpush1.bf16.msra.mxu0 0
      %2338 = vmatprep.subr.bf16.mxu0 0
      %2339 = vmatpush1.bf16.msra.mxu0 0
      %2340 = vmatprep.subr.bf16.mxu0 0
      %2341 = vmatpush1.bf16.msra.mxu0 0
      %2342 = vmatprep.subr.bf16.mxu0 0
      %2343 = vmatpush1.bf16.msra.mxu0 0
      %2344 = vmatprep.subr.bf16.mxu0 0
      %2345 = vmatpush1.bf16.msra.mxu0 0
      %2346 = vmatprep.mubr.bf16.mxu0 0
      %2347 = vmatmul.mubr.bf16.gmra.mrb[0].mxu0 %v2312
      %v2348 = vpop.f32.mrb[0].mxu0
      %v2349 = vadd.f32 %v2179, %v2348
      %v2350 = vpop.f32.mrb[0].mxu0
      %v2351 = vadd.f32 %v2183, %v2350
      %v2352 = vpop.f32.mrb[0].mxu0
      %v2353 = vpop.f32.mrb[0].mxu0
      %2354 = vdwg.mxu0
      %2355 = vmatprep.subr.bf16.mxu0 %v2282
      %2356 = vmatpush1.bf16.msra.mxu0 %v2281
      %2357 = vmatprep.subr.bf16.mxu0 %v2290
      %2358 = vmatpush1.bf16.msra.mxu0 %v2289
      %2359 = vmatprep.subr.bf16.mxu0 0
      %2360 = vmatpush1.bf16.msra.mxu0 0
      %2361 = vmatprep.subr.bf16.mxu0 0
      %2362 = vmatpush1.bf16.msra.mxu0 0
      %2363 = vmatprep.subr.bf16.mxu0 0
      %2364 = vmatpush1.bf16.msra.mxu0 0
      %2365 = vmatprep.subr.bf16.mxu0 0
      %2366 = vmatpush1.bf16.msra.mxu0 0
      %2367 = vmatprep.subr.bf16.mxu0 0
      %2368 = vmatpush1.bf16.msra.mxu0 0
      %2369 = vmatprep.subr.bf16.mxu0 0
      %2370 = vmatpush1.bf16.msra.mxu0 0
      %2371 = vmatprep.subr.bf16.mxu0 0
      %2372 = vmatpush1.bf16.msra.mxu0 0
      %2373 = vmatprep.subr.bf16.mxu0 0
      %2374 = vmatpush1.bf16.msra.mxu0 0
      %2375 = vmatprep.subr.bf16.mxu0 0
      %2376 = vmatpush1.bf16.msra.mxu0 0
      %2377 = vmatprep.subr.bf16.mxu0 0
      %2378 = vmatpush1.bf16.msra.mxu0 0
      %2379 = vmatprep.subr.bf16.mxu0 0
      %2380 = vmatpush1.bf16.msra.mxu0 0
      %2381 = vmatprep.subr.bf16.mxu0 0
      %2382 = vmatpush1.bf16.msra.mxu0 0
      %2383 = vmatprep.subr.bf16.mxu0 0
      %2384 = vmatpush1.bf16.msra.mxu0 0
      %2385 = vmatprep.subr.bf16.mxu0 0
      %2386 = vmatpush1.bf16.msra.mxu0 0
      %2387 = vmatprep.mubr.bf16.mxu0 0
      %2388 = vmatmul.mubr.bf16.gmra.mrb[0].mxu0 %v2312
      %v2389 = vpop.f32.mrb[0].mxu0
      %v2390 = vadd.f32 %v2187, %v2389
      %v2391 = vpop.f32.mrb[0].mxu0
      %v2392 = vadd.f32 %v2191, %v2391
      %v2393 = vpop.f32.mrb[0].mxu0
      %v2394 = vpop.f32.mrb[0].mxu0
      %2395 = vdwg.mxu0
      %2396 = vmatprep.subr.bf16.mxu0 %v2284
      %2397 = vmatpush1.bf16.msra.mxu0 %v2283
      %2398 = vmatprep.subr.bf16.mxu0 %v2292
      %2399 = vmatpush1.bf16.msra.mxu0 %v2291
      %2400 = vmatprep.subr.bf16.mxu0 0
      %2401 = vmatpush1.bf16.msra.mxu0 0
      %2402 = vmatprep.subr.bf16.mxu0 0
      %2403 = vmatpush1.bf16.msra.mxu0 0
      %2404 = vmatprep.subr.bf16.mxu0 0
      %2405 = vmatpush1.bf16.msra.mxu0 0
      %2406 = vmatprep.subr.bf16.mxu0 0
      %2407 = vmatpush1.bf16.msra.mxu0 0
      %2408 = vmatprep.subr.bf16.mxu0 0
      %2409 = vmatpush1.bf16.msra.mxu0 0
      %2410 = vmatprep.subr.bf16.mxu0 0
      %2411 = vmatpush1.bf16.msra.mxu0 0
      %2412 = vmatprep.subr.bf16.mxu0 0
      %2413 = vmatpush1.bf16.msra.mxu0 0
      %2414 = vmatprep.subr.bf16.mxu0 0
      %2415 = vmatpush1.bf16.msra.mxu0 0
      %2416 = vmatprep.subr.bf16.mxu0 0
      %2417 = vmatpush1.bf16.msra.mxu0 0
      %2418 = vmatprep.subr.bf16.mxu0 0
      %2419 = vmatpush1.bf16.msra.mxu0 0
      %2420 = vmatprep.subr.bf16.mxu0 0
      %2421 = vmatpush1.bf16.msra.mxu0 0
      %2422 = vmatprep.subr.bf16.mxu0 0
      %2423 = vmatpush1.bf16.msra.mxu0 0
      %2424 = vmatprep.subr.bf16.mxu0 0
      %2425 = vmatpush1.bf16.msra.mxu0 0
      %2426 = vmatprep.subr.bf16.mxu0 0
      %2427 = vmatpush1.bf16.msra.mxu0 0
      %2428 = vmatprep.mubr.bf16.mxu0 0
      %2429 = vmatmul.mubr.bf16.gmra.mrb[0].mxu0 %v2312
      %v2430 = vpop.f32.mrb[0].mxu0
      %v2431 = vadd.f32 %v2195, %v2430
      %v2432 = vpop.f32.mrb[0].mxu0
      %v2433 = vadd.f32 %v2199, %v2432
      %v2434 = vpop.f32.mrb[0].mxu0
      %v2435 = vpop.f32.mrb[0].mxu0
      %2436 = vdwg.mxu0
      %2437 = vmatprep.subr.bf16.mxu0 %v2286
      %2438 = vmatpush1.bf16.msra.mxu0 %v2285
      %2439 = vmatprep.subr.bf16.mxu0 %v2294
      %2440 = vmatpush1.bf16.msra.mxu0 %v2293
      %2441 = vmatprep.subr.bf16.mxu0 0
      %2442 = vmatpush1.bf16.msra.mxu0 0
      %2443 = vmatprep.subr.bf16.mxu0 0
      %2444 = vmatpush1.bf16.msra.mxu0 0
      %2445 = vmatprep.subr.bf16.mxu0 0
      %2446 = vmatpush1.bf16.msra.mxu0 0
      %2447 = vmatprep.subr.bf16.mxu0 0
      %2448 = vmatpush1.bf16.msra.mxu0 0
      %2449 = vmatprep.subr.bf16.mxu0 0
      %2450 = vmatpush1.bf16.msra.mxu0 0
      %2451 = vmatprep.subr.bf16.mxu0 0
      %2452 = vmatpush1.bf16.msra.mxu0 0
      %2453 = vmatprep.subr.bf16.mxu0 0
      %2454 = vmatpush1.bf16.msra.mxu0 0
      %2455 = vmatprep.subr.bf16.mxu0 0
      %2456 = vmatpush1.bf16.msra.mxu0 0
      %2457 = vmatprep.subr.bf16.mxu0 0
      %2458 = vmatpush1.bf16.msra.mxu0 0
      %2459 = vmatprep.subr.bf16.mxu0 0
      %2460 = vmatpush1.bf16.msra.mxu0 0
      %2461 = vmatprep.subr.bf16.mxu0 0
      %2462 = vmatpush1.bf16.msra.mxu0 0
      %2463 = vmatprep.subr.bf16.mxu0 0
      %2464 = vmatpush1.bf16.msra.mxu0 0
      %2465 = vmatprep.subr.bf16.mxu0 0
      %2466 = vmatpush1.bf16.msra.mxu0 0
      %2467 = vmatprep.subr.bf16.mxu0 0
      %2468 = vmatpush1.bf16.msra.mxu0 0
      %2469 = vmatprep.mubr.bf16.mxu0 0
      %2470 = vmatmul.mubr.bf16.gmra.mrb[0].mxu0 %v2312
      %v2471 = vpop.f32.mrb[0].mxu0
      %v2472 = vadd.f32 %v2203, %v2471
      %v2473 = vpop.f32.mrb[0].mxu0
      %v2474 = vadd.f32 %v2207, %v2473
      %v2475 = vpop.f32.mrb[0].mxu0
      %v2476 = vpop.f32.mrb[0].mxu0
      %2477 = vdwg.mxu0
      %v2478 = vmax.f32 %v2349, 0.0
      %v2479 = vmax.f32 %v2351, 0.0
      %v2480 = vmax.f32 %v2390, 0.0
      %v2481 = vmax.f32 %v2392, 0.0
      %v2482 = vmax.f32 %v2431, 0.0
      %v2483 = vmax.f32 %v2433, 0.0
      %v2484 = vmax.f32 %v2472, 0.0
      %v2485 = vmax.f32 %v2474, 0.0
      %v2486 = vpack.c.bf16 %v2478, %v2478
      %v2487 = vpack.c.bf16 %v2479, %v2479
      %v2488 = vpack.c.bf16 %v2480, %v2480
      %v2489 = vpack.c.bf16 %v2481, %v2481
      %v2490 = vpack.c.bf16 %v2482, %v2482
      %v2491 = vpack.c.bf16 %v2483, %v2483
      %v2492 = vpack.c.bf16 %v2484, %v2484
      %v2493 = vpack.c.bf16 %v2485, %v2485
      %v2494 = vld [vmem:[%s5] sm:$0xff]
      %v2495 = vld [vmem:[%s5 + $0x8] sm:$0xff]
      %v2496 = vld [vmem:[%s5 + $0x10] sm:$0xff]
      %v2497 = vld [vmem:[%s5 + $0x18] sm:$0xff]
      %v2498 = vld [vmem:[%s5 + $0x20] sm:$0xff]
      %v2499 = vld [vmem:[%s5 + $0x28] sm:$0xff]
      %v2500 = vld [vmem:[%s5 + $0x30] sm:$0xff]
      %v2501 = vld [vmem:[%s5 + $0x38] sm:$0xff]
      %v2502 = vld [vmem:[%s5 + $0x40] sm:$0xff]
      %v2503 = vld [vmem:[%s5 + $0x48] sm:$0xff]
      %v2504 = vld [vmem:[%s5 + $0x50] sm:$0xff]
      %v2505 = vld [vmem:[%s5 + $0x58] sm:$0xff]
      %v2506 = vld [vmem:[%s5 + $0x60] sm:$0xff]
      %v2507 = vld [vmem:[%s5 + $0x68] sm:$0xff]
      %v2508 = vld [vmem:[%s5 + $0x70] sm:$0xff]
      %v2509 = vld [vmem:[%s5 + $0x78] sm:$0xff]
      %v2510 = vld [vmem:[%s5 + $0x80] sm:$0xff]
      %v2511 = vld [vmem:[%s5 + $0x88] sm:$0xff]
      %v2512 = vld [vmem:[%s5 + $0x90] sm:$0xff]
      %v2513 = vld [vmem:[%s5 + $0x98] sm:$0xff]
      %v2514 = vld [vmem:[%s5 + $0xa0] sm:$0xff]
      %v2515 = vld [vmem:[%s5 + $0xa8] sm:$0xff]
      %v2516 = vld [vmem:[%s5 + $0xb0] sm:$0xff]
      %v2517 = vld [vmem:[%s5 + $0xb8] sm:$0xff]
      %v2518 = vld [vmem:[%s5 + $0xc0] sm:$0xff]
      %v2519 = vld [vmem:[%s5 + $0xc8] sm:$0xff]
      %v2520 = vld [vmem:[%s5 + $0xd0] sm:$0xff]
      %v2521 = vld [vmem:[%s5 + $0xd8] sm:$0xff]
      %v2522 = vld [vmem:[%s5 + $0xe0] sm:$0xff]
      %v2523 = vld [vmem:[%s5 + $0xe8] sm:$0xff]
      %v2524 = vld [vmem:[%s5 + $0xf0] sm:$0xff]
      %v2525 = vld [vmem:[%s5 + $0xf8] sm:$0xff]
      %v2526 = vld [vmem:[%s5 + $0x100] sm:$0xff]
      %v2527 = vld [vmem:[%s5 + $0x108] sm:$0xff]
      %v2528 = vld [vmem:[%s5 + $0x110] sm:$0xff]
      %v2529 = vld [vmem:[%s5 + $0x118] sm:$0xff]
      %v2530 = vld [vmem:[%s5 + $0x120] sm:$0xff]
      %v2531 = vld [vmem:[%s5 + $0x128] sm:$0xff]
      %v2532 = vld [vmem:[%s5 + $0x130] sm:$0xff]
      %v2533 = vld [vmem:[%s5 + $0x138] sm:$0xff]
      %v2534 = vld [vmem:[%s5 + $0x140] sm:$0xff]
      %v2535 = vld [vmem:[%s5 + $0x148] sm:$0xff]
      %v2536 = vld [vmem:[%s5 + $0x150] sm:$0xff]
      %v2537 = vld [vmem:[%s5 + $0x158] sm:$0xff]
      %v2538 = vld [vmem:[%s5 + $0x160] sm:$0xff]
      %v2539 = vld [vmem:[%s5 + $0x168] sm:$0xff]
      %v2540 = vld [vmem:[%s5 + $0x170] sm:$0xff]
      %v2541 = vld [vmem:[%s5 + $0x178] sm:$0xff]
      %v2542 = vld [vmem:[%s5 + $0x180] sm:$0xff]
      %v2543 = vld [vmem:[%s5 + $0x188] sm:$0xff]
      %v2544 = vld [vmem:[%s5 + $0x190] sm:$0xff]
      %v2545 = vld [vmem:[%s5 + $0x198] sm:$0xff]
      %v2546 = vld [vmem:[%s5 + $0x1a0] sm:$0xff]
      %v2547 = vld [vmem:[%s5 + $0x1a8] sm:$0xff]
      %v2548 = vld [vmem:[%s5 + $0x1b0] sm:$0xff]
      %v2549 = vld [vmem:[%s5 + $0x1b8] sm:$0xff]
      %v2550 = vld [vmem:[%s5 + $0x1c0] sm:$0xff]
      %v2551 = vld [vmem:[%s5 + $0x1c8] sm:$0xff]
      %v2552 = vld [vmem:[%s5 + $0x1d0] sm:$0xff]
      %v2553 = vld [vmem:[%s5 + $0x1d8] sm:$0xff]
      %v2554 = vld [vmem:[%s5 + $0x1e0] sm:$0xff]
      %v2555 = vld [vmem:[%s5 + $0x1e8] sm:$0xff]
      %v2556 = vld [vmem:[%s5 + $0x1f0] sm:$0xff]
      %v2557 = vld [vmem:[%s5 + $0x1f8] sm:$0xff]
      %v2558 = vld [vmem:[%s5 + $0x200] sm:$0xff]
      %v2559 = vld [vmem:[%s5 + $0x208] sm:$0xff]
      %v2560 = vld [vmem:[%s5 + $0x210] sm:$0xff]
      %v2561 = vld [vmem:[%s5 + $0x218] sm:$0xff]
      %v2562 = vld [vmem:[%s5 + $0x220] sm:$0xff]
      %v2563 = vld [vmem:[%s5 + $0x228] sm:$0xff]
      %v2564 = vld [vmem:[%s5 + $0x230] sm:$0xff]
      %v2565 = vld [vmem:[%s5 + $0x238] sm:$0xff]
      %v2566 = vld [vmem:[%s5 + $0x240] sm:$0xff]
      %v2567 = vld [vmem:[%s5 + $0x248] sm:$0xff]
      %v2568 = vld [vmem:[%s5 + $0x250] sm:$0xff]
      %v2569 = vld [vmem:[%s5 + $0x258] sm:$0xff]
      %v2570 = vld [vmem:[%s5 + $0x260] sm:$0xff]
      %v2571 = vld [vmem:[%s5 + $0x268] sm:$0xff]
      %v2572 = vld [vmem:[%s5 + $0x270] sm:$0xff]
      %v2573 = vld [vmem:[%s5 + $0x278] sm:$0xff]
      %v2574 = vld [vmem:[%s5 + $0x280] sm:$0xff]
      %v2575 = vld [vmem:[%s5 + $0x288] sm:$0xff]
      %v2576 = vld [vmem:[%s5 + $0x290] sm:$0xff]
      %v2577 = vld [vmem:[%s5 + $0x298] sm:$0xff]
      %v2578 = vld [vmem:[%s5 + $0x2a0] sm:$0xff]
      %v2579 = vld [vmem:[%s5 + $0x2a8] sm:$0xff]
      %v2580 = vld [vmem:[%s5 + $0x2b0] sm:$0xff]
      %v2581 = vld [vmem:[%s5 + $0x2b8] sm:$0xff]
      %v2582 = vld [vmem:[%s5 + $0x2c0] sm:$0xff]
      %v2583 = vld [vmem:[%s5 + $0x2c8] sm:$0xff]
      %v2584 = vld [vmem:[%s5 + $0x2d0] sm:$0xff]
      %v2585 = vld [vmem:[%s5 + $0x2d8] sm:$0xff]
      %v2586 = vld [vmem:[%s5 + $0x2e0] sm:$0xff]
      %v2587 = vld [vmem:[%s5 + $0x2e8] sm:$0xff]
      %v2588 = vld [vmem:[%s5 + $0x2f0] sm:$0xff]
      %v2589 = vld [vmem:[%s5 + $0x2f8] sm:$0xff]
      %v2590 = vld [vmem:[%s5 + $0x300] sm:$0xff]
      %v2591 = vld [vmem:[%s5 + $0x308] sm:$0xff]
      %v2592 = vld [vmem:[%s5 + $0x310] sm:$0xff]
      %v2593 = vld [vmem:[%s5 + $0x318] sm:$0xff]
      %v2594 = vld [vmem:[%s5 + $0x320] sm:$0xff]
      %v2595 = vld [vmem:[%s5 + $0x328] sm:$0xff]
      %v2596 = vld [vmem:[%s5 + $0x330] sm:$0xff]
      %v2597 = vld [vmem:[%s5 + $0x338] sm:$0xff]
      %v2598 = vld [vmem:[%s5 + $0x340] sm:$0xff]
      %v2599 = vld [vmem:[%s5 + $0x348] sm:$0xff]
      %v2600 = vld [vmem:[%s5 + $0x350] sm:$0xff]
      %v2601 = vld [vmem:[%s5 + $0x358] sm:$0xff]
      %v2602 = vld [vmem:[%s5 + $0x360] sm:$0xff]
      %v2603 = vld [vmem:[%s5 + $0x368] sm:$0xff]
      %v2604 = vld [vmem:[%s5 + $0x370] sm:$0xff]
      %v2605 = vld [vmem:[%s5 + $0x378] sm:$0xff]
      %v2606 = vld [vmem:[%s5 + $0x380] sm:$0xff]
      %v2607 = vld [vmem:[%s5 + $0x388] sm:$0xff]
      %v2608 = vld [vmem:[%s5 + $0x390] sm:$0xff]
      %v2609 = vld [vmem:[%s5 + $0x398] sm:$0xff]
      %v2610 = vld [vmem:[%s5 + $0x3a0] sm:$0xff]
      %v2611 = vld [vmem:[%s5 + $0x3a8] sm:$0xff]
      %v2612 = vld [vmem:[%s5 + $0x3b0] sm:$0xff]
      %v2613 = vld [vmem:[%s5 + $0x3b8] sm:$0xff]
      %v2614 = vld [vmem:[%s5 + $0x3c0] sm:$0xff]
      %v2615 = vld [vmem:[%s5 + $0x3c8] sm:$0xff]
      %v2616 = vld [vmem:[%s5 + $0x3d0] sm:$0xff]
      %v2617 = vld [vmem:[%s5 + $0x3d8] sm:$0xff]
      %v2618 = vld [vmem:[%s5 + $0x3e0] sm:$0xff]
      %v2619 = vld [vmem:[%s6] sm:$0x3]
      %v2621 = vlaneseq
      %v2622 = vshrl.u32 %v2621, 7
      %v2623 = vsub.s32 0, %v2622
      %v2624 = vrot.slane %v2619, %v2623
      %v2625 = vlaneseq
      %v2626 = vshrl.u32 %v2625, 7
      %v2627 = vsub.s32 1, %v2626
      %v2628 = vrot.slane %v2619, %v2627
      %v2756 = vunpack.c.l.b16 %v2494
      %v2757 = vunpack.c.h.b16 %v2494
      %v2758 = vunpack.c.l.b16 %v2495
      %v2759 = vunpack.c.h.b16 %v2495
      %v2760 = vunpack.c.l.b16 %v2496
      %v2761 = vunpack.c.h.b16 %v2496
      %v2762 = vunpack.c.l.b16 %v2497
      %v2763 = vunpack.c.h.b16 %v2497
      %v2764 = vunpack.c.l.b16 %v2498
      %v2765 = vunpack.c.h.b16 %v2498
      %v2766 = vunpack.c.l.b16 %v2499
      %v2767 = vunpack.c.h.b16 %v2499
      %v2768 = vunpack.c.l.b16 %v2500
      %v2769 = vunpack.c.h.b16 %v2500
      %v2770 = vunpack.c.l.b16 %v2501
      %v2771 = vunpack.c.h.b16 %v2501
      %v2772 = vunpack.c.l.b16 %v2502
      %v2773 = vunpack.c.h.b16 %v2502
      %v2774 = vunpack.c.l.b16 %v2503
      %v2775 = vunpack.c.h.b16 %v2503
      %v2776 = vunpack.c.l.b16 %v2504
      %v2777 = vunpack.c.h.b16 %v2504
      %v2778 = vunpack.c.l.b16 %v2505
      %v2779 = vunpack.c.h.b16 %v2505
      %v2780 = vunpack.c.l.b16 %v2506
      %v2781 = vunpack.c.h.b16 %v2506
      %v2782 = vunpack.c.l.b16 %v2507
      %v2783 = vunpack.c.h.b16 %v2507
      %v2784 = vunpack.c.l.b16 %v2508
      %v2785 = vunpack.c.h.b16 %v2508
      %v2786 = vunpack.c.l.b16 %v2509
      %v2787 = vunpack.c.h.b16 %v2509
      %v2788 = vunpack.c.l.b16 %v2510
      %v2789 = vunpack.c.h.b16 %v2510
      %v2790 = vunpack.c.l.b16 %v2511
      %v2791 = vunpack.c.h.b16 %v2511
      %v2792 = vunpack.c.l.b16 %v2512
      %v2793 = vunpack.c.h.b16 %v2512
      %v2794 = vunpack.c.l.b16 %v2513
      %v2795 = vunpack.c.h.b16 %v2513
      %v2796 = vunpack.c.l.b16 %v2514
      %v2797 = vunpack.c.h.b16 %v2514
      %v2798 = vunpack.c.l.b16 %v2515
      %v2799 = vunpack.c.h.b16 %v2515
      %v2800 = vunpack.c.l.b16 %v2516
      %v2801 = vunpack.c.h.b16 %v2516
      %v2802 = vunpack.c.l.b16 %v2517
      %v2803 = vunpack.c.h.b16 %v2517
      %v2804 = vunpack.c.l.b16 %v2518
      %v2805 = vunpack.c.h.b16 %v2518
      %v2806 = vunpack.c.l.b16 %v2519
      %v2807 = vunpack.c.h.b16 %v2519
      %v2808 = vunpack.c.l.b16 %v2520
      %v2809 = vunpack.c.h.b16 %v2520
      %v2810 = vunpack.c.l.b16 %v2521
      %v2811 = vunpack.c.h.b16 %v2521
      %v2812 = vunpack.c.l.b16 %v2522
      %v2813 = vunpack.c.h.b16 %v2522
      %v2814 = vunpack.c.l.b16 %v2523
      %v2815 = vunpack.c.h.b16 %v2523
      %v2816 = vunpack.c.l.b16 %v2524
      %v2817 = vunpack.c.h.b16 %v2524
      %v2818 = vunpack.c.l.b16 %v2525
      %v2819 = vunpack.c.h.b16 %v2525
      %v2820 = vunpack.c.l.b16 %v2526
      %v2821 = vunpack.c.h.b16 %v2526
      %v2822 = vunpack.c.l.b16 %v2527
      %v2823 = vunpack.c.h.b16 %v2527
      %v2824 = vunpack.c.l.b16 %v2528
      %v2825 = vunpack.c.h.b16 %v2528
      %v2826 = vunpack.c.l.b16 %v2529
      %v2827 = vunpack.c.h.b16 %v2529
      %v2828 = vunpack.c.l.b16 %v2530
      %v2829 = vunpack.c.h.b16 %v2530
      %v2830 = vunpack.c.l.b16 %v2531
      %v2831 = vunpack.c.h.b16 %v2531
      %v2832 = vunpack.c.l.b16 %v2532
      %v2833 = vunpack.c.h.b16 %v2532
      %v2834 = vunpack.c.l.b16 %v2533
      %v2835 = vunpack.c.h.b16 %v2533
      %v2836 = vunpack.c.l.b16 %v2534
      %v2837 = vunpack.c.h.b16 %v2534
      %v2838 = vunpack.c.l.b16 %v2535
      %v2839 = vunpack.c.h.b16 %v2535
      %v2840 = vunpack.c.l.b16 %v2536
      %v2841 = vunpack.c.h.b16 %v2536
      %v2842 = vunpack.c.l.b16 %v2537
      %v2843 = vunpack.c.h.b16 %v2537
      %v2844 = vunpack.c.l.b16 %v2538
      %v2845 = vunpack.c.h.b16 %v2538
      %v2846 = vunpack.c.l.b16 %v2539
      %v2847 = vunpack.c.h.b16 %v2539
      %v2848 = vunpack.c.l.b16 %v2540
      %v2849 = vunpack.c.h.b16 %v2540
      %v2850 = vunpack.c.l.b16 %v2541
      %v2851 = vunpack.c.h.b16 %v2541
      %v2852 = vunpack.c.l.b16 %v2542
      %v2853 = vunpack.c.h.b16 %v2542
      %v2854 = vunpack.c.l.b16 %v2543
      %v2855 = vunpack.c.h.b16 %v2543
      %v2856 = vunpack.c.l.b16 %v2544
      %v2857 = vunpack.c.h.b16 %v2544
      %v2858 = vunpack.c.l.b16 %v2545
      %v2859 = vunpack.c.h.b16 %v2545
      %v2860 = vunpack.c.l.b16 %v2546
      %v2861 = vunpack.c.h.b16 %v2546
      %v2862 = vunpack.c.l.b16 %v2547
      %v2863 = vunpack.c.h.b16 %v2547
      %v2864 = vunpack.c.l.b16 %v2548
      %v2865 = vunpack.c.h.b16 %v2548
      %v2866 = vunpack.c.l.b16 %v2549
      %v2867 = vunpack.c.h.b16 %v2549
      %v2868 = vunpack.c.l.b16 %v2550
      %v2869 = vunpack.c.h.b16 %v2550
      %v2870 = vunpack.c.l.b16 %v2551
      %v2871 = vunpack.c.h.b16 %v2551
      %v2872 = vunpack.c.l.b16 %v2552
      %v2873 = vunpack.c.h.b16 %v2552
      %v2874 = vunpack.c.l.b16 %v2553
      %v2875 = vunpack.c.h.b16 %v2553
      %v2876 = vunpack.c.l.b16 %v2554
      %v2877 = vunpack.c.h.b16 %v2554
      %v2878 = vunpack.c.l.b16 %v2555
      %v2879 = vunpack.c.h.b16 %v2555
      %v2880 = vunpack.c.l.b16 %v2556
      %v2881 = vunpack.c.h.b16 %v2556
      %v2882 = vunpack.c.l.b16 %v2557
      %v2883 = vunpack.c.h.b16 %v2557
      %v2884 = vunpack.c.l.b16 %v2558
      %v2885 = vunpack.c.h.b16 %v2558
      %v2886 = vunpack.c.l.b16 %v2559
      %v2887 = vunpack.c.h.b16 %v2559
      %v2888 = vunpack.c.l.b16 %v2560
      %v2889 = vunpack.c.h.b16 %v2560
      %v2890 = vunpack.c.l.b16 %v2561
      %v2891 = vunpack.c.h.b16 %v2561
      %v2892 = vunpack.c.l.b16 %v2562
      %v2893 = vunpack.c.h.b16 %v2562
      %v2894 = vunpack.c.l.b16 %v2563
      %v2895 = vunpack.c.h.b16 %v2563
      %v2896 = vunpack.c.l.b16 %v2564
      %v2897 = vunpack.c.h.b16 %v2564
      %v2898 = vunpack.c.l.b16 %v2565
      %v2899 = vunpack.c.h.b16 %v2565
      %v2900 = vunpack.c.l.b16 %v2566
      %v2901 = vunpack.c.h.b16 %v2566
      %v2902 = vunpack.c.l.b16 %v2567
      %v2903 = vunpack.c.h.b16 %v2567
      %v2904 = vunpack.c.l.b16 %v2568
      %v2905 = vunpack.c.h.b16 %v2568
      %v2906 = vunpack.c.l.b16 %v2569
      %v2907 = vunpack.c.h.b16 %v2569
      %v2908 = vunpack.c.l.b16 %v2570
      %v2909 = vunpack.c.h.b16 %v2570
      %v2910 = vunpack.c.l.b16 %v2571
      %v2911 = vunpack.c.h.b16 %v2571
      %v2912 = vunpack.c.l.b16 %v2572
      %v2913 = vunpack.c.h.b16 %v2572
      %v2914 = vunpack.c.l.b16 %v2573
      %v2915 = vunpack.c.h.b16 %v2573
      %v2916 = vunpack.c.l.b16 %v2574
      %v2917 = vunpack.c.h.b16 %v2574
      %v2918 = vunpack.c.l.b16 %v2575
      %v2919 = vunpack.c.h.b16 %v2575
      %v2920 = vunpack.c.l.b16 %v2576
      %v2921 = vunpack.c.h.b16 %v2576
      %v2922 = vunpack.c.l.b16 %v2577
      %v2923 = vunpack.c.h.b16 %v2577
      %v2924 = vunpack.c.l.b16 %v2578
      %v2925 = vunpack.c.h.b16 %v2578
      %v2926 = vunpack.c.l.b16 %v2579
      %v2927 = vunpack.c.h.b16 %v2579
      %v2928 = vunpack.c.l.b16 %v2580
      %v2929 = vunpack.c.h.b16 %v2580
      %v2930 = vunpack.c.l.b16 %v2581
      %v2931 = vunpack.c.h.b16 %v2581
      %v2932 = vunpack.c.l.b16 %v2582
      %v2933 = vunpack.c.h.b16 %v2582
      %v2934 = vunpack.c.l.b16 %v2583
      %v2935 = vunpack.c.h.b16 %v2583
      %v2936 = vunpack.c.l.b16 %v2584
      %v2937 = vunpack.c.h.b16 %v2584
      %v2938 = vunpack.c.l.b16 %v2585
      %v2939 = vunpack.c.h.b16 %v2585
      %v2940 = vunpack.c.l.b16 %v2586
      %v2941 = vunpack.c.h.b16 %v2586
      %v2942 = vunpack.c.l.b16 %v2587
      %v2943 = vunpack.c.h.b16 %v2587
      %v2944 = vunpack.c.l.b16 %v2588
      %v2945 = vunpack.c.h.b16 %v2588
      %v2946 = vunpack.c.l.b16 %v2589
      %v2947 = vunpack.c.h.b16 %v2589
      %v2948 = vunpack.c.l.b16 %v2590
      %v2949 = vunpack.c.h.b16 %v2590
      %v2950 = vunpack.c.l.b16 %v2591
      %v2951 = vunpack.c.h.b16 %v2591
      %v2952 = vunpack.c.l.b16 %v2592
      %v2953 = vunpack.c.h.b16 %v2592
      %v2954 = vunpack.c.l.b16 %v2593
      %v2955 = vunpack.c.h.b16 %v2593
      %v2956 = vunpack.c.l.b16 %v2594
      %v2957 = vunpack.c.h.b16 %v2594
      %v2958 = vunpack.c.l.b16 %v2595
      %v2959 = vunpack.c.h.b16 %v2595
      %v2960 = vunpack.c.l.b16 %v2596
      %v2961 = vunpack.c.h.b16 %v2596
      %v2962 = vunpack.c.l.b16 %v2597
      %v2963 = vunpack.c.h.b16 %v2597
      %v2964 = vunpack.c.l.b16 %v2598
      %v2965 = vunpack.c.h.b16 %v2598
      %v2966 = vunpack.c.l.b16 %v2599
      %v2967 = vunpack.c.h.b16 %v2599
      %v2968 = vunpack.c.l.b16 %v2600
      %v2969 = vunpack.c.h.b16 %v2600
      %v2970 = vunpack.c.l.b16 %v2601
      %v2971 = vunpack.c.h.b16 %v2601
      %v2972 = vunpack.c.l.b16 %v2602
      %v2973 = vunpack.c.h.b16 %v2602
      %v2974 = vunpack.c.l.b16 %v2603
      %v2975 = vunpack.c.h.b16 %v2603
      %v2976 = vunpack.c.l.b16 %v2604
      %v2977 = vunpack.c.h.b16 %v2604
      %v2978 = vunpack.c.l.b16 %v2605
      %v2979 = vunpack.c.h.b16 %v2605
      %v2980 = vunpack.c.l.b16 %v2606
      %v2981 = vunpack.c.h.b16 %v2606
      %v2982 = vunpack.c.l.b16 %v2607
      %v2983 = vunpack.c.h.b16 %v2607
      %v2984 = vunpack.c.l.b16 %v2608
      %v2985 = vunpack.c.h.b16 %v2608
      %v2986 = vunpack.c.l.b16 %v2609
      %v2987 = vunpack.c.h.b16 %v2609
      %v2988 = vunpack.c.l.b16 %v2610
      %v2989 = vunpack.c.h.b16 %v2610
      %v2990 = vunpack.c.l.b16 %v2611
      %v2991 = vunpack.c.h.b16 %v2611
      %v2992 = vunpack.c.l.b16 %v2612
      %v2993 = vunpack.c.h.b16 %v2612
      %v2994 = vunpack.c.l.b16 %v2613
      %v2995 = vunpack.c.h.b16 %v2613
      %v2996 = vunpack.c.l.b16 %v2614
      %v2997 = vunpack.c.h.b16 %v2614
      %v2998 = vunpack.c.l.b16 %v2615
      %v2999 = vunpack.c.h.b16 %v2615
      %v3000 = vunpack.c.l.b16 %v2616
      %v3001 = vunpack.c.h.b16 %v2616
      %v3002 = vunpack.c.l.b16 %v2617
      %v3003 = vunpack.c.h.b16 %v2617
      %v3004 = vunpack.c.l.b16 %v2618
      %v3005 = vunpack.c.h.b16 %v2618
      %v3006 = vpack.c.b16 %v2758, %v2756
      %v3007 = vpack.c.b16 %v2759, %v2757
      %v3008 = vpack.c.b16 %v2762, %v2760
      %v3009 = vpack.c.b16 %v2763, %v2761
      %v3010 = vpack.c.b16 %v2766, %v2764
      %v3011 = vpack.c.b16 %v2767, %v2765
      %v3012 = vpack.c.b16 %v2770, %v2768
      %v3013 = vpack.c.b16 %v2771, %v2769
      %v3014 = vpack.c.b16 %v2774, %v2772
      %v3015 = vpack.c.b16 %v2775, %v2773
      %v3016 = vpack.c.b16 %v2778, %v2776
      %v3017 = vpack.c.b16 %v2779, %v2777
      %v3018 = vpack.c.b16 %v2782, %v2780
      %v3019 = vpack.c.b16 %v2783, %v2781
      %v3020 = vpack.c.b16 %v2786, %v2784
      %v3021 = vpack.c.b16 %v2787, %v2785
      %v3022 = vpack.c.b16 %v2790, %v2788
      %v3023 = vpack.c.b16 %v2791, %v2789
      %v3024 = vpack.c.b16 %v2794, %v2792
      %v3025 = vpack.c.b16 %v2795, %v2793
      %v3026 = vpack.c.b16 %v2798, %v2796
      %v3027 = vpack.c.b16 %v2799, %v2797
      %v3028 = vpack.c.b16 %v2802, %v2800
      %v3029 = vpack.c.b16 %v2803, %v2801
      %v3030 = vpack.c.b16 %v2806, %v2804
      %v3031 = vpack.c.b16 %v2807, %v2805
      %v3032 = vpack.c.b16 %v2810, %v2808
      %v3033 = vpack.c.b16 %v2811, %v2809
      %v3034 = vpack.c.b16 %v2814, %v2812
      %v3035 = vpack.c.b16 %v2815, %v2813
      %v3036 = vpack.c.b16 %v2818, %v2816
      %v3037 = vpack.c.b16 %v2819, %v2817
      %v3038 = vpack.c.b16 %v2822, %v2820
      %v3039 = vpack.c.b16 %v2823, %v2821
      %v3040 = vpack.c.b16 %v2826, %v2824
      %v3041 = vpack.c.b16 %v2827, %v2825
      %v3042 = vpack.c.b16 %v2830, %v2828
      %v3043 = vpack.c.b16 %v2831, %v2829
      %v3044 = vpack.c.b16 %v2834, %v2832
      %v3045 = vpack.c.b16 %v2835, %v2833
      %v3046 = vpack.c.b16 %v2838, %v2836
      %v3047 = vpack.c.b16 %v2839, %v2837
      %v3048 = vpack.c.b16 %v2842, %v2840
      %v3049 = vpack.c.b16 %v2843, %v2841
      %v3050 = vpack.c.b16 %v2846, %v2844
      %v3051 = vpack.c.b16 %v2847, %v2845
      %v3052 = vpack.c.b16 %v2850, %v2848
      %v3053 = vpack.c.b16 %v2851, %v2849
      %v3054 = vpack.c.b16 %v2854, %v2852
      %v3055 = vpack.c.b16 %v2855, %v2853
      %v3056 = vpack.c.b16 %v2858, %v2856
      %v3057 = vpack.c.b16 %v2859, %v2857
      %v3058 = vpack.c.b16 %v2862, %v2860
      %v3059 = vpack.c.b16 %v2863, %v2861
      %v3060 = vpack.c.b16 %v2866, %v2864
      %v3061 = vpack.c.b16 %v2867, %v2865
      %v3062 = vpack.c.b16 %v2870, %v2868
      %v3063 = vpack.c.b16 %v2871, %v2869
      %v3064 = vpack.c.b16 %v2874, %v2872
      %v3065 = vpack.c.b16 %v2875, %v2873
      %v3066 = vpack.c.b16 %v2878, %v2876
      %v3067 = vpack.c.b16 %v2879, %v2877
      %v3068 = vpack.c.b16 %v2882, %v2880
      %v3069 = vpack.c.b16 %v2883, %v2881
      %v3070 = vpack.c.b16 %v2886, %v2884
      %v3071 = vpack.c.b16 %v2887, %v2885
      %v3072 = vpack.c.b16 %v2890, %v2888
      %v3073 = vpack.c.b16 %v2891, %v2889
      %v3074 = vpack.c.b16 %v2894, %v2892
      %v3075 = vpack.c.b16 %v2895, %v2893
      %v3076 = vpack.c.b16 %v2898, %v2896
      %v3077 = vpack.c.b16 %v2899, %v2897
      %v3078 = vpack.c.b16 %v2902, %v2900
      %v3079 = vpack.c.b16 %v2903, %v2901
      %v3080 = vpack.c.b16 %v2906, %v2904
      %v3081 = vpack.c.b16 %v2907, %v2905
      %v3082 = vpack.c.b16 %v2910, %v2908
      %v3083 = vpack.c.b16 %v2911, %v2909
      %v3084 = vpack.c.b16 %v2914, %v2912
      %v3085 = vpack.c.b16 %v2915, %v2913
      %v3086 = vpack.c.b16 %v2918, %v2916
      %v3087 = vpack.c.b16 %v2919, %v2917
      %v3088 = vpack.c.b16 %v2922, %v2920
      %v3089 = vpack.c.b16 %v2923, %v2921
      %v3090 = vpack.c.b16 %v2926, %v2924
      %v3091 = vpack.c.b16 %v2927, %v2925
      %v3092 = vpack.c.b16 %v2930, %v2928
      %v3093 = vpack.c.b16 %v2931, %v2929
      %v3094 = vpack.c.b16 %v2934, %v2932
      %v3095 = vpack.c.b16 %v2935, %v2933
      %v3096 = vpack.c.b16 %v2938, %v2936
      %v3097 = vpack.c.b16 %v2939, %v2937
      %v3098 = vpack.c.b16 %v2942, %v2940
      %v3099 = vpack.c.b16 %v2943, %v2941
      %v3100 = vpack.c.b16 %v2946, %v2944
      %v3101 = vpack.c.b16 %v2947, %v2945
      %v3102 = vpack.c.b16 %v2950, %v2948
      %v3103 = vpack.c.b16 %v2951, %v2949
      %v3104 = vpack.c.b16 %v2954, %v2952
      %v3105 = vpack.c.b16 %v2955, %v2953
      %v3106 = vpack.c.b16 %v2958, %v2956
      %v3107 = vpack.c.b16 %v2959, %v2957
      %v3108 = vpack.c.b16 %v2962, %v2960
      %v3109 = vpack.c.b16 %v2963, %v2961
      %v3110 = vpack.c.b16 %v2966, %v2964
      %v3111 = vpack.c.b16 %v2967, %v2965
      %v3112 = vpack.c.b16 %v2970, %v2968
      %v3113 = vpack.c.b16 %v2971, %v2969
      %v3114 = vpack.c.b16 %v2974, %v2972
      %v3115 = vpack.c.b16 %v2975, %v2973
      %v3116 = vpack.c.b16 %v2978, %v2976
      %v3117 = vpack.c.b16 %v2979, %v2977
      %v3118 = vpack.c.b16 %v2982, %v2980
      %v3119 = vpack.c.b16 %v2983, %v2981
      %v3120 = vpack.c.b16 %v2986, %v2984
      %v3121 = vpack.c.b16 %v2987, %v2985
      %v3122 = vpack.c.b16 %v2990, %v2988
      %v3123 = vpack.c.b16 %v2991, %v2989
      %v3124 = vpack.c.b16 %v2994, %v2992
      %v3125 = vpack.c.b16 %v2995, %v2993
      %v3126 = vpack.c.b16 %v2998, %v2996
      %v3127 = vpack.c.b16 %v2999, %v2997
      %v3128 = vpack.c.b16 %v3002, %v3000
      %v3129 = vpack.c.b16 %v3003, %v3001
      %v3130 = vpack.c.b16 %v3004, %v3004
      %v3131 = vpack.c.b16 %v3005, %v3005
      %vm3256 = vcmask 850944
      %v3258 = vsel %vm3256, %v2493, 0
      %vm3260 = vcmask 1043456
      %v3262 = vsel %vm3260, %v3130, 0
      %v3265 = vsel %vm3260, %v3131, 0
      %3267 = vmatprep.subr.bf16.mxu0 %v3007
      %3268 = vmatpush1.bf16.msra.mxu0 %v3006
      %3269 = vmatprep.subr.bf16.mxu0 %v3009
      %3270 = vmatpush1.bf16.msra.mxu0 %v3008
      %3271 = vmatprep.subr.bf16.mxu0 %v3011
      %3272 = vmatpush1.bf16.msra.mxu0 %v3010
      %3273 = vmatprep.subr.bf16.mxu0 %v3013
      %3274 = vmatpush1.bf16.msra.mxu0 %v3012
      %3275 = vmatprep.subr.bf16.mxu0 %v3015
      %3276 = vmatpush1.bf16.msra.mxu0 %v3014
      %3277 = vmatprep.subr.bf16.mxu0 %v3017
      %3278 = vmatpush1.bf16.msra.mxu0 %v3016
      %3279 = vmatprep.subr.bf16.mxu0 %v3019
      %3280 = vmatpush1.bf16.msra.mxu0 %v3018
      %3281 = vmatprep.subr.bf16.mxu0 %v3021
      %3282 = vmatpush1.bf16.msra.mxu0 %v3020
      %3283 = vmatprep.subr.bf16.mxu0 %v3023
      %3284 = vmatpush1.bf16.msra.mxu0 %v3022
      %3285 = vmatprep.subr.bf16.mxu0 %v3025
      %3286 = vmatpush1.bf16.msra.mxu0 %v3024
      %3287 = vmatprep.subr.bf16.mxu0 %v3027
      %3288 = vmatpush1.bf16.msra.mxu0 %v3026
      %3289 = vmatprep.subr.bf16.mxu0 %v3029
      %3290 = vmatpush1.bf16.msra.mxu0 %v3028
      %3291 = vmatprep.subr.bf16.mxu0 %v3031
      %3292 = vmatpush1.bf16.msra.mxu0 %v3030
      %3293 = vmatprep.subr.bf16.mxu0 %v3033
      %3294 = vmatpush1.bf16.msra.mxu0 %v3032
      %3295 = vmatprep.subr.bf16.mxu0 %v3035
      %3296 = vmatpush1.bf16.msra.mxu0 %v3034
      %3297 = vmatprep.subr.bf16.mxu0 %v3037
      %3298 = vmatpush1.bf16.msra.mxu0 %v3036
      %3299 = vmatprep.mubr.bf16.mxu0 %v2487
      %3300 = vmatmul.mubr.bf16.gmra.mrb[0].mxu0 %v2486
      %v3301 = vpop.f32.mrb[0].mxu0
      %v3302 = vadd.f32 %v2624, %v3301
      %v3303 = vpop.f32.mrb[0].mxu0
      %v3304 = vadd.f32 %v2628, %v3303
      %v3305 = vpop.f32.mrb[0].mxu0
      %v3306 = vpop.f32.mrb[0].mxu0
      %3307 = vdwg.mxu0
      %3308 = vmatprep.subr.bf16.mxu0 %v3039
      %3309 = vmatpush1.bf16.msra.mxu0 %v3038
      %3310 = vmatprep.subr.bf16.mxu0 %v3041
      %3311 = vmatpush1.bf16.msra.mxu0 %v3040
      %3312 = vmatprep.subr.bf16.mxu0 %v3043
      %3313 = vmatpush1.bf16.msra.mxu0 %v3042
      %3314 = vmatprep.subr.bf16.mxu0 %v3045
      %3315 = vmatpush1.bf16.msra.mxu0 %v3044
      %3316 = vmatprep.subr.bf16.mxu0 %v3047
      %3317 = vmatpush1.bf16.msra.mxu0 %v3046
      %3318 = vmatprep.subr.bf16.mxu0 %v3049
      %3319 = vmatpush1.bf16.msra.mxu0 %v3048
      %3320 = vmatprep.subr.bf16.mxu0 %v3051
      %3321 = vmatpush1.bf16.msra.mxu0 %v3050
      %3322 = vmatprep.subr.bf16.mxu0 %v3053
      %3323 = vmatpush1.bf16.msra.mxu0 %v3052
      %3324 = vmatprep.subr.bf16.mxu0 %v3055
      %3325 = vmatpush1.bf16.msra.mxu0 %v3054
      %3326 = vmatprep.subr.bf16.mxu0 %v3057
      %3327 = vmatpush1.bf16.msra.mxu0 %v3056
      %3328 = vmatprep.subr.bf16.mxu0 %v3059
      %3329 = vmatpush1.bf16.msra.mxu0 %v3058
      %3330 = vmatprep.subr.bf16.mxu0 %v3061
      %3331 = vmatpush1.bf16.msra.mxu0 %v3060
      %3332 = vmatprep.subr.bf16.mxu0 %v3063
      %3333 = vmatpush1.bf16.msra.mxu0 %v3062
      %3334 = vmatprep.subr.bf16.mxu0 %v3065
      %3335 = vmatpush1.bf16.msra.mxu0 %v3064
      %3336 = vmatprep.subr.bf16.mxu0 %v3067
      %3337 = vmatpush1.bf16.msra.mxu0 %v3066
      %3338 = vmatprep.subr.bf16.mxu0 %v3069
      %3339 = vmatpush1.bf16.msra.mxu0 %v3068
      %3340 = vmatprep.mubr.bf16.mxu0 %v2489
      %3341 = vmatmul.mubr.bf16.gmra.mrb[0].mxu0 %v2488
      %v3342 = vpop.f32.mrb[0].mxu0
      %v3343 = vadd.f32 %v3302, %v3342
      %v3344 = vpop.f32.mrb[0].mxu0
      %v3345 = vadd.f32 %v3304, %v3344
      %v3346 = vpop.f32.mrb[0].mxu0
      %v3347 = vpop.f32.mrb[0].mxu0
      %3348 = vdwg.mxu0
      %3349 = vmatprep.subr.bf16.mxu0 %v3071
      %3350 = vmatpush1.bf16.msra.mxu0 %v3070
      %3351 = vmatprep.subr.bf16.mxu0 %v3073
      %3352 = vmatpush1.bf16.msra.mxu0 %v3072
      %3353 = vmatprep.subr.bf16.mxu0 %v3075
      %3354 = vmatpush1.bf16.msra.mxu0 %v3074
      %3355 = vmatprep.subr.bf16.mxu0 %v3077
      %3356 = vmatpush1.bf16.msra.mxu0 %v3076
      %3357 = vmatprep.subr.bf16.mxu0 %v3079
      %3358 = vmatpush1.bf16.msra.mxu0 %v3078
      %3359 = vmatprep.subr.bf16.mxu0 %v3081
      %3360 = vmatpush1.bf16.msra.mxu0 %v3080
      %3361 = vmatprep.subr.bf16.mxu0 %v3083
      %3362 = vmatpush1.bf16.msra.mxu0 %v3082
      %3363 = vmatprep.subr.bf16.mxu0 %v3085
      %3364 = vmatpush1.bf16.msra.mxu0 %v3084
      %3365 = vmatprep.subr.bf16.mxu0 %v3087
      %3366 = vmatpush1.bf16.msra.mxu0 %v3086
      %3367 = vmatprep.subr.bf16.mxu0 %v3089
      %3368 = vmatpush1.bf16.msra.mxu0 %v3088
      %3369 = vmatprep.subr.bf16.mxu0 %v3091
      %3370 = vmatpush1.bf16.msra.mxu0 %v3090
      %3371 = vmatprep.subr.bf16.mxu0 %v3093
      %3372 = vmatpush1.bf16.msra.mxu0 %v3092
      %3373 = vmatprep.subr.bf16.mxu0 %v3095
      %3374 = vmatpush1.bf16.msra.mxu0 %v3094
      %3375 = vmatprep.subr.bf16.mxu0 %v3097
      %3376 = vmatpush1.bf16.msra.mxu0 %v3096
      %3377 = vmatprep.subr.bf16.mxu0 %v3099
      %3378 = vmatpush1.bf16.msra.mxu0 %v3098
      %3379 = vmatprep.subr.bf16.mxu0 %v3101
      %3380 = vmatpush1.bf16.msra.mxu0 %v3100
      %3381 = vmatprep.mubr.bf16.mxu0 %v2491
      %3382 = vmatmul.mubr.bf16.gmra.mrb[0].mxu0 %v2490
      %v3383 = vpop.f32.mrb[0].mxu0
      %v3384 = vadd.f32 %v3343, %v3383
      %v3385 = vpop.f32.mrb[0].mxu0
      %v3386 = vadd.f32 %v3345, %v3385
      %v3387 = vpop.f32.mrb[0].mxu0
      %v3388 = vpop.f32.mrb[0].mxu0
      %3389 = vdwg.mxu0
      %3390 = vmatprep.subr.bf16.mxu0 %v3103
      %3391 = vmatpush1.bf16.msra.mxu0 %v3102
      %3392 = vmatprep.subr.bf16.mxu0 %v3105
      %3393 = vmatpush1.bf16.msra.mxu0 %v3104
      %3394 = vmatprep.subr.bf16.mxu0 %v3107
      %3395 = vmatpush1.bf16.msra.mxu0 %v3106
      %3396 = vmatprep.subr.bf16.mxu0 %v3109
      %3397 = vmatpush1.bf16.msra.mxu0 %v3108
      %3398 = vmatprep.subr.bf16.mxu0 %v3111
      %3399 = vmatpush1.bf16.msra.mxu0 %v3110
      %3400 = vmatprep.subr.bf16.mxu0 %v3113
      %3401 = vmatpush1.bf16.msra.mxu0 %v3112
      %3402 = vmatprep.subr.bf16.mxu0 %v3115
      %3403 = vmatpush1.bf16.msra.mxu0 %v3114
      %3404 = vmatprep.subr.bf16.mxu0 %v3117
      %3405 = vmatpush1.bf16.msra.mxu0 %v3116
      %3406 = vmatprep.subr.bf16.mxu0 %v3119
      %3407 = vmatpush1.bf16.msra.mxu0 %v3118
      %3408 = vmatprep.subr.bf16.mxu0 %v3121
      %3409 = vmatpush1.bf16.msra.mxu0 %v3120
      %3410 = vmatprep.subr.bf16.mxu0 %v3123
      %3411 = vmatpush1.bf16.msra.mxu0 %v3122
      %3412 = vmatprep.subr.bf16.mxu0 %v3125
      %3413 = vmatpush1.bf16.msra.mxu0 %v3124
      %3414 = vmatprep.subr.bf16.mxu0 %v3127
      %3415 = vmatpush1.bf16.msra.mxu0 %v3126
      %3416 = vmatprep.subr.bf16.mxu0 %v3129
      %3417 = vmatpush1.bf16.msra.mxu0 %v3128
      %3418 = vmatprep.subr.bf16.mxu0 %v3265
      %3419 = vmatpush1.bf16.msra.mxu0 %v3262
      %3420 = vmatprep.subr.bf16.mxu0 0
      %3421 = vmatpush1.bf16.msra.mxu0 0
      %3422 = vmatprep.mubr.bf16.mxu0 %v3258
      %3423 = vmatmul.mubr.bf16.gmra.mrb[0].mxu0 %v2492
      %v3424 = vpop.f32.mrb[0].mxu0
      %v3425 = vadd.f32 %v3384, %v3424
      %v3426 = vpop.f32.mrb[0].mxu0
      %v3427 = vadd.f32 %v3386, %v3426
      %v3428 = vpop.f32.mrb[0].mxu0
      %v3429 = vpop.f32.mrb[0].mxu0
      %3430 = vdwg.mxu0
      %v3431 = vmax.f32 %v3425, 0.0
      %v3432 = vmax.f32 %v3427, 0.0
      %v3433 = vld [vmem:[%s7] sm:$0xff]
      %v3434 = vld [vmem:[%s7 + $0x8] sm:$0xff]
      %v3435 = vld [vmem:[%s7 + $0x10] sm:$0xff]
      %v3436 = vld [vmem:[%s7 + $0x18] sm:$0xff]
      %v3437 = vld [vmem:[%s7 + $0x20] sm:$0xff]
      %v3438 = vld [vmem:[%s7 + $0x28] sm:$0xff]
      %v3439 = vld [vmem:[%s7 + $0x30] sm:$0xff]
      %v3440 = vld [vmem:[%s7 + $0x38] sm:$0xff]
      %v3441 = vld [vmem:[%s7 + $0x40] sm:$0xff]
      %v3442 = vld [vmem:[%s7 + $0x48] sm:$0xff]
      %v3443 = vld [vmem:[%s7 + $0x50] sm:$0xff]
      %v3444 = vld [vmem:[%s7 + $0x58] sm:$0xff]
      %v3445 = vld [vmem:[%s7 + $0x60] sm:$0xff]
      %v3446 = vld [vmem:[%s7 + $0x68] sm:$0xff]
      %v3447 = vld [vmem:[%s7 + $0x70] sm:$0xff]
      %v3448 = vld [vmem:[%s7 + $0x78] sm:$0xff]
      %v3449 = vld [vmem:[%s7 + $0x80] sm:$0xff]
      %v3450 = vld [vmem:[%s7 + $0x88] sm:$0xff]
      %v3451 = vld [vmem:[%s7 + $0x90] sm:$0xff]
      %v3452 = vld [vmem:[%s7 + $0x98] sm:$0xff]
      %v3453 = vld [vmem:[%s7 + $0xa0] sm:$0xff]
      %v3454 = vld [vmem:[%s7 + $0xa8] sm:$0xff]
      %v3455 = vld [vmem:[%s7 + $0xb0] sm:$0xff]
      %v3456 = vld [vmem:[%s7 + $0xb8] sm:$0xff]
      %v3457 = vld [vmem:[%s7 + $0xc0] sm:$0xff]
      %v3458 = vld [vmem:[%s7 + $0xc8] sm:$0xff]
      %v3459 = vld [vmem:[%s7 + $0xd0] sm:$0xff]
      %v3460 = vld [vmem:[%s7 + $0xd8] sm:$0xff]
      %v3461 = vld [vmem:[%s7 + $0xe0] sm:$0xff]
      %v3462 = vld [vmem:[%s7 + $0xe8] sm:$0xff]
      %v3463 = vld [vmem:[%s7 + $0xf0] sm:$0xff]
      %v3464 = vld [vmem:[%s7 + $0xf8] sm:$0xff]
      %v3465 = vld [vmem:[%s8] sm:$0x1]
      %v3467 = vlaneseq
      %v3468 = vshrl.u32 %v3467, 7
      %v3469 = vsub.s32 0, %v3468
      %v3470 = vrot.slane %v3465, %v3469
      %3472 = vmatprep.subr.mxu0 0.0
      %3473 = vmatpush1.msra.mxu0 %v3433
      %3474 = vmatprep.subr.mxu0 0.0
      %3475 = vmatpush1.msra.mxu0 %v3434
      %3476 = vmatprep.subr.mxu0 0.0
      %3477 = vmatpush1.msra.mxu0 %v3435
      %3478 = vmatprep.subr.mxu0 0.0
      %3479 = vmatpush1.msra.mxu0 %v3436
      %3480 = vmatprep.subr.mxu0 0.0
      %3481 = vmatpush1.msra.mxu0 %v3437
      %3482 = vmatprep.subr.mxu0 0.0
      %3483 = vmatpush1.msra.mxu0 %v3438
      %3484 = vmatprep.subr.mxu0 0.0
      %3485 = vmatpush1.msra.mxu0 %v3439
      %3486 = vmatprep.subr.mxu0 0.0
      %3487 = vmatpush1.msra.mxu0 %v3440
      %3488 = vmatprep.subr.mxu0 0.0
      %3489 = vmatpush1.msra.mxu0 %v3441
      %3490 = vmatprep.subr.mxu0 0.0
      %3491 = vmatpush1.msra.mxu0 %v3442
      %3492 = vmatprep.subr.mxu0 0.0
      %3493 = vmatpush1.msra.mxu0 %v3443
      %3494 = vmatprep.subr.mxu0 0.0
      %3495 = vmatpush1.msra.mxu0 %v3444
      %3496 = vmatprep.subr.mxu0 0.0
      %3497 = vmatpush1.msra.mxu0 %v3445
      %3498 = vmatprep.subr.mxu0 0.0
      %3499 = vmatpush1.msra.mxu0 %v3446
      %3500 = vmatprep.subr.mxu0 0.0
      %3501 = vmatpush1.msra.mxu0 %v3447
      %3502 = vmatprep.subr.mxu0 0.0
      %3503 = vmatpush1.msra.mxu0 %v3448
      %3504 = vmatprep.subr.mxu0 0.0
      %3505 = vmatpush1.msra.mxu0 %v3449
      %3506 = vmatprep.subr.mxu0 0.0
      %3507 = vmatpush1.msra.mxu0 %v3450
      %3508 = vmatprep.subr.mxu0 0.0
      %3509 = vmatpush1.msra.mxu0 %v3451
      %3510 = vmatprep.subr.mxu0 0.0
      %3511 = vmatpush1.msra.mxu0 %v3452
      %3512 = vmatprep.subr.mxu0 0.0
      %3513 = vmatpush1.msra.mxu0 %v3453
      %3514 = vmatprep.subr.mxu0 0.0
      %3515 = vmatpush1.msra.mxu0 %v3454
      %3516 = vmatprep.subr.mxu0 0.0
      %3517 = vmatpush1.msra.mxu0 %v3455
      %3518 = vmatprep.subr.mxu0 0.0
      %3519 = vmatpush1.msra.mxu0 %v3456
      %3520 = vmatprep.subr.mxu0 0.0
      %3521 = vmatpush1.msra.mxu0 %v3457
      %3522 = vmatprep.subr.mxu0 0.0
      %3523 = vmatpush1.msra.mxu0 %v3458
      %3524 = vmatprep.subr.mxu0 0.0
      %3525 = vmatpush1.msra.mxu0 %v3459
      %3526 = vmatprep.subr.mxu0 0.0
      %3527 = vmatpush1.msra.mxu0 %v3460
      %3528 = vmatprep.subr.mxu0 0.0
      %3529 = vmatpush1.msra.mxu0 %v3461
      %3530 = vmatprep.subr.mxu0 0.0
      %3531 = vmatpush1.msra.mxu0 %v3462
      %3532 = vmatprep.subr.mxu0 0.0
      %3533 = vmatpush1.msra.mxu0 %v3463
      %3534 = vmatprep.subr.mxu0 0.0
      %3535 = vmatpush1.msra.mxu0 %v3464
      %3536 = vmatprep.mubr.f32.mxu0 %v3432
      %3537 = vmatmul.mubr.f32.gmra.mrb[0].mxu0 %v3431
      %v3538 = vpop.f32.mrb[0].mxu0
      %v3539 = vadd.f32 %v3470, %v3538
      %v3540 = vpop.f32.mrb[0].mxu0
      %3541 = vdwg.mxu0
      %v3542 = vmax.f32 %v3539, 0.0
      %v3543 = vld [vmem:[%s9] sm:$0xff]
      %v3544 = vld [vmem:[%s9 + $0x8] sm:$0xff]
      %v3545 = vld [vmem:[%s10] sm:$0x1]
      %v3547 = vlaneseq
      %v3548 = vshrl.u32 %v3547, 7
      %v3549 = vsub.s32 0, %v3548
      %v3550 = vrot.slane %v3545, %v3549
      %vm3552 = vcmask 130048
      %v3554 = vsel %vm3552, %v3542, 0
      %3556 = vmatprep.subr.mxu0 0.0
      %3557 = vmatpush1.msra.mxu0 %v3543
      %3558 = vmatprep.subr.mxu0 0.0
      %3559 = vmatpush1.msra.mxu0 %v3544
      %3560 = vmatprep.subr.mxu0 0.0
      %3561 = vmatpush1.msra.mxu0 0.0
      %3562 = vmatprep.subr.mxu0 0.0
      %3563 = vmatpush1.msra.mxu0 0.0
      %3564 = vmatprep.subr.mxu0 0.0
      %3565 = vmatpush1.msra.mxu0 0.0
      %3566 = vmatprep.subr.mxu0 0.0
      %3567 = vmatpush1.msra.mxu0 0.0
      %3568 = vmatprep.subr.mxu0 0.0
      %3569 = vmatpush1.msra.mxu0 0.0
      %3570 = vmatprep.subr.mxu0 0.0
      %3571 = vmatpush1.msra.mxu0 0.0
      %3572 = vmatprep.subr.mxu0 0.0
      %3573 = vmatpush1.msra.mxu0 0.0
      %3574 = vmatprep.subr.mxu0 0.0
      %3575 = vmatpush1.msra.mxu0 0.0
      %3576 = vmatprep.subr.mxu0 0.0
      %3577 = vmatpush1.msra.mxu0 0.0
      %3578 = vmatprep.subr.mxu0 0.0
      %3579 = vmatpush1.msra.mxu0 0.0
      %3580 = vmatprep.subr.mxu0 0.0
      %3581 = vmatpush1.msra.mxu0 0.0
      %3582 = vmatprep.subr.mxu0 0.0
      %3583 = vmatpush1.msra.mxu0 0.0
      %3584 = vmatprep.subr.mxu0 0.0
      %3585 = vmatpush1.msra.mxu0 0.0
      %3586 = vmatprep.subr.mxu0 0.0
      %3587 = vmatpush1.msra.mxu0 0.0
      %3588 = vmatprep.subr.mxu0 0.0
      %3589 = vmatpush1.msra.mxu0 0.0
      %3590 = vmatprep.subr.mxu0 0.0
      %3591 = vmatpush1.msra.mxu0 0.0
      %3592 = vmatprep.subr.mxu0 0.0
      %3593 = vmatpush1.msra.mxu0 0.0
      %3594 = vmatprep.subr.mxu0 0.0
      %3595 = vmatpush1.msra.mxu0 0.0
      %3596 = vmatprep.subr.mxu0 0.0
      %3597 = vmatpush1.msra.mxu0 0.0
      %3598 = vmatprep.subr.mxu0 0.0
      %3599 = vmatpush1.msra.mxu0 0.0
      %3600 = vmatprep.subr.mxu0 0.0
      %3601 = vmatpush1.msra.mxu0 0.0
      %3602 = vmatprep.subr.mxu0 0.0
      %3603 = vmatpush1.msra.mxu0 0.0
      %3604 = vmatprep.subr.mxu0 0.0
      %3605 = vmatpush1.msra.mxu0 0.0
      %3606 = vmatprep.subr.mxu0 0.0
      %3607 = vmatpush1.msra.mxu0 0.0
      %3608 = vmatprep.subr.mxu0 0.0
      %3609 = vmatpush1.msra.mxu0 0.0
      %3610 = vmatprep.subr.mxu0 0.0
      %3611 = vmatpush1.msra.mxu0 0.0
      %3612 = vmatprep.subr.mxu0 0.0
      %3613 = vmatpush1.msra.mxu0 0.0
      %3614 = vmatprep.subr.mxu0 0.0
      %3615 = vmatpush1.msra.mxu0 0.0
      %3616 = vmatprep.subr.mxu0 0.0
      %3617 = vmatpush1.msra.mxu0 0.0
      %3618 = vmatprep.subr.mxu0 0.0
      %3619 = vmatpush1.msra.mxu0 0.0
      %3620 = vmatprep.mubr.f32.mxu0 0.0
      %3621 = vmatmul.mubr.f32.gmra.mrb[0].mxu0 %v3554
      %v3622 = vpop.f32.mrb[0].mxu0
      %v3623 = vadd.f32 %v3550, %v3622
      %v3624 = vpop.f32.mrb[0].mxu0
      %3625 = vdwg.mxu0
      %3626 = vst [vmem:[%s386] sm:$0xf] %v3623
      %p3627 = scmp.lt.s32.totalorder %s22, 1
      %s3628 = scalar_select %p3627, %s22, 1
      %s3629 = smul.addr %s3628, 4
      %s3630 = scalar_lea.vmem %s11, %s3629
      // Predicated region
      $region65: #{patch_model_forward.1} parent=63 // pred_check
        %p3631 = pneg %p276
      $region66: #{patch_model_forward.1} parent=63 // pred_check_branch
        %3633 = sbr.rel (%p3631) target = $region68
      $region67: #{patch_model_forward.1} parent=63 // pred_region
        _
      $region68: #{patch_model_forward.1} parent=63 // pred_fallthru
        _
    $region64: #{patch_model_forward.1} parent=5 // pred_fallthru
      _
    %p3634 = scmp.le.s32.totalorder 2, %s17
    // Predicated region
    $region69: #{patch_model_forward.1} parent=5 // pred_check
      %p3635 = pneg %p3634
    $region70: #{patch_model_forward.1} parent=5 // pred_check_branch
      %3637 = sbr.rel (%p3635) target = $region72
    $region71: #{patch_model_forward.1} parent=5 // pred_region
      %s3638 = ssub.s32 %s17, 2
      // Predicated region
      $region73: #{patch_model_forward.1} parent=71 // pred_check
        %p3639 = pneg %p282
      $region74: #{patch_model_forward.1} parent=71 // pred_check_branch
        %3641 = sbr.rel (%p3639) target = $region76
      $region75: #{patch_model_forward.1} parent=71 // pred_region
        %p3642 = scmp.lt.s32.totalorder %s23, 1
        %s3643 = scalar_select %p3642, %s23, 1
        %s3644 = smul.addr %s3643, 4
        %s3645 = scalar_lea.vmem %s11, %s3644
      $region76: #{patch_model_forward.1} parent=71 // pred_fallthru
        _
    $region72: #{patch_model_forward.1} parent=5 // pred_fallthru
      _
  $region6: #{patch_model_forward.1} parent=0 // loop_footer
    %s21 = sadd.s32 1, %s17
  $region7: #{patch_model_forward.1} parent=0 // loop_footer_branch
    %16 = sbr.rel target = $region3
  $region8: #{patch_model_forward.1} parent=0 // loop_exit
    _

</llo_original>
